<compile_context>
chip_gen: v7x
topology: tpu7x:2x2x1
jax: 0.10.0
libtpu: 0.0.40
codegen_flags: <defaults>
</compile_context>

<pallas_src>
import math
import functools
import numpy as np
import jax
import jax.numpy as jnp
from jax.experimental import pallas as pl
from jax.experimental.pallas import tpu as pltpu

LN_EPS = 1e-5        # nn.LayerNorm default eps
PERF_EPS = 1e-8      # Token_performer epsilon
MATMUL_DTYPE = jnp.float32   # set to jnp.bfloat16 for 2-4x MXU throughput (approximate)


def _round_up(x, n):
    return ((x + n - 1) // n) * n


def _gelu(x):
    # PyTorch nn.GELU default = exact (erf-based) GELU
    return 0.5 * x * (1.0 + jax.lax.erf(x * 0.7071067811865476))


# -----------------------------------------------------------------------------
# Pallas kernels
# -----------------------------------------------------------------------------
def token_performer_kernel(x_ref, n1g, n1b, w1_ref, b1_ref, w2_ref, b2_ref,
                           proj_w, proj_b, n2g, n2b,
                           mlp_w1, mlp_b1, mlp_w2, mlp_b2,
                           o_ref, ksum_ref, kptv_ref,
                           *, emb, m, t_true, t_tile):
    """One (pass, sequence-tile) step of Token_performer for one batch element.

    pass 0: accumulate ksum = sum_t kp[t] and kptv = kp^T @ v into VMEM scratch.
    pass 1: qp, linear-attention output, residual + LN2 + MLP; write (emb, t_tile).
    """
    pass_id = pl.program_id(1)
    tile_id = pl.program_id(2)
    inv_sqrt_m = 1.0 / math.sqrt(m)

    # ---- LayerNorm 1 on the (t_tile, dim) tile (recomputed per pass) ----
    x = x_ref[0]
    mu = jnp.mean(x, axis=-1, keepdims=True)
    var = jnp.mean((x - mu) ** 2, axis=-1, keepdims=True)
    xn = (x - mu) * jax.lax.rsqrt(var + LN_EPS) * n1g[...] + n1b[...]
    xn_c = xn.astype(MATMUL_DTYPE)

    # mask for sequence-padding rows (only matters when T was padded to a tile multiple)
    row = tile_id * t_tile + jax.lax.broadcasted_iota(jnp.int32, (t_tile, 1), 0)
    valid = row < t_true

    @pl.when(pass_id == 0)
    def _accumulate_kv():
        @pl.when(tile_id == 0)
        def _init():
            ksum_ref[...] = jnp.zeros_like(ksum_ref)
            kptv_ref[...] = jnp.zeros_like(kptv_ref)

        # one fused matmul: [k | v | k @ wperf^T]
        kvz = jnp.dot(xn_c, w1_ref[...].astype(MATMUL_DTYPE),
                      preferred_element_type=jnp.float32) + b1_ref[...]
        k = kvz[:, 0:emb]
        v = kvz[:, emb:2 * emb]
        wtk = kvz[:, 2 * emb:2 * emb + m]
        kp = jnp.exp(wtk - 0.5 * jnp.sum(k * k, axis=-1, keepdims=True)) * inv_sqrt_m
        kp = jnp.where(valid, kp, 0.0)
        ksum_ref[...] += jnp.sum(kp, axis=0, keepdims=True)
        # kp^T @ v without materializing a transpose: contract over the token axis.
        kptv_ref[...] += jax.lax.dot_general(
            kp.astype(MATMUL_DTYPE), v.astype(MATMUL_DTYPE),
            dimension_numbers=(((0,), (0,)), ((), ())),
            preferred_element_type=jnp.float32)

    @pl.when(pass_id == 1)
    def _emit_tokens():
        # one fused matmul: [v | q | q @ wperf^T]
        vqz = jnp.dot(xn_c, w2_ref[...].astype(MATMUL_DTYPE),
                      preferred_element_type=jnp.float32) + b2_ref[...]
        v = vqz[:, 0:emb]
        q = vqz[:, emb:2 * emb]
        wtq = vqz[:, 2 * emb:2 * emb + m]
        qp = jnp.exp(wtq - 0.5 * jnp.sum(q * q, axis=-1, keepdims=True)) * inv_sqrt_m

        d = jnp.sum(qp * ksum_ref[...], axis=-1, keepdims=True)            # (t_tile, 1)
        y = jnp.dot(qp.astype(MATMUL_DTYPE), kptv_ref[...].astype(MATMUL_DTYPE),
                    preferred_element_type=jnp.float32)
        y = y * pl.reciprocal(d + PERF_EPS, approx=True)
        y = v + (jnp.dot(y.astype(MATMUL_DTYPE), proj_w[...].astype(MATMUL_DTYPE),
                         preferred_element_type=jnp.float32) + proj_b[...])

        # ---- LayerNorm 2 + MLP residual ----
        mu2 = jnp.mean(y, axis=-1, keepdims=True)
        var2 = jnp.mean((y - mu2) ** 2, axis=-1, keepdims=True)
        yn = (y - mu2) * jax.lax.rsqrt(var2 + LN_EPS) * n2g[...] + n2b[...]
        h = jnp.dot(yn.astype(MATMUL_DTYPE), mlp_w1[...].astype(MATMUL_DTYPE),
                    preferred_element_type=jnp.float32) + mlp_b1[...]
        h = _gelu(h)
        h = jnp.dot(h.astype(MATMUL_DTYPE), mlp_w2[...].astype(MATMUL_DTYPE),
                    preferred_element_type=jnp.float32) + mlp_b2[...]

        # channel-major, lane-dense store: (emb, t_tile)
        o_ref[0] = jnp.transpose(y + h).astype(o_ref.dtype)


def linear_kernel(x_ref, w_ref, b_ref, o_ref):
    x = x_ref[0].astype(MATMUL_DTYPE)
    w = w_ref[...].astype(MATMUL_DTYPE)
    o_ref[0] = (jnp.dot(x, w, preferred_element_type=jnp.float32)
                + b_ref[...]).astype(o_ref.dtype)


# -----------------------------------------------------------------------------
# Pallas wrappers
# -----------------------------------------------------------------------------
def token_performer(x, prm, *, t_tile=256):
    """Token_performer block.  x: (B, T, dim) token-major.
    Returns channel-major (B, emb, T) so the following reshape to (B, C, s, s) is free."""
    B, T, dim = x.shape
    emb = prm["proj_w"].shape[0]
    m = prm["wperf"].shape[0]

    tile = min(t_tile, _round_up(T, 8))
    T_pad = _round_up(T, tile)
    if T_pad != T:
        x = jnp.pad(x, ((0, 0), (0, T_pad - T), (0, 0)))
    nT = T_pad // tile

    # Fold the fixed performer projection wperf into the kqv weights (host-side, one-time):
    # pass 0 needs [k | v | k @ wperf^T], pass 1 needs [v | q | q @ wperf^T].
    wperf_t = prm["wperf"].T                                   # (emb, m), pre-transposed
    wk = prm["kqv_w"][:, 0:emb]
    wq = prm["kqv_w"][:, emb:2 * emb]
    wv = prm["kqv_w"][:, 2 * emb:3 * emb]
    bk = prm["kqv_b"][:, 0:emb]
    bq = prm["kqv_b"][:, emb:2 * emb]
    bv = prm["kqv_b"][:, 2 * emb:3 * emb]
    w_p0 = jnp.concatenate([wk, wv, wk @ wperf_t], axis=1)     # (dim, 2*emb + m)
    b_p0 = jnp.concatenate([bk, bv, bk @ wperf_t], axis=1)     # (1,   2*emb + m)
    w_p1 = jnp.concatenate([wv, wq, wq @ wperf_t], axis=1)
    b_p1 = jnp.concatenate([bv, bq, bq @ wperf_t], axis=1)

    kern = functools.partial(token_performer_kernel,
                             emb=emb, m=m, t_true=T, t_tile=tile)

    def rep(shape):   # weights / biases: block index never changes -> stay resident in VMEM
        return pl.BlockSpec(shape, lambda b, p, t: (0, 0))

    out = pl.pallas_call(
        kern,
        out_shape=jax.ShapeDtypeStruct((B, emb, T_pad), jnp.float32),
        grid=(B, 2, nT),
        in_specs=[
            pl.BlockSpec((1, tile, dim), lambda b, p, t: (b, t, 0)),
            rep((1, dim)), rep((1, dim)),
            rep((dim, 2 * emb + m)), rep((1, 2 * emb + m)),
            rep((dim, 2 * emb + m)), rep((1, 2 * emb + m)),
            rep((emb, emb)), rep((1, emb)),
            rep((1, emb)), rep((1, emb)),
            rep((emb, emb)), rep((1, emb)),
            rep((emb, emb)), rep((1, emb)),
        ],
        # Output is only written in pass 1; during pass 0 the block index is pinned at
        # (b, 0, 0) so no never-written block is flushed to HBM before pass 1 fills it.
        out_specs=pl.BlockSpec((1, emb, tile), lambda b, p, t: (b, 0, p * t)),
        scratch_shapes=[pltpu.VMEM((1, m), jnp.float32),      # ksum
                        pltpu.VMEM((m, emb), jnp.float32)],   # kptv = kp^T @ v
        compiler_params=pltpu.CompilerParams(
            dimension_semantics=("parallel", "arbitrary", "arbitrary")),
    )(x, prm["n1g"], prm["n1b"], w_p0, b_p0, w_p1, b_p1,
      prm["proj_w"], prm["proj_b"], prm["n2g"], prm["n2b"],
      prm["mlp_w1"], prm["mlp_b1"], prm["mlp_w2"], prm["mlp_b2"])
    return out[:, :, :T]


def pallas_linear(x, w, b):
    """Final projection.  x: (B, T, din) token-major -> (B, T, dout)."""
    B, T, din = x.shape
    dout = w.shape[1]
    return pl.pallas_call(
        linear_kernel,
        out_shape=jax.ShapeDtypeStruct((B, T, dout), jnp.float32),
        grid=(B,),
        in_specs=[pl.BlockSpec((1, T, din), lambda i: (i, 0, 0)),
                  pl.BlockSpec((din, dout), lambda i: (0, 0)),
                  pl.BlockSpec((1, dout), lambda i: (0, 0))],
        out_specs=pl.BlockSpec((1, T, dout), lambda i: (i, 0, 0)),
        compiler_params=pltpu.CompilerParams(dimension_semantics=("parallel",)),
    )(x, w, b.reshape(1, dout))


# -----------------------------------------------------------------------------
# Plain-JAX glue: torch.nn.Unfold(...).transpose(1, 2) equivalent (NCHW input)
# TODO(synk): fuse patch extraction into the following Pallas kernel (scalar-prefetched
#             gather / pl.Element index_map) instead of materializing it in HBM via XLA.
# -----------------------------------------------------------------------------
def unfold_tokens(x, k, stride, pad):
    """(B, C, H, W) -> (B, L, C*k*k) with torch.nn.Unfold channel order c*k*k + i*k + j."""
    B, C, H, W = x.shape
    xp = jnp.pad(x, ((0, 0), (0, 0), (pad, pad), (pad, pad)))
    oh = (H + 2 * pad - k) // stride + 1
    ow = (W + 2 * pad - k) // stride + 1
    patches = []
    for i in range(k):
        for j in range(k):
            patches.append(xp[:, :, i:i + stride * oh:stride, j:j + stride * ow:stride])
    p = jnp.stack(patches, axis=2)                 # (B, C, k*k, oh, ow)
    p = p.transpose(0, 3, 4, 1, 2)                 # (B, oh, ow, C, k*k)
    return p.reshape(B, oh * ow, C * k * k)        # token-major


def t2t_forward(x, params):
    # x: (B, C, H, W) NCHW, as in PyTorch
    B = x.shape[0]
    x = unfold_tokens(x, 7, 4, 2)                  # (B, L0, C*49) token-major
    x = token_performer(x, params["attn1"])        # (B, 64, L0) channel-major
    s = int(np.sqrt(x.shape[2]))
    x = x.reshape(B, x.shape[1], s, s)             # free: already channel-major
    x = unfold_tokens(x, 3, 2, 1)                  # (B, L1, 64*9)
    x = token_performer(x, params["attn2"])        # (B, 64, L1)
    s = int(np.sqrt(x.shape[2]))
    x = x.reshape(B, x.shape[1], s, s)
    x = unfold_tokens(x, 3, 2, 1)                  # (B, L2, 64*9)
    x = pallas_linear(x, params["proj_w"], params["proj_b"])
    return x                                       # (B, L2, embed_dim)


# -----------------------------------------------------------------------------
# Pure-JAX reference (validates the kernel incl. the host-side weight fusion)
# -----------------------------------------------------------------------------
def ref_token_performer(x, prm):
    emb = prm["proj_w"].shape[0]
    m = prm["wperf"].shape[0]
    mu = jnp.mean(x, -1, keepdims=True)
    var = jnp.mean((x - mu) ** 2, -1, keepdims=True)
    xn = (x - mu) / jnp.sqrt(var + LN_EPS) * prm["n1g"][0] + prm["n1b"][0]
    kqv = xn @ prm["kqv_w"] + prm["kqv_b"][0]
    k, q, v = kqv[..., :emb], kqv[..., emb:2 * emb], kqv[..., 2 * emb:]

    def prm_exp(z):
        zd = jnp.sum(z * z, -1, keepdims=True) / 2
        wtz = jnp.einsum("bti,mi->btm", z, prm["wperf"])
        return jnp.exp(wtz - zd) / math.sqrt(m)

    kp, qp = prm_exp(k), prm_exp(q)
    D = jnp.einsum("btm,bm->bt", qp, kp.sum(1))[..., None]
    kptv = jnp.einsum("btn,btm->bnm", v, kp)
    y = jnp.einsum("btm,bnm->btn", qp, kptv) / (D + PERF_EPS)
    y = v + y @ prm["proj_w"] + prm["proj_b"][0]
    mu2 = jnp.mean(y, -1, keepdims=True)
    var2 = jnp.mean((y - mu2) ** 2, -1, keepdims=True)
    yn = (y - mu2) / jnp.sqrt(var2 + LN_EPS) * prm["n2g"][0] + prm["n2b"][0]
    h = _gelu(yn @ prm["mlp_w1"] + prm["mlp_b1"][0])
    h = h @ prm["mlp_w2"] + prm["mlp_b2"][0]
    return y + h


def ref_forward(x, params):
    x = unfold_tokens(x, 7, 4, 2)
    x = ref_token_performer(x, params["attn1"])
    B, L, C = x.shape
    s = int(np.sqrt(L))
    x = x.transpose(0, 2, 1).reshape(B, C, s, s)
    x = unfold_tokens(x, 3, 2, 1)
    x = ref_token_performer(x, params["attn2"])
    B, L, C = x.shape
    s = int(np.sqrt(L))
    x = x.transpose(0, 2, 1).reshape(B, C, s, s)
    x = unfold_tokens(x, 3, 2, 1)
    return x @ params["proj_w"] + params["proj_b"]


# -----------------------------------------------------------------------------
# Deterministic synthetic parameters
# -----------------------------------------------------------------------------
def init_performer_params(key, dim, emb, m):
    ks = jax.random.split(key, 5)
    s = 0.02
    return dict(
        n1g=jnp.ones((1, dim), jnp.float32),
        n1b=jnp.zeros((1, dim), jnp.float32),
        kqv_w=jax.random.normal(ks[0], (dim, 3 * emb), jnp.float32) * s,
        kqv_b=jnp.zeros((1, 3 * emb), jnp.float32),
        # synthetic stand-in for orthogonal_(randn(m, emb)) * sqrt(m)
        wperf=jax.random.normal(ks[1], (m, emb), jnp.float32) * (math.sqrt(m) / math.sqrt(emb)),
        proj_w=jax.random.normal(ks[2], (emb, emb), jnp.float32) * s,
        proj_b=jnp.zeros((1, emb), jnp.float32),
        n2g=jnp.ones((1, emb), jnp.float32),
        n2b=jnp.zeros((1, emb), jnp.float32),
        mlp_w1=jax.random.normal(ks[3], (emb, emb), jnp.float32) * s,
        mlp_b1=jnp.zeros((1, emb), jnp.float32),
        mlp_w2=jax.random.normal(ks[4], (emb, emb), jnp.float32) * s,
        mlp_b2=jnp.zeros((1, emb), jnp.float32),
    )


if __name__ == "__main__":
    key = jax.random.PRNGKey(0)
    kx, k1, k2, k3 = jax.random.split(key, 4)

    # small but structurally faithful shapes
    B, C, H = 2, 3, 32
    token_dim, embed_dim = 64, 128
    m = token_dim // 2   # kernel_ratio = 0.5

    x = jax.random.normal(kx, (B, C, H, H), jnp.float32)   # NCHW input like PyTorch

    params = dict(
        attn1=init_performer_params(k1, C * 7 * 7, token_dim, m),
        attn2=init_performer_params(k2, token_dim * 3 * 3, token_dim, m),
        proj_w=jax.random.normal(k3, (token_dim * 3 * 3, embed_dim), jnp.float32) * 0.02,
        proj_b=jnp.zeros((embed_dim,), jnp.float32),
    )

    out = jax.block_until_ready(jax.jit(t2t_forward)(x, params))
    ref = jax.block_until_ready(ref_forward(x, params))

    num_patches = (H // 16) * (H // 16)
    assert out.shape == (B, num_patches, embed_dim), out.shape
    max_err = float(jnp.max(jnp.abs(out - ref)))
    assert jnp.allclose(out, ref, atol=1e-3, rtol=1e-3), max_err

    print("KERNEL_OK")
</pallas_src>

<mosaic_0001>
module attributes {stable_mosaic.version = 11 : i64} {
  func.func @token_performer_kernel(%arg0: i32, %arg1: i32, %arg2: i32, %arg3: memref<1x64x147xf32, #tpu.memory_space<vmem>>, %arg4: memref<1x147xf32, #tpu.memory_space<vmem>>, %arg5: memref<1x147xf32, #tpu.memory_space<vmem>>, %arg6: memref<147x160xf32, #tpu.memory_space<vmem>>, %arg7: memref<1x160xf32, #tpu.memory_space<vmem>>, %arg8: memref<147x160xf32, #tpu.memory_space<vmem>>, %arg9: memref<1x160xf32, #tpu.memory_space<vmem>>, %arg10: memref<64x64xf32, #tpu.memory_space<vmem>>, %arg11: memref<1x64xf32, #tpu.memory_space<vmem>>, %arg12: memref<1x64xf32, #tpu.memory_space<vmem>>, %arg13: memref<1x64xf32, #tpu.memory_space<vmem>>, %arg14: memref<64x64xf32, #tpu.memory_space<vmem>>, %arg15: memref<1x64xf32, #tpu.memory_space<vmem>>, %arg16: memref<64x64xf32, #tpu.memory_space<vmem>>, %arg17: memref<1x64xf32, #tpu.memory_space<vmem>>, %arg18: memref<1x64x64xf32, #tpu.memory_space<vmem>>, %arg19: memref<1x32xf32, #tpu.memory_space<vmem>>, %arg20: memref<32x64xf32, #tpu.memory_space<vmem>>) attributes {dimension_semantics = [#tpu.dimension_semantics<parallel>, #tpu.dimension_semantics<arbitrary>, #tpu.dimension_semantics<arbitrary>], iteration_bounds = array<i64: 2, 2, 1>, scalar_prefetch = 0 : i64, scratch_operands = 2 : i64, tpu.core_type = #tpu.core_type<tc>, window_params = [{transform_indices = @transform_0, window_bounds = array<i64: 1, 64, 147>}, {pipeline_mode = #tpu.pipeline_mode<synchronous>, transform_indices = @transform_1, window_bounds = array<i64: 1, 147>}, {pipeline_mode = #tpu.pipeline_mode<synchronous>, transform_indices = @transform_2, window_bounds = array<i64: 1, 147>}, {pipeline_mode = #tpu.pipeline_mode<synchronous>, transform_indices = @transform_3, window_bounds = array<i64: 147, 160>}, {pipeline_mode = #tpu.pipeline_mode<synchronous>, transform_indices = @transform_4, window_bounds = array<i64: 1, 160>}, {pipeline_mode = #tpu.pipeline_mode<synchronous>, transform_indices = @transform_5, window_bounds = array<i64: 147, 160>}, {pipeline_mode = #tpu.pipeline_mode<synchronous>, transform_indices = @transform_6, window_bounds = array<i64: 1, 160>}, {pipeline_mode = #tpu.pipeline_mode<synchronous>, transform_indices = @transform_7, window_bounds = array<i64: 64, 64>}, {pipeline_mode = #tpu.pipeline_mode<synchronous>, transform_indices = @transform_8, window_bounds = array<i64: 1, 64>}, {pipeline_mode = #tpu.pipeline_mode<synchronous>, transform_indices = @transform_9, window_bounds = array<i64: 1, 64>}, {pipeline_mode = #tpu.pipeline_mode<synchronous>, transform_indices = @transform_10, window_bounds = array<i64: 1, 64>}, {pipeline_mode = #tpu.pipeline_mode<synchronous>, transform_indices = @transform_11, window_bounds = array<i64: 64, 64>}, {pipeline_mode = #tpu.pipeline_mode<synchronous>, transform_indices = @transform_12, window_bounds = array<i64: 1, 64>}, {pipeline_mode = #tpu.pipeline_mode<synchronous>, transform_indices = @transform_13, window_bounds = array<i64: 64, 64>}, {pipeline_mode = #tpu.pipeline_mode<synchronous>, transform_indices = @transform_14, window_bounds = array<i64: 1, 64>}, {transform_indices = @transform_15, window_bounds = array<i64: 1, 64, 64>}]} {
    %c0 = arith.constant 0 : index
    %c0_0 = arith.constant 0 : index
    %c0_1 = arith.constant 0 : index
    %0 = vector.load %arg3[%c0, %c0_0, %c0_1] : memref<1x64x147xf32, #tpu.memory_space<vmem>>, vector<1x64x147xf32>
    %1 = vector.shape_cast %0 : vector<1x64x147xf32> to vector<64x147xf32>
    %cst = arith.constant dense<0.000000e+00> : vector<64xf32>
    %2 = vector.multi_reduction <add>, %1, %cst [1] : vector<64x147xf32> to vector<64xf32>
    %3 = vector.shape_cast %2 : vector<64xf32> to vector<64x1xf32>
    %cst_2 = arith.constant 1.470000e+02 : f32
    %4 = vector.broadcast %cst_2 : f32 to vector<64x1xf32>
    %5 = arith.divf %3, %4 : vector<64x1xf32>
    %6 = vector.broadcast %5 : vector<64x1xf32> to vector<64x147xf32>
    %7 = arith.subf %1, %6 : vector<64x147xf32>
    %8 = arith.mulf %7, %7 : vector<64x147xf32>
    %cst_3 = arith.constant dense<0.000000e+00> : vector<64xf32>
    %9 = vector.multi_reduction <add>, %8, %cst_3 [1] : vector<64x147xf32> to vector<64xf32>
    %10 = vector.shape_cast %9 : vector<64xf32> to vector<64x1xf32>
    %cst_4 = arith.constant 1.470000e+02 : f32
    %11 = vector.broadcast %cst_4 : f32 to vector<64x1xf32>
    %12 = arith.divf %10, %11 : vector<64x1xf32>
    %13 = vector.broadcast %5 : vector<64x1xf32> to vector<64x147xf32>
    %14 = arith.subf %1, %13 : vector<64x147xf32>
    %cst_5 = arith.constant 9.99999974E-6 : f32
    %15 = vector.broadcast %cst_5 : f32 to vector<64x1xf32>
    %16 = arith.addf %12, %15 : vector<64x1xf32>
    %17 = math.rsqrt %16 : vector<64x1xf32>
    %18 = vector.broadcast %17 : vector<64x1xf32> to vector<64x147xf32>
    %19 = arith.mulf %14, %18 : vector<64x147xf32>
    %c0_6 = arith.constant 0 : index
    %c0_7 = arith.constant 0 : index
    %20 = vector.load %arg4[%c0_6, %c0_7] : memref<1x147xf32, #tpu.memory_space<vmem>>, vector<1x147xf32>
    %21 = vector.broadcast %20 : vector<1x147xf32> to vector<64x147xf32>
    %22 = arith.mulf %19, %21 : vector<64x147xf32>
    %c0_8 = arith.constant 0 : index
    %c0_9 = arith.constant 0 : index
    %23 = vector.load %arg5[%c0_8, %c0_9] : memref<1x147xf32, #tpu.memory_space<vmem>>, vector<1x147xf32>
    %24 = vector.broadcast %23 : vector<1x147xf32> to vector<64x147xf32>
    %25 = arith.addf %22, %24 : vector<64x147xf32>
    %c64_i32 = arith.constant 64 : i32
    %26 = arith.muli %arg2, %c64_i32 : i32
    %27 = tpu.iota {dimensions = array<i32: 0>} : vector<64x1xi32>
    %28 = vector.broadcast %26 : i32 to vector<64x1xi32>
    %29 = arith.addi %28, %27 : vector<64x1xi32>
    %c64_i32_10 = arith.constant 64 : i32
    %30 = vector.broadcast %c64_i32_10 : i32 to vector<64x1xi32>
    %31 = arith.cmpi slt, %29, %30 : vector<64x1xi32>
    %c0_i32 = arith.constant 0 : i32
    %32 = arith.cmpi eq, %arg1, %c0_i32 : i32
    %33 = arith.extui %32 : i1 to i32
    %c0_i32_11 = arith.constant 0 : i32
    %34 = arith.cmpi ne, %33, %c0_i32_11 : i32
    scf.if %34 {
      %c0_i32_13 = arith.constant 0 : i32
      %38 = arith.cmpi eq, %arg2, %c0_i32_13 : i32
      %39 = arith.extui %38 : i1 to i32
      %c0_i32_14 = arith.constant 0 : i32
      %40 = arith.cmpi ne, %39, %c0_i32_14 : i32
      scf.if %40 {
        %cst_34 = arith.constant 0.000000e+00 : f32
        %72 = vector.broadcast %cst_34 : f32 to vector<1x32xf32>
        %c0_35 = arith.constant 0 : index
        %c0_36 = arith.constant 0 : index
        %73 = vector.load %arg19[%c0_35, %c0_36] : memref<1x32xf32, #tpu.memory_space<vmem>>, vector<1x32xf32>
        tpu.vector_store %arg19[%c0_35, %c0_36], %72 {strides = array<i32>} : memref<1x32xf32, #tpu.memory_space<vmem>>, vector<1x32xf32>,
        %cst_37 = arith.constant 0.000000e+00 : f32
        %74 = vector.broadcast %cst_37 : f32 to vector<32x64xf32>
        %c0_38 = arith.constant 0 : index
        %c0_39 = arith.constant 0 : index
        %75 = vector.load %arg20[%c0_38, %c0_39] : memref<32x64xf32, #tpu.memory_space<vmem>>, vector<32x64xf32>
        tpu.vector_store %arg20[%c0_38, %c0_39], %74 {strides = array<i32>} : memref<32x64xf32, #tpu.memory_space<vmem>>, vector<32x64xf32>,
      } else {
      }
      %c0_15 = arith.constant 0 : index
      %c0_16 = arith.constant 0 : index
      %41 = vector.load %arg6[%c0_15, %c0_16] : memref<147x160xf32, #tpu.memory_space<vmem>>, vector<147x160xf32>
      %cst_17 = arith.constant dense<0.000000e+00> : vector<64x160xf32>
      %42 = tpu.matmul %25, %41, %cst_17 {dimension_numbers = #tpu.dot_dimension_numbers<[1], [0], [0], [1], [0, 0, 1, 1], [], []>} : vector<64x147xf32>, vector<147x160xf32>, vector<64x160xf32> -> vector<64x160xf32>
      %c0_18 = arith.constant 0 : index
      %c0_19 = arith.constant 0 : index
      %43 = vector.load %arg7[%c0_18, %c0_19] : memref<1x160xf32, #tpu.memory_space<vmem>>, vector<1x160xf32>
      %44 = vector.broadcast %43 : vector<1x160xf32> to vector<64x160xf32>
      %45 = arith.addf %42, %44 : vector<64x160xf32>
      %46 = vector.extract_strided_slice %45 {offsets = [0, 0], sizes = [64, 64], strides = [1, 1]} : vector<64x160xf32> to vector<64x64xf32>
      %47 = vector.extract_strided_slice %45 {offsets = [0, 64], sizes = [64, 64], strides = [1, 1]} : vector<64x160xf32> to vector<64x64xf32>
      %48 = vector.extract_strided_slice %45 {offsets = [0, 128], sizes = [64, 32], strides = [1, 1]} : vector<64x160xf32> to vector<64x32xf32>
      %49 = arith.mulf %46, %46 : vector<64x64xf32>
      %cst_20 = arith.constant dense<0.000000e+00> : vector<64xf32>
      %50 = vector.multi_reduction <add>, %49, %cst_20 [1] : vector<64x64xf32> to vector<64xf32>
      %51 = vector.shape_cast %50 : vector<64xf32> to vector<64x1xf32>
      %cst_21 = arith.constant 5.000000e-01 : f32
      %52 = vector.broadcast %cst_21 : f32 to vector<64x1xf32>
      %53 = arith.mulf %52, %51 : vector<64x1xf32>
      %54 = vector.broadcast %53 : vector<64x1xf32> to vector<64x32xf32>
      %55 = arith.subf %48, %54 : vector<64x32xf32>
      %56 = math.exp %55 : vector<64x32xf32>
      %cst_22 = arith.constant 0.176776692 : f32
      %57 = vector.broadcast %cst_22 : f32 to vector<64x32xf32>
      %58 = arith.mulf %56, %57 : vector<64x32xf32>
      %cst_23 = arith.constant 0.000000e+00 : f32
      %59 = vector.shape_cast %31 : vector<64x1xi1> to vector<64x1xi1>
      %60 = vector.broadcast %59 : vector<64x1xi1> to vector<64x32xi1>
      %61 = vector.broadcast %cst_23 : f32 to vector<64x32xf32>
      %62 = arith.select %60, %58, %61 : vector<64x32xi1>, vector<64x32xf32>
      %c0_24 = arith.constant 0 : index
      %c0_25 = arith.constant 0 : index
      %63 = vector.load %arg19[%c0_24, %c0_25] : memref<1x32xf32, #tpu.memory_space<vmem>>, vector<1x32xf32>
      %cst_26 = arith.constant dense<0.000000e+00> : vector<32xf32>
      %64 = vector.multi_reduction <add>, %62, %cst_26 [0] : vector<64x32xf32> to vector<32xf32>
      %65 = vector.shape_cast %64 : vector<32xf32> to vector<1x32xf32>
      %66 = arith.addf %63, %65 : vector<1x32xf32>
      %c0_27 = arith.constant 0 : index
      %c0_28 = arith.constant 0 : index
      %67 = vector.load %arg19[%c0_27, %c0_28] : memref<1x32xf32, #tpu.memory_space<vmem>>, vector<1x32xf32>
      tpu.vector_store %arg19[%c0_27, %c0_28], %66 {strides = array<i32>} : memref<1x32xf32, #tpu.memory_space<vmem>>, vector<1x32xf32>,
      %c0_29 = arith.constant 0 : index
      %c0_30 = arith.constant 0 : index
      %68 = vector.load %arg20[%c0_29, %c0_30] : memref<32x64xf32, #tpu.memory_space<vmem>>, vector<32x64xf32>
      %cst_31 = arith.constant dense<0.000000e+00> : vector<32x64xf32>
      %69 = tpu.matmul %62, %47, %cst_31 {dimension_numbers = #tpu.dot_dimension_numbers<[0], [0], [1], [1], [0, 1, 1, 1], [], []>} : vector<64x32xf32>, vector<64x64xf32>, vector<32x64xf32> -> vector<32x64xf32>
      %70 = arith.addf %68, %69 : vector<32x64xf32>
      %c0_32 = arith.constant 0 : index
      %c0_33 = arith.constant 0 : index
      %71 = vector.load %arg20[%c0_32, %c0_33] : memref<32x64xf32, #tpu.memory_space<vmem>>, vector<32x64xf32>
      tpu.vector_store %arg20[%c0_32, %c0_33], %70 {strides = array<i32>} : memref<32x64xf32, #tpu.memory_space<vmem>>, vector<32x64xf32>,
    } else {
    }
    %c1_i32 = arith.constant 1 : i32
    %35 = arith.cmpi eq, %arg1, %c1_i32 : i32
    %36 = arith.extui %35 : i1 to i32
    %c0_i32_12 = arith.constant 0 : i32
    %37 = arith.cmpi ne, %36, %c0_i32_12 : i32
    scf.if %37 {
      %c0_13 = arith.constant 0 : index
      %c0_14 = arith.constant 0 : index
      %38 = vector.load %arg8[%c0_13, %c0_14] : memref<147x160xf32, #tpu.memory_space<vmem>>, vector<147x160xf32>
      %cst_15 = arith.constant dense<0.000000e+00> : vector<64x160xf32>
      %39 = tpu.matmul %25, %38, %cst_15 {dimension_numbers = #tpu.dot_dimension_numbers<[1], [0], [0], [1], [0, 0, 1, 1], [], []>} : vector<64x147xf32>, vector<147x160xf32>, vector<64x160xf32> -> vector<64x160xf32>
      %c0_16 = arith.constant 0 : index
      %c0_17 = arith.constant 0 : index
      %40 = vector.load %arg9[%c0_16, %c0_17] : memref<1x160xf32, #tpu.memory_space<vmem>>, vector<1x160xf32>
      %41 = vector.broadcast %40 : vector<1x160xf32> to vector<64x160xf32>
      %42 = arith.addf %39, %41 : vector<64x160xf32>
      %43 = vector.extract_strided_slice %42 {offsets = [0, 0], sizes = [64, 64], strides = [1, 1]} : vector<64x160xf32> to vector<64x64xf32>
      %44 = vector.extract_strided_slice %42 {offsets = [0, 64], sizes = [64, 64], strides = [1, 1]} : vector<64x160xf32> to vector<64x64xf32>
      %45 = vector.extract_strided_slice %42 {offsets = [0, 128], sizes = [64, 32], strides = [1, 1]} : vector<64x160xf32> to vector<64x32xf32>
      %46 = arith.mulf %44, %44 : vector<64x64xf32>
      %cst_18 = arith.constant dense<0.000000e+00> : vector<64xf32>
      %47 = vector.multi_reduction <add>, %46, %cst_18 [1] : vector<64x64xf32> to vector<64xf32>
      %48 = vector.shape_cast %47 : vector<64xf32> to vector<64x1xf32>
      %cst_19 = arith.constant 5.000000e-01 : f32
      %49 = vector.broadcast %cst_19 : f32 to vector<64x1xf32>
      %50 = arith.mulf %49, %48 : vector<64x1xf32>
      %51 = vector.broadcast %50 : vector<64x1xf32> to vector<64x32xf32>
      %52 = arith.subf %45, %51 : vector<64x32xf32>
      %53 = math.exp %52 : vector<64x32xf32>
      %cst_20 = arith.constant 0.176776692 : f32
      %54 = vector.broadcast %cst_20 : f32 to vector<64x32xf32>
      %55 = arith.mulf %53, %54 : vector<64x32xf32>
      %c0_21 = arith.constant 0 : index
      %c0_22 = arith.constant 0 : index
      %56 = vector.load %arg19[%c0_21, %c0_22] : memref<1x32xf32, #tpu.memory_space<vmem>>, vector<1x32xf32>
      %57 = vector.broadcast %56 : vector<1x32xf32> to vector<64x32xf32>
      %58 = arith.mulf %55, %57 : vector<64x32xf32>
      %cst_23 = arith.constant dense<0.000000e+00> : vector<64xf32>
      %59 = vector.multi_reduction <add>, %58, %cst_23 [1] : vector<64x32xf32> to vector<64xf32>
      %60 = vector.shape_cast %59 : vector<64xf32> to vector<64x1xf32>
      %c0_24 = arith.constant 0 : index
      %c0_25 = arith.constant 0 : index
      %61 = vector.load %arg20[%c0_24, %c0_25] : memref<32x64xf32, #tpu.memory_space<vmem>>, vector<32x64xf32>
      %cst_26 = arith.constant dense<0.000000e+00> : vector<64x64xf32>
      %62 = tpu.matmul %55, %61, %cst_26 {dimension_numbers = #tpu.dot_dimension_numbers<[1], [0], [0], [1], [0, 0, 1, 1], [], []>} : vector<64x32xf32>, vector<32x64xf32>, vector<64x64xf32> -> vector<64x64xf32>
      %cst_27 = arith.constant 9.99999993E-9 : f32
      %63 = vector.broadcast %cst_27 : f32 to vector<64x1xf32>
      %64 = arith.addf %60, %63 : vector<64x1xf32>
      %65 = tpu.reciprocal %64 {approx = true} : vector<64x1xf32> -> vector<64x1xf32>
      %66 = vector.broadcast %65 : vector<64x1xf32> to vector<64x64xf32>
      %67 = arith.mulf %62, %66 : vector<64x64xf32>
      %c0_28 = arith.constant 0 : index
      %c0_29 = arith.constant 0 : index
      %68 = vector.load %arg10[%c0_28, %c0_29] : memref<64x64xf32, #tpu.memory_space<vmem>>, vector<64x64xf32>
      %cst_30 = arith.constant dense<0.000000e+00> : vector<64x64xf32>
      %69 = tpu.matmul %67, %68, %cst_30 {dimension_numbers = #tpu.dot_dimension_numbers<[1], [0], [0], [1], [0, 0, 1, 1], [], []>} : vector<64x64xf32>, vector<64x64xf32>, vector<64x64xf32> -> vector<64x64xf32>
      %c0_31 = arith.constant 0 : index
      %c0_32 = arith.constant 0 : index
      %70 = vector.load %arg11[%c0_31, %c0_32] : memref<1x64xf32, #tpu.memory_space<vmem>>, vector<1x64xf32>
      %71 = vector.broadcast %70 : vector<1x64xf32> to vector<64x64xf32>
      %72 = arith.addf %69, %71 : vector<64x64xf32>
      %73 = arith.addf %43, %72 : vector<64x64xf32>
      %cst_33 = arith.constant dense<0.000000e+00> : vector<64xf32>
      %74 = vector.multi_reduction <add>, %73, %cst_33 [1] : vector<64x64xf32> to vector<64xf32>
      %75 = vector.shape_cast %74 : vector<64xf32> to vector<64x1xf32>
      %cst_34 = arith.constant 6.400000e+01 : f32
      %76 = vector.broadcast %cst_34 : f32 to vector<64x1xf32>
      %77 = arith.divf %75, %76 : vector<64x1xf32>
      %78 = vector.broadcast %77 : vector<64x1xf32> to vector<64x64xf32>
      %79 = arith.subf %73, %78 : vector<64x64xf32>
      %80 = arith.mulf %79, %79 : vector<64x64xf32>
      %cst_35 = arith.constant dense<0.000000e+00> : vector<64xf32>
      %81 = vector.multi_reduction <add>, %80, %cst_35 [1] : vector<64x64xf32> to vector<64xf32>
      %82 = vector.shape_cast %81 : vector<64xf32> to vector<64x1xf32>
      %cst_36 = arith.constant 6.400000e+01 : f32
      %83 = vector.broadcast %cst_36 : f32 to vector<64x1xf32>
      %84 = arith.divf %82, %83 : vector<64x1xf32>
      %85 = vector.broadcast %77 : vector<64x1xf32> to vector<64x64xf32>
      %86 = arith.subf %73, %85 : vector<64x64xf32>
      %cst_37 = arith.constant 9.99999974E-6 : f32
      %87 = vector.broadcast %cst_37 : f32 to vector<64x1xf32>
      %88 = arith.addf %84, %87 : vector<64x1xf32>
      %89 = math.rsqrt %88 : vector<64x1xf32>
      %90 = vector.broadcast %89 : vector<64x1xf32> to vector<64x64xf32>
      %91 = arith.mulf %86, %90 : vector<64x64xf32>
      %c0_38 = arith.constant 0 : index
      %c0_39 = arith.constant 0 : index
      %92 = vector.load %arg12[%c0_38, %c0_39] : memref<1x64xf32, #tpu.memory_space<vmem>>, vector<1x64xf32>
      %93 = vector.broadcast %92 : vector<1x64xf32> to vector<64x64xf32>
      %94 = arith.mulf %91, %93 : vector<64x64xf32>
      %c0_40 = arith.constant 0 : index
      %c0_41 = arith.constant 0 : index
      %95 = vector.load %arg13[%c0_40, %c0_41] : memref<1x64xf32, #tpu.memory_space<vmem>>, vector<1x64xf32>
      %96 = vector.broadcast %95 : vector<1x64xf32> to vector<64x64xf32>
      %97 = arith.addf %94, %96 : vector<64x64xf32>
      %c0_42 = arith.constant 0 : index
      %c0_43 = arith.constant 0 : index
      %98 = vector.load %arg14[%c0_42, %c0_43] : memref<64x64xf32, #tpu.memory_space<vmem>>, vector<64x64xf32>
      %cst_44 = arith.constant dense<0.000000e+00> : vector<64x64xf32>
      %99 = tpu.matmul %97, %98, %cst_44 {dimension_numbers = #tpu.dot_dimension_numbers<[1], [0], [0], [1], [0, 0, 1, 1], [], []>} : vector<64x64xf32>, vector<64x64xf32>, vector<64x64xf32> -> vector<64x64xf32>
      %c0_45 = arith.constant 0 : index
      %c0_46 = arith.constant 0 : index
      %100 = vector.load %arg15[%c0_45, %c0_46] : memref<1x64xf32, #tpu.memory_space<vmem>>, vector<1x64xf32>
      %101 = vector.broadcast %100 : vector<1x64xf32> to vector<64x64xf32>
      %102 = arith.addf %99, %101 : vector<64x64xf32>
      %cst_47 = arith.constant 5.000000e-01 : f32
      %103 = vector.broadcast %cst_47 : f32 to vector<64x64xf32>
      %104 = arith.mulf %103, %102 : vector<64x64xf32>
      %cst_48 = arith.constant 0.707106769 : f32
      %105 = vector.broadcast %cst_48 : f32 to vector<64x64xf32>
      %106 = arith.mulf %102, %105 : vector<64x64xf32>
      %107 = math.erf %106 : vector<64x64xf32>
      %cst_49 = arith.constant 1.000000e+00 : f32
      %108 = vector.broadcast %cst_49 : f32 to vector<64x64xf32>
      %109 = arith.addf %108, %107 : vector<64x64xf32>
      %110 = arith.mulf %104, %109 : vector<64x64xf32>
      %c0_50 = arith.constant 0 : index
      %c0_51 = arith.constant 0 : index
      %111 = vector.load %arg16[%c0_50, %c0_51] : memref<64x64xf32, #tpu.memory_space<vmem>>, vector<64x64xf32>
      %cst_52 = arith.constant dense<0.000000e+00> : vector<64x64xf32>
      %112 = tpu.matmul %110, %111, %cst_52 {dimension_numbers = #tpu.dot_dimension_numbers<[1], [0], [0], [1], [0, 0, 1, 1], [], []>} : vector<64x64xf32>, vector<64x64xf32>, vector<64x64xf32> -> vector<64x64xf32>
      %c0_53 = arith.constant 0 : index
      %c0_54 = arith.constant 0 : index
      %113 = vector.load %arg17[%c0_53, %c0_54] : memref<1x64xf32, #tpu.memory_space<vmem>>, vector<1x64xf32>
      %114 = vector.broadcast %113 : vector<1x64xf32> to vector<64x64xf32>
      %115 = arith.addf %112, %114 : vector<64x64xf32>
      %116 = arith.addf %73, %115 : vector<64x64xf32>
      %117 = tpu.transpose %116, [1, 0] : vector<64x64xf32> -> vector<64x64xf32>
      %c0_55 = arith.constant 0 : index
      %c0_56 = arith.constant 0 : index
      %c0_57 = arith.constant 0 : index
      %118 = vector.load %arg18[%c0_55, %c0_56, %c0_57] : memref<1x64x64xf32, #tpu.memory_space<vmem>>, vector<1x64x64xf32>
      %119 = vector.shape_cast %118 : vector<1x64x64xf32> to vector<64x64xf32>
      %120 = vector.shape_cast %117 : vector<64x64xf32> to vector<1x64x64xf32>
      tpu.vector_store %arg18[%c0_55, %c0_56, %c0_57], %120 {strides = array<i32>} : memref<1x64x64xf32, #tpu.memory_space<vmem>>, vector<1x64x64xf32>,
    } else {
    }
    return
  }
  func.func @transform_0(%arg0: i32, %arg1: i32, %arg2: i32) -> (i32, i32, i32) {
    %c0_i32 = arith.constant 0 : i32
    %c0_i32_0 = arith.constant 0 : i32
    return %arg0, %arg2, %c0_i32 : i32, i32, i32
  }
  func.func @transform_1(%arg0: i32, %arg1: i32, %arg2: i32) -> (i32, i32) {
    %c0_i32 = arith.constant 0 : i32
    %c0_i32_0 = arith.constant 0 : i32
    %c0_i32_1 = arith.constant 0 : i32
    return %c0_i32, %c0_i32_0 : i32, i32
  }
  func.func @transform_2(%arg0: i32, %arg1: i32, %arg2: i32) -> (i32, i32) {
    %c0_i32 = arith.constant 0 : i32
    %c0_i32_0 = arith.constant 0 : i32
    %c0_i32_1 = arith.constant 0 : i32
    return %c0_i32, %c0_i32_0 : i32, i32
  }
  func.func @transform_3(%arg0: i32, %arg1: i32, %arg2: i32) -> (i32, i32) {
    %c0_i32 = arith.constant 0 : i32
    %c0_i32_0 = arith.constant 0 : i32
    %c0_i32_1 = arith.constant 0 : i32
    return %c0_i32, %c0_i32_0 : i32, i32
  }
  func.func @transform_4(%arg0: i32, %arg1: i32, %arg2: i32) -> (i32, i32) {
    %c0_i32 = arith.constant 0 : i32
    %c0_i32_0 = arith.constant 0 : i32
    %c0_i32_1 = arith.constant 0 : i32
    return %c0_i32, %c0_i32_0 : i32, i32
  }
  func.func @transform_5(%arg0: i32, %arg1: i32, %arg2: i32) -> (i32, i32) {
    %c0_i32 = arith.constant 0 : i32
    %c0_i32_0 = arith.constant 0 : i32
    %c0_i32_1 = arith.constant 0 : i32
    return %c0_i32, %c0_i32_0 : i32, i32
  }
  func.func @transform_6(%arg0: i32, %arg1: i32, %arg2: i32) -> (i32, i32) {
    %c0_i32 = arith.constant 0 : i32
    %c0_i32_0 = arith.constant 0 : i32
    %c0_i32_1 = arith.constant 0 : i32
    return %c0_i32, %c0_i32_0 : i32, i32
  }
  func.func @transform_7(%arg0: i32, %arg1: i32, %arg2: i32) -> (i32, i32) {
    %c0_i32 = arith.constant 0 : i32
    %c0_i32_0 = arith.constant 0 : i32
    %c0_i32_1 = arith.constant 0 : i32
    return %c0_i32, %c0_i32_0 : i32, i32
  }
  func.func @transform_8(%arg0: i32, %arg1: i32, %arg2: i32) -> (i32, i32) {
    %c0_i32 = arith.constant 0 : i32
    %c0_i32_0 = arith.constant 0 : i32
    %c0_i32_1 = arith.constant 0 : i32
    return %c0_i32, %c0_i32_0 : i32, i32
  }
  func.func @transform_9(%arg0: i32, %arg1: i32, %arg2: i32) -> (i32, i32) {
    %c0_i32 = arith.constant 0 : i32
    %c0_i32_0 = arith.constant 0 : i32
    %c0_i32_1 = arith.constant 0 : i32
    return %c0_i32, %c0_i32_0 : i32, i32
  }
  func.func @transform_10(%arg0: i32, %arg1: i32, %arg2: i32) -> (i32, i32) {
    %c0_i32 = arith.constant 0 : i32
    %c0_i32_0 = arith.constant 0 : i32
    %c0_i32_1 = arith.constant 0 : i32
    return %c0_i32, %c0_i32_0 : i32, i32
  }
  func.func @transform_11(%arg0: i32, %arg1: i32, %arg2: i32) -> (i32, i32) {
    %c0_i32 = arith.constant 0 : i32
    %c0_i32_0 = arith.constant 0 : i32
    %c0_i32_1 = arith.constant 0 : i32
    return %c0_i32, %c0_i32_0 : i32, i32
  }
  func.func @transform_12(%arg0: i32, %arg1: i32, %arg2: i32) -> (i32, i32) {
    %c0_i32 = arith.constant 0 : i32
    %c0_i32_0 = arith.constant 0 : i32
    %c0_i32_1 = arith.constant 0 : i32
    return %c0_i32, %c0_i32_0 : i32, i32
  }
  func.func @transform_13(%arg0: i32, %arg1: i32, %arg2: i32) -> (i32, i32) {
    %c0_i32 = arith.constant 0 : i32
    %c0_i32_0 = arith.constant 0 : i32
    %c0_i32_1 = arith.constant 0 : i32
    return %c0_i32, %c0_i32_0 : i32, i32
  }
  func.func @transform_14(%arg0: i32, %arg1: i32, %arg2: i32) -> (i32, i32) {
    %c0_i32 = arith.constant 0 : i32
    %c0_i32_0 = arith.constant 0 : i32
    %c0_i32_1 = arith.constant 0 : i32
    return %c0_i32, %c0_i32_0 : i32, i32
  }
  func.func @transform_15(%arg0: i32, %arg1: i32, %arg2: i32) -> (i32, i32, i32) {
    %0 = arith.muli %arg1, %arg2 : i32
    %c0_i32 = arith.constant 0 : i32
    %c0_i32_0 = arith.constant 0 : i32
    return %arg0, %c0_i32, %0 : i32, i32, i32
  }
}

module attributes {stable_mosaic.version = 11 : i64} {
  func.func @token_performer_kernel(%arg0: i32, %arg1: i32, %arg2: i32, %arg3: memref<1x16x576xf32, #tpu.memory_space<vmem>>, %arg4: memref<1x576xf32, #tpu.memory_space<vmem>>, %arg5: memref<1x576xf32, #tpu.memory_space<vmem>>, %arg6: memref<576x160xf32, #tpu.memory_space<vmem>>, %arg7: memref<1x160xf32, #tpu.memory_space<vmem>>, %arg8: memref<576x160xf32, #tpu.memory_space<vmem>>, %arg9: memref<1x160xf32, #tpu.memory_space<vmem>>, %arg10: memref<64x64xf32, #tpu.memory_space<vmem>>, %arg11: memref<1x64xf32, #tpu.memory_space<vmem>>, %arg12: memref<1x64xf32, #tpu.memory_space<vmem>>, %arg13: memref<1x64xf32, #tpu.memory_space<vmem>>, %arg14: memref<64x64xf32, #tpu.memory_space<vmem>>, %arg15: memref<1x64xf32, #tpu.memory_space<vmem>>, %arg16: memref<64x64xf32, #tpu.memory_space<vmem>>, %arg17: memref<1x64xf32, #tpu.memory_space<vmem>>, %arg18: memref<1x64x16xf32, #tpu.memory_space<vmem>>, %arg19: memref<1x32xf32, #tpu.memory_space<vmem>>, %arg20: memref<32x64xf32, #tpu.memory_space<vmem>>) attributes {dimension_semantics = [#tpu.dimension_semantics<parallel>, #tpu.dimension_semantics<arbitrary>, #tpu.dimension_semantics<arbitrary>], iteration_bounds = array<i64: 2, 2, 1>, scalar_prefetch = 0 : i64, scratch_operands = 2 : i64, tpu.core_type = #tpu.core_type<tc>, window_params = [{transform_indices = @transform_0, window_bounds = array<i64: 1, 16, 576>}, {pipeline_mode = #tpu.pipeline_mode<synchronous>, transform_indices = @transform_1, window_bounds = array<i64: 1, 576>}, {pipeline_mode = #tpu.pipeline_mode<synchronous>, transform_indices = @transform_2, window_bounds = array<i64: 1, 576>}, {pipeline_mode = #tpu.pipeline_mode<synchronous>, transform_indices = @transform_3, window_bounds = array<i64: 576, 160>}, {pipeline_mode = #tpu.pipeline_mode<synchronous>, transform_indices = @transform_4, window_bounds = array<i64: 1, 160>}, {pipeline_mode = #tpu.pipeline_mode<synchronous>, transform_indices = @transform_5, window_bounds = array<i64: 576, 160>}, {pipeline_mode = #tpu.pipeline_mode<synchronous>, transform_indices = @transform_6, window_bounds = array<i64: 1, 160>}, {pipeline_mode = #tpu.pipeline_mode<synchronous>, transform_indices = @transform_7, window_bounds = array<i64: 64, 64>}, {pipeline_mode = #tpu.pipeline_mode<synchronous>, transform_indices = @transform_8, window_bounds = array<i64: 1, 64>}, {pipeline_mode = #tpu.pipeline_mode<synchronous>, transform_indices = @transform_9, window_bounds = array<i64: 1, 64>}, {pipeline_mode = #tpu.pipeline_mode<synchronous>, transform_indices = @transform_10, window_bounds = array<i64: 1, 64>}, {pipeline_mode = #tpu.pipeline_mode<synchronous>, transform_indices = @transform_11, window_bounds = array<i64: 64, 64>}, {pipeline_mode = #tpu.pipeline_mode<synchronous>, transform_indices = @transform_12, window_bounds = array<i64: 1, 64>}, {pipeline_mode = #tpu.pipeline_mode<synchronous>, transform_indices = @transform_13, window_bounds = array<i64: 64, 64>}, {pipeline_mode = #tpu.pipeline_mode<synchronous>, transform_indices = @transform_14, window_bounds = array<i64: 1, 64>}, {transform_indices = @transform_15, window_bounds = array<i64: 1, 64, 16>}]} {
    %c0 = arith.constant 0 : index
    %c0_0 = arith.constant 0 : index
    %c0_1 = arith.constant 0 : index
    %0 = vector.load %arg3[%c0, %c0_0, %c0_1] : memref<1x16x576xf32, #tpu.memory_space<vmem>>, vector<1x16x576xf32>
    %1 = vector.shape_cast %0 : vector<1x16x576xf32> to vector<16x576xf32>
    %cst = arith.constant dense<0.000000e+00> : vector<16xf32>
    %2 = vector.multi_reduction <add>, %1, %cst [1] : vector<16x576xf32> to vector<16xf32>
    %3 = vector.shape_cast %2 : vector<16xf32> to vector<16x1xf32>
    %cst_2 = arith.constant 5.760000e+02 : f32
    %4 = vector.broadcast %cst_2 : f32 to vector<16x1xf32>
    %5 = arith.divf %3, %4 : vector<16x1xf32>
    %6 = vector.broadcast %5 : vector<16x1xf32> to vector<16x576xf32>
    %7 = arith.subf %1, %6 : vector<16x576xf32>
    %8 = arith.mulf %7, %7 : vector<16x576xf32>
    %cst_3 = arith.constant dense<0.000000e+00> : vector<16xf32>
    %9 = vector.multi_reduction <add>, %8, %cst_3 [1] : vector<16x576xf32> to vector<16xf32>
    %10 = vector.shape_cast %9 : vector<16xf32> to vector<16x1xf32>
    %cst_4 = arith.constant 5.760000e+02 : f32
    %11 = vector.broadcast %cst_4 : f32 to vector<16x1xf32>
    %12 = arith.divf %10, %11 : vector<16x1xf32>
    %13 = vector.broadcast %5 : vector<16x1xf32> to vector<16x576xf32>
    %14 = arith.subf %1, %13 : vector<16x576xf32>
    %cst_5 = arith.constant 9.99999974E-6 : f32
    %15 = vector.broadcast %cst_5 : f32 to vector<16x1xf32>
    %16 = arith.addf %12, %15 : vector<16x1xf32>
    %17 = math.rsqrt %16 : vector<16x1xf32>
    %18 = vector.broadcast %17 : vector<16x1xf32> to vector<16x576xf32>
    %19 = arith.mulf %14, %18 : vector<16x576xf32>
    %c0_6 = arith.constant 0 : index
    %c0_7 = arith.constant 0 : index
    %20 = vector.load %arg4[%c0_6, %c0_7] : memref<1x576xf32, #tpu.memory_space<vmem>>, vector<1x576xf32>
    %21 = vector.broadcast %20 : vector<1x576xf32> to vector<16x576xf32>
    %22 = arith.mulf %19, %21 : vector<16x576xf32>
    %c0_8 = arith.constant 0 : index
    %c0_9 = arith.constant 0 : index
    %23 = vector.load %arg5[%c0_8, %c0_9] : memref<1x576xf32, #tpu.memory_space<vmem>>, vector<1x576xf32>
    %24 = vector.broadcast %23 : vector<1x576xf32> to vector<16x576xf32>
    %25 = arith.addf %22, %24 : vector<16x576xf32>
    %c16_i32 = arith.constant 16 : i32
    %26 = arith.muli %arg2, %c16_i32 : i32
    %27 = tpu.iota {dimensions = array<i32: 0>} : vector<16x1xi32>
    %28 = vector.broadcast %26 : i32 to vector<16x1xi32>
    %29 = arith.addi %28, %27 : vector<16x1xi32>
    %c16_i32_10 = arith.constant 16 : i32
    %30 = vector.broadcast %c16_i32_10 : i32 to vector<16x1xi32>
    %31 = arith.cmpi slt, %29, %30 : vector<16x1xi32>
    %c0_i32 = arith.constant 0 : i32
    %32 = arith.cmpi eq, %arg1, %c0_i32 : i32
    %33 = arith.extui %32 : i1 to i32
    %c0_i32_11 = arith.constant 0 : i32
    %34 = arith.cmpi ne, %33, %c0_i32_11 : i32
    scf.if %34 {
      %c0_i32_13 = arith.constant 0 : i32
      %38 = arith.cmpi eq, %arg2, %c0_i32_13 : i32
      %39 = arith.extui %38 : i1 to i32
      %c0_i32_14 = arith.constant 0 : i32
      %40 = arith.cmpi ne, %39, %c0_i32_14 : i32
      scf.if %40 {
        %cst_34 = arith.constant 0.000000e+00 : f32
        %72 = vector.broadcast %cst_34 : f32 to vector<1x32xf32>
        %c0_35 = arith.constant 0 : index
        %c0_36 = arith.constant 0 : index
        %73 = vector.load %arg19[%c0_35, %c0_36] : memref<1x32xf32, #tpu.memory_space<vmem>>, vector<1x32xf32>
        tpu.vector_store %arg19[%c0_35, %c0_36], %72 {strides = array<i32>} : memref<1x32xf32, #tpu.memory_space<vmem>>, vector<1x32xf32>,
        %cst_37 = arith.constant 0.000000e+00 : f32
        %74 = vector.broadcast %cst_37 : f32 to vector<32x64xf32>
        %c0_38 = arith.constant 0 : index
        %c0_39 = arith.constant 0 : index
        %75 = vector.load %arg20[%c0_38, %c0_39] : memref<32x64xf32, #tpu.memory_space<vmem>>, vector<32x64xf32>
        tpu.vector_store %arg20[%c0_38, %c0_39], %74 {strides = array<i32>} : memref<32x64xf32, #tpu.memory_space<vmem>>, vector<32x64xf32>,
      } else {
      }
      %c0_15 = arith.constant 0 : index
      %c0_16 = arith.constant 0 : index
      %41 = vector.load %arg6[%c0_15, %c0_16] : memref<576x160xf32, #tpu.memory_space<vmem>>, vector<576x160xf32>
      %cst_17 = arith.constant dense<0.000000e+00> : vector<16x160xf32>
      %42 = tpu.matmul %25, %41, %cst_17 {dimension_numbers = #tpu.dot_dimension_numbers<[1], [0], [0], [1], [0, 0, 1, 1], [], []>} : vector<16x576xf32>, vector<576x160xf32>, vector<16x160xf32> -> vector<16x160xf32>
      %c0_18 = arith.constant 0 : index
      %c0_19 = arith.constant 0 : index
      %43 = vector.load %arg7[%c0_18, %c0_19] : memref<1x160xf32, #tpu.memory_space<vmem>>, vector<1x160xf32>
      %44 = vector.broadcast %43 : vector<1x160xf32> to vector<16x160xf32>
      %45 = arith.addf %42, %44 : vector<16x160xf32>
      %46 = vector.extract_strided_slice %45 {offsets = [0, 0], sizes = [16, 64], strides = [1, 1]} : vector<16x160xf32> to vector<16x64xf32>
      %47 = vector.extract_strided_slice %45 {offsets = [0, 64], sizes = [16, 64], strides = [1, 1]} : vector<16x160xf32> to vector<16x64xf32>
      %48 = vector.extract_strided_slice %45 {offsets = [0, 128], sizes = [16, 32], strides = [1, 1]} : vector<16x160xf32> to vector<16x32xf32>
      %49 = arith.mulf %46, %46 : vector<16x64xf32>
      %cst_20 = arith.constant dense<0.000000e+00> : vector<16xf32>
      %50 = vector.multi_reduction <add>, %49, %cst_20 [1] : vector<16x64xf32> to vector<16xf32>
      %51 = vector.shape_cast %50 : vector<16xf32> to vector<16x1xf32>
      %cst_21 = arith.constant 5.000000e-01 : f32
      %52 = vector.broadcast %cst_21 : f32 to vector<16x1xf32>
      %53 = arith.mulf %52, %51 : vector<16x1xf32>
      %54 = vector.broadcast %53 : vector<16x1xf32> to vector<16x32xf32>
      %55 = arith.subf %48, %54 : vector<16x32xf32>
      %56 = math.exp %55 : vector<16x32xf32>
      %cst_22 = arith.constant 0.176776692 : f32
      %57 = vector.broadcast %cst_22 : f32 to vector<16x32xf32>
      %58 = arith.mulf %56, %57 : vector<16x32xf32>
      %cst_23 = arith.constant 0.000000e+00 : f32
      %59 = vector.shape_cast %31 : vector<16x1xi1> to vector<16x1xi1>
      %60 = vector.broadcast %59 : vector<16x1xi1> to vector<16x32xi1>
      %61 = vector.broadcast %cst_23 : f32 to vector<16x32xf32>
      %62 = arith.select %60, %58, %61 : vector<16x32xi1>, vector<16x32xf32>
      %c0_24 = arith.constant 0 : index
      %c0_25 = arith.constant 0 : index
      %63 = vector.load %arg19[%c0_24, %c0_25] : memref<1x32xf32, #tpu.memory_space<vmem>>, vector<1x32xf32>
      %cst_26 = arith.constant dense<0.000000e+00> : vector<32xf32>
      %64 = vector.multi_reduction <add>, %62, %cst_26 [0] : vector<16x32xf32> to vector<32xf32>
      %65 = vector.shape_cast %64 : vector<32xf32> to vector<1x32xf32>
      %66 = arith.addf %63, %65 : vector<1x32xf32>
      %c0_27 = arith.constant 0 : index
      %c0_28 = arith.constant 0 : index
      %67 = vector.load %arg19[%c0_27, %c0_28] : memref<1x32xf32, #tpu.memory_space<vmem>>, vector<1x32xf32>
      tpu.vector_store %arg19[%c0_27, %c0_28], %66 {strides = array<i32>} : memref<1x32xf32, #tpu.memory_space<vmem>>, vector<1x32xf32>,
      %c0_29 = arith.constant 0 : index
      %c0_30 = arith.constant 0 : index
      %68 = vector.load %arg20[%c0_29, %c0_30] : memref<32x64xf32, #tpu.memory_space<vmem>>, vector<32x64xf32>
      %cst_31 = arith.constant dense<0.000000e+00> : vector<32x64xf32>
      %69 = tpu.matmul %62, %47, %cst_31 {dimension_numbers = #tpu.dot_dimension_numbers<[0], [0], [1], [1], [0, 1, 1, 1], [], []>} : vector<16x32xf32>, vector<16x64xf32>, vector<32x64xf32> -> vector<32x64xf32>
      %70 = arith.addf %68, %69 : vector<32x64xf32>
      %c0_32 = arith.constant 0 : index
      %c0_33 = arith.constant 0 : index
      %71 = vector.load %arg20[%c0_32, %c0_33] : memref<32x64xf32, #tpu.memory_space<vmem>>, vector<32x64xf32>
      tpu.vector_store %arg20[%c0_32, %c0_33], %70 {strides = array<i32>} : memref<32x64xf32, #tpu.memory_space<vmem>>, vector<32x64xf32>,
    } else {
    }
    %c1_i32 = arith.constant 1 : i32
    %35 = arith.cmpi eq, %arg1, %c1_i32 : i32
    %36 = arith.extui %35 : i1 to i32
    %c0_i32_12 = arith.constant 0 : i32
    %37 = arith.cmpi ne, %36, %c0_i32_12 : i32
    scf.if %37 {
      %c0_13 = arith.constant 0 : index
      %c0_14 = arith.constant 0 : index
      %38 = vector.load %arg8[%c0_13, %c0_14] : memref<576x160xf32, #tpu.memory_space<vmem>>, vector<576x160xf32>
      %cst_15 = arith.constant dense<0.000000e+00> : vector<16x160xf32>
      %39 = tpu.matmul %25, %38, %cst_15 {dimension_numbers = #tpu.dot_dimension_numbers<[1], [0], [0], [1], [0, 0, 1, 1], [], []>} : vector<16x576xf32>, vector<576x160xf32>, vector<16x160xf32> -> vector<16x160xf32>
      %c0_16 = arith.constant 0 : index
      %c0_17 = arith.constant 0 : index
      %40 = vector.load %arg9[%c0_16, %c0_17] : memref<1x160xf32, #tpu.memory_space<vmem>>, vector<1x160xf32>
      %41 = vector.broadcast %40 : vector<1x160xf32> to vector<16x160xf32>
      %42 = arith.addf %39, %41 : vector<16x160xf32>
      %43 = vector.extract_strided_slice %42 {offsets = [0, 0], sizes = [16, 64], strides = [1, 1]} : vector<16x160xf32> to vector<16x64xf32>
      %44 = vector.extract_strided_slice %42 {offsets = [0, 64], sizes = [16, 64], strides = [1, 1]} : vector<16x160xf32> to vector<16x64xf32>
      %45 = vector.extract_strided_slice %42 {offsets = [0, 128], sizes = [16, 32], strides = [1, 1]} : vector<16x160xf32> to vector<16x32xf32>
      %46 = arith.mulf %44, %44 : vector<16x64xf32>
      %cst_18 = arith.constant dense<0.000000e+00> : vector<16xf32>
      %47 = vector.multi_reduction <add>, %46, %cst_18 [1] : vector<16x64xf32> to vector<16xf32>
      %48 = vector.shape_cast %47 : vector<16xf32> to vector<16x1xf32>
      %cst_19 = arith.constant 5.000000e-01 : f32
      %49 = vector.broadcast %cst_19 : f32 to vector<16x1xf32>
      %50 = arith.mulf %49, %48 : vector<16x1xf32>
      %51 = vector.broadcast %50 : vector<16x1xf32> to vector<16x32xf32>
      %52 = arith.subf %45, %51 : vector<16x32xf32>
      %53 = math.exp %52 : vector<16x32xf32>
      %cst_20 = arith.constant 0.176776692 : f32
      %54 = vector.broadcast %cst_20 : f32 to vector<16x32xf32>
      %55 = arith.mulf %53, %54 : vector<16x32xf32>
      %c0_21 = arith.constant 0 : index
      %c0_22 = arith.constant 0 : index
      %56 = vector.load %arg19[%c0_21, %c0_22] : memref<1x32xf32, #tpu.memory_space<vmem>>, vector<1x32xf32>
      %57 = vector.broadcast %56 : vector<1x32xf32> to vector<16x32xf32>
      %58 = arith.mulf %55, %57 : vector<16x32xf32>
      %cst_23 = arith.constant dense<0.000000e+00> : vector<16xf32>
      %59 = vector.multi_reduction <add>, %58, %cst_23 [1] : vector<16x32xf32> to vector<16xf32>
      %60 = vector.shape_cast %59 : vector<16xf32> to vector<16x1xf32>
      %c0_24 = arith.constant 0 : index
      %c0_25 = arith.constant 0 : index
      %61 = vector.load %arg20[%c0_24, %c0_25] : memref<32x64xf32, #tpu.memory_space<vmem>>, vector<32x64xf32>
      %cst_26 = arith.constant dense<0.000000e+00> : vector<16x64xf32>
      %62 = tpu.matmul %55, %61, %cst_26 {dimension_numbers = #tpu.dot_dimension_numbers<[1], [0], [0], [1], [0, 0, 1, 1], [], []>} : vector<16x32xf32>, vector<32x64xf32>, vector<16x64xf32> -> vector<16x64xf32>
      %cst_27 = arith.constant 9.99999993E-9 : f32
      %63 = vector.broadcast %cst_27 : f32 to vector<16x1xf32>
      %64 = arith.addf %60, %63 : vector<16x1xf32>
      %65 = tpu.reciprocal %64 {approx = true} : vector<16x1xf32> -> vector<16x1xf32>
      %66 = vector.broadcast %65 : vector<16x1xf32> to vector<16x64xf32>
      %67 = arith.mulf %62, %66 : vector<16x64xf32>
      %c0_28 = arith.constant 0 : index
      %c0_29 = arith.constant 0 : index
      %68 = vector.load %arg10[%c0_28, %c0_29] : memref<64x64xf32, #tpu.memory_space<vmem>>, vector<64x64xf32>
      %cst_30 = arith.constant dense<0.000000e+00> : vector<16x64xf32>
      %69 = tpu.matmul %67, %68, %cst_30 {dimension_numbers = #tpu.dot_dimension_numbers<[1], [0], [0], [1], [0, 0, 1, 1], [], []>} : vector<16x64xf32>, vector<64x64xf32>, vector<16x64xf32> -> vector<16x64xf32>
      %c0_31 = arith.constant 0 : index
      %c0_32 = arith.constant 0 : index
      %70 = vector.load %arg11[%c0_31, %c0_32] : memref<1x64xf32, #tpu.memory_space<vmem>>, vector<1x64xf32>
      %71 = vector.broadcast %70 : vector<1x64xf32> to vector<16x64xf32>
      %72 = arith.addf %69, %71 : vector<16x64xf32>
      %73 = arith.addf %43, %72 : vector<16x64xf32>
      %cst_33 = arith.constant dense<0.000000e+00> : vector<16xf32>
      %74 = vector.multi_reduction <add>, %73, %cst_33 [1] : vector<16x64xf32> to vector<16xf32>
      %75 = vector.shape_cast %74 : vector<16xf32> to vector<16x1xf32>
      %cst_34 = arith.constant 6.400000e+01 : f32
      %76 = vector.broadcast %cst_34 : f32 to vector<16x1xf32>
      %77 = arith.divf %75, %76 : vector<16x1xf32>
      %78 = vector.broadcast %77 : vector<16x1xf32> to vector<16x64xf32>
      %79 = arith.subf %73, %78 : vector<16x64xf32>
      %80 = arith.mulf %79, %79 : vector<16x64xf32>
      %cst_35 = arith.constant dense<0.000000e+00> : vector<16xf32>
      %81 = vector.multi_reduction <add>, %80, %cst_35 [1] : vector<16x64xf32> to vector<16xf32>
      %82 = vector.shape_cast %81 : vector<16xf32> to vector<16x1xf32>
      %cst_36 = arith.constant 6.400000e+01 : f32
      %83 = vector.broadcast %cst_36 : f32 to vector<16x1xf32>
      %84 = arith.divf %82, %83 : vector<16x1xf32>
      %85 = vector.broadcast %77 : vector<16x1xf32> to vector<16x64xf32>
      %86 = arith.subf %73, %85 : vector<16x64xf32>
      %cst_37 = arith.constant 9.99999974E-6 : f32
      %87 = vector.broadcast %cst_37 : f32 to vector<16x1xf32>
      %88 = arith.addf %84, %87 : vector<16x1xf32>
      %89 = math.rsqrt %88 : vector<16x1xf32>
      %90 = vector.broadcast %89 : vector<16x1xf32> to vector<16x64xf32>
      %91 = arith.mulf %86, %90 : vector<16x64xf32>
      %c0_38 = arith.constant 0 : index
      %c0_39 = arith.constant 0 : index
      %92 = vector.load %arg12[%c0_38, %c0_39] : memref<1x64xf32, #tpu.memory_space<vmem>>, vector<1x64xf32>
      %93 = vector.broadcast %92 : vector<1x64xf32> to vector<16x64xf32>
      %94 = arith.mulf %91, %93 : vector<16x64xf32>
      %c0_40 = arith.constant 0 : index
      %c0_41 = arith.constant 0 : index
      %95 = vector.load %arg13[%c0_40, %c0_41] : memref<1x64xf32, #tpu.memory_space<vmem>>, vector<1x64xf32>
      %96 = vector.broadcast %95 : vector<1x64xf32> to vector<16x64xf32>
      %97 = arith.addf %94, %96 : vector<16x64xf32>
      %c0_42 = arith.constant 0 : index
      %c0_43 = arith.constant 0 : index
      %98 = vector.load %arg14[%c0_42, %c0_43] : memref<64x64xf32, #tpu.memory_space<vmem>>, vector<64x64xf32>
      %cst_44 = arith.constant dense<0.000000e+00> : vector<16x64xf32>
      %99 = tpu.matmul %97, %98, %cst_44 {dimension_numbers = #tpu.dot_dimension_numbers<[1], [0], [0], [1], [0, 0, 1, 1], [], []>} : vector<16x64xf32>, vector<64x64xf32>, vector<16x64xf32> -> vector<16x64xf32>
      %c0_45 = arith.constant 0 : index
      %c0_46 = arith.constant 0 : index
      %100 = vector.load %arg15[%c0_45, %c0_46] : memref<1x64xf32, #tpu.memory_space<vmem>>, vector<1x64xf32>
      %101 = vector.broadcast %100 : vector<1x64xf32> to vector<16x64xf32>
      %102 = arith.addf %99, %101 : vector<16x64xf32>
      %cst_47 = arith.constant 5.000000e-01 : f32
      %103 = vector.broadcast %cst_47 : f32 to vector<16x64xf32>
      %104 = arith.mulf %103, %102 : vector<16x64xf32>
      %cst_48 = arith.constant 0.707106769 : f32
      %105 = vector.broadcast %cst_48 : f32 to vector<16x64xf32>
      %106 = arith.mulf %102, %105 : vector<16x64xf32>
      %107 = math.erf %106 : vector<16x64xf32>
      %cst_49 = arith.constant 1.000000e+00 : f32
      %108 = vector.broadcast %cst_49 : f32 to vector<16x64xf32>
      %109 = arith.addf %108, %107 : vector<16x64xf32>
      %110 = arith.mulf %104, %109 : vector<16x64xf32>
      %c0_50 = arith.constant 0 : index
      %c0_51 = arith.constant 0 : index
      %111 = vector.load %arg16[%c0_50, %c0_51] : memref<64x64xf32, #tpu.memory_space<vmem>>, vector<64x64xf32>
      %cst_52 = arith.constant dense<0.000000e+00> : vector<16x64xf32>
      %112 = tpu.matmul %110, %111, %cst_52 {dimension_numbers = #tpu.dot_dimension_numbers<[1], [0], [0], [1], [0, 0, 1, 1], [], []>} : vector<16x64xf32>, vector<64x64xf32>, vector<16x64xf32> -> vector<16x64xf32>
      %c0_53 = arith.constant 0 : index
      %c0_54 = arith.constant 0 : index
      %113 = vector.load %arg17[%c0_53, %c0_54] : memref<1x64xf32, #tpu.memory_space<vmem>>, vector<1x64xf32>
      %114 = vector.broadcast %113 : vector<1x64xf32> to vector<16x64xf32>
      %115 = arith.addf %112, %114 : vector<16x64xf32>
      %116 = arith.addf %73, %115 : vector<16x64xf32>
      %117 = tpu.transpose %116, [1, 0] : vector<16x64xf32> -> vector<64x16xf32>
      %c0_55 = arith.constant 0 : index
      %c0_56 = arith.constant 0 : index
      %c0_57 = arith.constant 0 : index
      %118 = vector.load %arg18[%c0_55, %c0_56, %c0_57] : memref<1x64x16xf32, #tpu.memory_space<vmem>>, vector<1x64x16xf32>
      %119 = vector.shape_cast %118 : vector<1x64x16xf32> to vector<64x16xf32>
      %120 = vector.shape_cast %117 : vector<64x16xf32> to vector<1x64x16xf32>
      tpu.vector_store %arg18[%c0_55, %c0_56, %c0_57], %120 {strides = array<i32>} : memref<1x64x16xf32, #tpu.memory_space<vmem>>, vector<1x64x16xf32>,
    } else {
    }
    return
  }
  func.func @transform_0(%arg0: i32, %arg1: i32, %arg2: i32) -> (i32, i32, i32) {
    %c0_i32 = arith.constant 0 : i32
    %c0_i32_0 = arith.constant 0 : i32
    return %arg0, %arg2, %c0_i32 : i32, i32, i32
  }
  func.func @transform_1(%arg0: i32, %arg1: i32, %arg2: i32) -> (i32, i32) {
    %c0_i32 = arith.constant 0 : i32
    %c0_i32_0 = arith.constant 0 : i32
    %c0_i32_1 = arith.constant 0 : i32
    return %c0_i32, %c0_i32_0 : i32, i32
  }
  func.func @transform_2(%arg0: i32, %arg1: i32, %arg2: i32) -> (i32, i32) {
    %c0_i32 = arith.constant 0 : i32
    %c0_i32_0 = arith.constant 0 : i32
    %c0_i32_1 = arith.constant 0 : i32
    return %c0_i32, %c0_i32_0 : i32, i32
  }
  func.func @transform_3(%arg0: i32, %arg1: i32, %arg2: i32) -> (i32, i32) {
    %c0_i32 = arith.constant 0 : i32
    %c0_i32_0 = arith.constant 0 : i32
    %c0_i32_1 = arith.constant 0 : i32
    return %c0_i32, %c0_i32_0 : i32, i32
  }
  func.func @transform_4(%arg0: i32, %arg1: i32, %arg2: i32) -> (i32, i32) {
    %c0_i32 = arith.constant 0 : i32
    %c0_i32_0 = arith.constant 0 : i32
    %c0_i32_1 = arith.constant 0 : i32
    return %c0_i32, %c0_i32_0 : i32, i32
  }
  func.func @transform_5(%arg0: i32, %arg1: i32, %arg2: i32) -> (i32, i32) {
    %c0_i32 = arith.constant 0 : i32
    %c0_i32_0 = arith.constant 0 : i32
    %c0_i32_1 = arith.constant 0 : i32
    return %c0_i32, %c0_i32_0 : i32, i32
  }
  func.func @transform_6(%arg0: i32, %arg1: i32, %arg2: i32) -> (i32, i32) {
    %c0_i32 = arith.constant 0 : i32
    %c0_i32_0 = arith.constant 0 : i32
    %c0_i32_1 = arith.constant 0 : i32
    return %c0_i32, %c0_i32_0 : i32, i32
  }
  func.func @transform_7(%arg0: i32, %arg1: i32, %arg2: i32) -> (i32, i32) {
    %c0_i32 = arith.constant 0 : i32
    %c0_i32_0 = arith.constant 0 : i32
    %c0_i32_1 = arith.constant 0 : i32
    return %c0_i32, %c0_i32_0 : i32, i32
  }
  func.func @transform_8(%arg0: i32, %arg1: i32, %arg2: i32) -> (i32, i32) {
    %c0_i32 = arith.constant 0 : i32
    %c0_i32_0 = arith.constant 0 : i32
    %c0_i32_1 = arith.constant 0 : i32
    return %c0_i32, %c0_i32_0 : i32, i32
  }
  func.func @transform_9(%arg0: i32, %arg1: i32, %arg2: i32) -> (i32, i32) {
    %c0_i32 = arith.constant 0 : i32
    %c0_i32_0 = arith.constant 0 : i32
    %c0_i32_1 = arith.constant 0 : i32
    return %c0_i32, %c0_i32_0 : i32, i32
  }
  func.func @transform_10(%arg0: i32, %arg1: i32, %arg2: i32) -> (i32, i32) {
    %c0_i32 = arith.constant 0 : i32
    %c0_i32_0 = arith.constant 0 : i32
    %c0_i32_1 = arith.constant 0 : i32
    return %c0_i32, %c0_i32_0 : i32, i32
  }
  func.func @transform_11(%arg0: i32, %arg1: i32, %arg2: i32) -> (i32, i32) {
    %c0_i32 = arith.constant 0 : i32
    %c0_i32_0 = arith.constant 0 : i32
    %c0_i32_1 = arith.constant 0 : i32
    return %c0_i32, %c0_i32_0 : i32, i32
  }
  func.func @transform_12(%arg0: i32, %arg1: i32, %arg2: i32) -> (i32, i32) {
    %c0_i32 = arith.constant 0 : i32
    %c0_i32_0 = arith.constant 0 : i32
    %c0_i32_1 = arith.constant 0 : i32
    return %c0_i32, %c0_i32_0 : i32, i32
  }
  func.func @transform_13(%arg0: i32, %arg1: i32, %arg2: i32) -> (i32, i32) {
    %c0_i32 = arith.constant 0 : i32
    %c0_i32_0 = arith.constant 0 : i32
    %c0_i32_1 = arith.constant 0 : i32
    return %c0_i32, %c0_i32_0 : i32, i32
  }
  func.func @transform_14(%arg0: i32, %arg1: i32, %arg2: i32) -> (i32, i32) {
    %c0_i32 = arith.constant 0 : i32
    %c0_i32_0 = arith.constant 0 : i32
    %c0_i32_1 = arith.constant 0 : i32
    return %c0_i32, %c0_i32_0 : i32, i32
  }
  func.func @transform_15(%arg0: i32, %arg1: i32, %arg2: i32) -> (i32, i32, i32) {
    %0 = arith.muli %arg1, %arg2 : i32
    %c0_i32 = arith.constant 0 : i32
    %c0_i32_0 = arith.constant 0 : i32
    return %arg0, %c0_i32, %0 : i32, i32, i32
  }
}

module attributes {stable_mosaic.version = 11 : i64} {
  func.func @linear_kernel(%arg0: i32, %arg1: memref<1x4x576xf32, #tpu.memory_space<vmem>>, %arg2: memref<576x128xf32, #tpu.memory_space<vmem>>, %arg3: memref<1x128xf32, #tpu.memory_space<vmem>>, %arg4: memref<1x4x128xf32, #tpu.memory_space<vmem>>) attributes {dimension_semantics = [#tpu.dimension_semantics<parallel>], iteration_bounds = array<i64: 2>, scalar_prefetch = 0 : i64, scratch_operands = 0 : i64, tpu.core_type = #tpu.core_type<tc>, window_params = [{transform_indices = @transform_0, window_bounds = array<i64: 1, 4, 576>}, {pipeline_mode = #tpu.pipeline_mode<synchronous>, transform_indices = @transform_1, window_bounds = array<i64: 576, 128>}, {pipeline_mode = #tpu.pipeline_mode<synchronous>, transform_indices = @transform_2, window_bounds = array<i64: 1, 128>}, {transform_indices = @transform_3, window_bounds = array<i64: 1, 4, 128>}]} {
    %c0 = arith.constant 0 : index
    %c0_0 = arith.constant 0 : index
    %c0_1 = arith.constant 0 : index
    %0 = vector.load %arg1[%c0, %c0_0, %c0_1] : memref<1x4x576xf32, #tpu.memory_space<vmem>>, vector<1x4x576xf32>
    %1 = vector.shape_cast %0 : vector<1x4x576xf32> to vector<4x576xf32>
    %c0_2 = arith.constant 0 : index
    %c0_3 = arith.constant 0 : index
    %2 = vector.load %arg2[%c0_2, %c0_3] : memref<576x128xf32, #tpu.memory_space<vmem>>, vector<576x128xf32>
    %cst = arith.constant dense<0.000000e+00> : vector<4x128xf32>
    %3 = tpu.matmul %1, %2, %cst {dimension_numbers = #tpu.dot_dimension_numbers<[1], [0], [0], [1], [0, 0, 1, 1], [], []>} : vector<4x576xf32>, vector<576x128xf32>, vector<4x128xf32> -> vector<4x128xf32>
    %c0_4 = arith.constant 0 : index
    %c0_5 = arith.constant 0 : index
    %4 = vector.load %arg3[%c0_4, %c0_5] : memref<1x128xf32, #tpu.memory_space<vmem>>, vector<1x128xf32>
    %5 = vector.broadcast %4 : vector<1x128xf32> to vector<4x128xf32>
    %6 = arith.addf %3, %5 : vector<4x128xf32>
    %c0_6 = arith.constant 0 : index
    %c0_7 = arith.constant 0 : index
    %c0_8 = arith.constant 0 : index
    %7 = vector.load %arg4[%c0_6, %c0_7, %c0_8] : memref<1x4x128xf32, #tpu.memory_space<vmem>>, vector<1x4x128xf32>
    %8 = vector.shape_cast %7 : vector<1x4x128xf32> to vector<4x128xf32>
    %9 = vector.shape_cast %6 : vector<4x128xf32> to vector<1x4x128xf32>
    tpu.vector_store %arg4[%c0_6, %c0_7, %c0_8], %9 {strides = array<i32>} : memref<1x4x128xf32, #tpu.memory_space<vmem>>, vector<1x4x128xf32>,
    return
  }
  func.func @transform_0(%arg0: i32) -> (i32, i32, i32) {
    %c0_i32 = arith.constant 0 : i32
    %c0_i32_0 = arith.constant 0 : i32
    %c0_i32_1 = arith.constant 0 : i32
    return %arg0, %c0_i32, %c0_i32_0 : i32, i32, i32
  }
  func.func @transform_1(%arg0: i32) -> (i32, i32) {
    %c0_i32 = arith.constant 0 : i32
    %c0_i32_0 = arith.constant 0 : i32
    %c0_i32_1 = arith.constant 0 : i32
    return %c0_i32, %c0_i32_0 : i32, i32
  }
  func.func @transform_2(%arg0: i32) -> (i32, i32) {
    %c0_i32 = arith.constant 0 : i32
    %c0_i32_0 = arith.constant 0 : i32
    %c0_i32_1 = arith.constant 0 : i32
    return %c0_i32, %c0_i32_0 : i32, i32
  }
  func.func @transform_3(%arg0: i32) -> (i32, i32, i32) {
    %c0_i32 = arith.constant 0 : i32
    %c0_i32_0 = arith.constant 0 : i32
    %c0_i32_1 = arith.constant 0 : i32
    return %arg0, %c0_i32, %c0_i32_0 : i32, i32, i32
  }
}

</mosaic_0001>

<llo_original>
// kernel: t2t_forward.3
$region0: #{t2t_forward.3}
  #allocation0 [shape = 'u32[]', space=smem, size = 0x4, offset = 0x4, fixed_abs, tag = 'smem constant byte address 0x4 - core index']
  #allocation1 [shape = 'u32[144,128]{1,0:T(1,128)}', space=vmem, size = 0x12000, scoped, tag = 'internal scratch']
  #allocation2 [shape = 'f32[1,32]{1,0:T(1,128)}', space=vmem, size = 0x200, scoped, tag = 'scratch operand']
  #allocation3 [shape = 'f32[32,64]{1,0:T(8,128)}', space=vmem, size = 0x4000, scoped, tag = 'scratch operand']
  %s0 = inlined_call_operand.vmem [shape: f32[2,64,147], index: 0, kind: input, shape index: {}]
  %s1 = inlined_call_operand.vmem [shape: f32[1,147], index: 1, kind: input, shape index: {}]
  %s2 = inlined_call_operand.vmem [shape: f32[1,147], index: 2, kind: input, shape index: {}]
  %s3 = inlined_call_operand.vmem [shape: f32[147,160], index: 3, kind: input, shape index: {}]
  %s4 = inlined_call_operand.vmem [shape: f32[1,160], index: 4, kind: input, shape index: {}]
  %s5 = inlined_call_operand.vmem [shape: f32[147,160], index: 5, kind: input, shape index: {}]
  %s6 = inlined_call_operand.vmem [shape: f32[1,160], index: 6, kind: input, shape index: {}]
  %s7 = inlined_call_operand.vmem [shape: f32[64,64], index: 7, kind: input, shape index: {}]
  %s8 = inlined_call_operand.vmem [shape: f32[1,64], index: 8, kind: input, shape index: {}]
  %s9 = inlined_call_operand.vmem [shape: f32[1,64], index: 9, kind: input, shape index: {}]
  %s10 = inlined_call_operand.vmem [shape: f32[1,64], index: 10, kind: input, shape index: {}]
  %s11 = inlined_call_operand.vmem [shape: f32[64,64], index: 11, kind: input, shape index: {}]
  %s12 = inlined_call_operand.vmem [shape: f32[1,64], index: 12, kind: input, shape index: {}]
  %s13 = inlined_call_operand.vmem [shape: f32[64,64], index: 13, kind: input, shape index: {}]
  %s14 = inlined_call_operand.vmem [shape: f32[1,64], index: 14, kind: input, shape index: {}]
  %s15 = inlined_call_operand.vmem [shape: f32[2,64,64], index: 15, kind: output, shape index: {}]
  %s16 = sld [smem:[#allocation0]]
  $region105: #{t2t_forward.3} parent=0
    _
  %s18 = ssub.s32 1, %s16
  %s19 = scalar_select 0, %s18, %s16
  loop: start=0, step=1, limit=6
  $region2: #{t2t_forward.3} parent=0 // loop_pre_header
    _
  $region3: #{t2t_forward.3} parent=0 // loop_header
    %s21 = sphi 0, %s25
    %p22 = scmp.ge.s32.totalorder %s21, 6
    %s28 = sphi 0, %s47
    %s29 = sphi 0, %s43
    %s30 = sphi 0, %s39
    %s31 = sphi 0, %s28
    %s32 = sphi 0, %s29
    %s33 = sphi 0, %s30
    %s34 = sphi 0, %s31
    %s35 = sphi 0, %s32
    %s36 = sphi 0, %s33
    %s52 = sphi 0, %s54
    %s55 = sphi 0, %s52
    %s56 = sphi 0, %s55
    %s72 = sphi 0, %s56
    %s76 = sphi 0, %s76
    %s78 = sphi 0, %s76
    %s79 = sphi 0, %s78
    %s93 = sphi 0, %s79
    %s97 = sphi 0, %s97
    %s99 = sphi 0, %s97
    %s100 = sphi 0, %s99
    %s114 = sphi 0, %s100
    %s118 = sphi 0, %s118
    %s120 = sphi 0, %s118
    %s121 = sphi 0, %s120
    %s135 = sphi 0, %s121
    %s139 = sphi 0, %s139
    %s141 = sphi 0, %s139
    %s142 = sphi 0, %s141
    %s156 = sphi 0, %s142
    %s160 = sphi 0, %s160
    %s162 = sphi 0, %s160
    %s163 = sphi 0, %s162
    %s177 = sphi 0, %s163
    %s181 = sphi 0, %s181
    %s183 = sphi 0, %s181
    %s184 = sphi 0, %s183
    %s198 = sphi 0, %s184
    %s202 = sphi 0, %s202
    %s204 = sphi 0, %s202
    %s205 = sphi 0, %s204
    %s219 = sphi 0, %s205
    %s223 = sphi 0, %s223
    %s225 = sphi 0, %s223
    %s226 = sphi 0, %s225
    %s240 = sphi 0, %s226
    %s244 = sphi 0, %s244
    %s246 = sphi 0, %s244
    %s247 = sphi 0, %s246
    %s261 = sphi 0, %s247
    %s265 = sphi 0, %s265
    %s267 = sphi 0, %s265
    %s268 = sphi 0, %s267
    %s282 = sphi 0, %s268
    %s286 = sphi 0, %s286
    %s288 = sphi 0, %s286
    %s289 = sphi 0, %s288
    %s303 = sphi 0, %s289
    %s307 = sphi 0, %s307
    %s309 = sphi 0, %s307
    %s310 = sphi 0, %s309
    %s324 = sphi 0, %s310
    %s328 = sphi 0, %s328
    %s330 = sphi 0, %s328
    %s331 = sphi 0, %s330
    %s345 = sphi 0, %s331
    %s349 = sphi 0, %s349
    %s351 = sphi 0, %s349
    %s352 = sphi 0, %s351
    %s366 = sphi 0, %s352
    %s376 = sphi 0, %s378
    %s379 = sphi 0, %s376
    %s380 = sphi 0, %s379
    %s396 = sphi 0, %s380
  $region4: #{t2t_forward.3} parent=0 // loop_header_branch
    %24 = sbr.rel (%p22) target = $region8
  $region5: #{t2t_forward.3} parent=0 // loop_body
    %s26 = ssub.s32 %s21, 1
    %s27 = ssub.s32 %s21, 2
    %s37 = sadd.s32 1, %s30
    %p38 = scmp.ge.s32.totalorder %s37, 1
    %s39 = scalar_select %p38, 0, %s37
    %s40 = sadd.s32 1, %s29
    %s41 = scalar_select %p38, %s40, %s29
    %p42 = scmp.ge.s32.totalorder %s41, 2
    %s43 = scalar_select %p42, 0, %s41
    %s44 = sadd.s32 1, %s28
    %s45 = scalar_select %p42, %s44, %s28
    %p46 = scmp.ge.s32.totalorder %s45, 2
    %s47 = scalar_select %p46, 0, %s45
    %s48 = ssub.s32 %s28, %s47
    %s49 = ssub.s32 %s30, %s39
    %s50 = sor.u32 %s48, %s49
    %p51 = scmp.eq.s32.totalorder %s50, 0
    %s53 = sadd.s32 %s52, 1
    %s54 = scalar_select %p51, %s52, %s53
    %p57 = pneg %p51
    %p58 = scmp.eq.s32.totalorder %s21, 3
    %p59 = por %p57, %p58
    %p60 = scmp.ne.s32.totalorder %s52, %s55
    %p61 = scmp.eq.s32.totalorder %s21, 0
    %p62 = por %p60, %p61
    %p63 = scmp.ne.s32.totalorder %s52, %s55
    %p64 = scmp.eq.s32.totalorder %s26, 3
    %p65 = por %p63, %p64
    %p66 = scmp.ne.s32.totalorder %s55, %s56
    %p67 = scmp.eq.s32.totalorder %s26, 0
    %p68 = por %p66, %p67
    %p69 = scmp.ne.s32.totalorder %s55, %s56
    %p70 = scmp.eq.s32.totalorder %s27, 3
    %p71 = por %p69, %p70
    %p73 = scmp.ne.s32.totalorder %s56, %s72
    %p74 = scmp.eq.s32.totalorder %s27, 0
    %p75 = por %p73, %p74
    %s77 = sadd.s32 %s76, 1
    %p80 = scmp.eq.s32.totalorder %s21, 3
    %p81 = scmp.ne.s32.totalorder %s76, %s78
    %p82 = scmp.eq.s32.totalorder %s21, 0
    %p83 = por %p81, %p82
    %p84 = scmp.ne.s32.totalorder %s76, %s78
    %p85 = scmp.eq.s32.totalorder %s26, 3
    %p86 = por %p84, %p85
    %p87 = scmp.ne.s32.totalorder %s78, %s79
    %p88 = scmp.eq.s32.totalorder %s26, 0
    %p89 = por %p87, %p88
    %p90 = scmp.ne.s32.totalorder %s78, %s79
    %p91 = scmp.eq.s32.totalorder %s27, 3
    %p92 = por %p90, %p91
    %p94 = scmp.ne.s32.totalorder %s79, %s93
    %p95 = scmp.eq.s32.totalorder %s27, 0
    %p96 = por %p94, %p95
    %s98 = sadd.s32 %s97, 1
    %p101 = scmp.eq.s32.totalorder %s21, 3
    %p102 = scmp.ne.s32.totalorder %s97, %s99
    %p103 = scmp.eq.s32.totalorder %s21, 0
    %p104 = por %p102, %p103
    %p105 = scmp.ne.s32.totalorder %s97, %s99
    %p106 = scmp.eq.s32.totalorder %s26, 3
    %p107 = por %p105, %p106
    %p108 = scmp.ne.s32.totalorder %s99, %s100
    %p109 = scmp.eq.s32.totalorder %s26, 0
    %p110 = por %p108, %p109
    %p111 = scmp.ne.s32.totalorder %s99, %s100
    %p112 = scmp.eq.s32.totalorder %s27, 3
    %p113 = por %p111, %p112
    %p115 = scmp.ne.s32.totalorder %s100, %s114
    %p116 = scmp.eq.s32.totalorder %s27, 0
    %p117 = por %p115, %p116
    %s119 = sadd.s32 %s118, 1
    %p122 = scmp.eq.s32.totalorder %s21, 3
    %p123 = scmp.ne.s32.totalorder %s118, %s120
    %p124 = scmp.eq.s32.totalorder %s21, 0
    %p125 = por %p123, %p124
    %p126 = scmp.ne.s32.totalorder %s118, %s120
    %p127 = scmp.eq.s32.totalorder %s26, 3
    %p128 = por %p126, %p127
    %p129 = scmp.ne.s32.totalorder %s120, %s121
    %p130 = scmp.eq.s32.totalorder %s26, 0
    %p131 = por %p129, %p130
    %p132 = scmp.ne.s32.totalorder %s120, %s121
    %p133 = scmp.eq.s32.totalorder %s27, 3
    %p134 = por %p132, %p133
    %p136 = scmp.ne.s32.totalorder %s121, %s135
    %p137 = scmp.eq.s32.totalorder %s27, 0
    %p138 = por %p136, %p137
    %s140 = sadd.s32 %s139, 1
    %p143 = scmp.eq.s32.totalorder %s21, 3
    %p144 = scmp.ne.s32.totalorder %s139, %s141
    %p145 = scmp.eq.s32.totalorder %s21, 0
    %p146 = por %p144, %p145
    %p147 = scmp.ne.s32.totalorder %s139, %s141
    %p148 = scmp.eq.s32.totalorder %s26, 3
    %p149 = por %p147, %p148
    %p150 = scmp.ne.s32.totalorder %s141, %s142
    %p151 = scmp.eq.s32.totalorder %s26, 0
    %p152 = por %p150, %p151
    %p153 = scmp.ne.s32.totalorder %s141, %s142
    %p154 = scmp.eq.s32.totalorder %s27, 3
    %p155 = por %p153, %p154
    %p157 = scmp.ne.s32.totalorder %s142, %s156
    %p158 = scmp.eq.s32.totalorder %s27, 0
    %p159 = por %p157, %p158
    %s161 = sadd.s32 %s160, 1
    %p164 = scmp.eq.s32.totalorder %s21, 3
    %p165 = scmp.ne.s32.totalorder %s160, %s162
    %p166 = scmp.eq.s32.totalorder %s21, 0
    %p167 = por %p165, %p166
    %p168 = scmp.ne.s32.totalorder %s160, %s162
    %p169 = scmp.eq.s32.totalorder %s26, 3
    %p170 = por %p168, %p169
    %p171 = scmp.ne.s32.totalorder %s162, %s163
    %p172 = scmp.eq.s32.totalorder %s26, 0
    %p173 = por %p171, %p172
    %p174 = scmp.ne.s32.totalorder %s162, %s163
    %p175 = scmp.eq.s32.totalorder %s27, 3
    %p176 = por %p174, %p175
    %p178 = scmp.ne.s32.totalorder %s163, %s177
    %p179 = scmp.eq.s32.totalorder %s27, 0
    %p180 = por %p178, %p179
    %s182 = sadd.s32 %s181, 1
    %p185 = scmp.eq.s32.totalorder %s21, 3
    %p186 = scmp.ne.s32.totalorder %s181, %s183
    %p187 = scmp.eq.s32.totalorder %s21, 0
    %p188 = por %p186, %p187
    %p189 = scmp.ne.s32.totalorder %s181, %s183
    %p190 = scmp.eq.s32.totalorder %s26, 3
    %p191 = por %p189, %p190
    %p192 = scmp.ne.s32.totalorder %s183, %s184
    %p193 = scmp.eq.s32.totalorder %s26, 0
    %p194 = por %p192, %p193
    %p195 = scmp.ne.s32.totalorder %s183, %s184
    %p196 = scmp.eq.s32.totalorder %s27, 3
    %p197 = por %p195, %p196
    %p199 = scmp.ne.s32.totalorder %s184, %s198
    %p200 = scmp.eq.s32.totalorder %s27, 0
    %p201 = por %p199, %p200
    %s203 = sadd.s32 %s202, 1
    %p206 = scmp.eq.s32.totalorder %s21, 3
    %p207 = scmp.ne.s32.totalorder %s202, %s204
    %p208 = scmp.eq.s32.totalorder %s21, 0
    %p209 = por %p207, %p208
    %p210 = scmp.ne.s32.totalorder %s202, %s204
    %p211 = scmp.eq.s32.totalorder %s26, 3
    %p212 = por %p210, %p211
    %p213 = scmp.ne.s32.totalorder %s204, %s205
    %p214 = scmp.eq.s32.totalorder %s26, 0
    %p215 = por %p213, %p214
    %p216 = scmp.ne.s32.totalorder %s204, %s205
    %p217 = scmp.eq.s32.totalorder %s27, 3
    %p218 = por %p216, %p217
    %p220 = scmp.ne.s32.totalorder %s205, %s219
    %p221 = scmp.eq.s32.totalorder %s27, 0
    %p222 = por %p220, %p221
    %s224 = sadd.s32 %s223, 1
    %p227 = scmp.eq.s32.totalorder %s21, 3
    %p228 = scmp.ne.s32.totalorder %s223, %s225
    %p229 = scmp.eq.s32.totalorder %s21, 0
    %p230 = por %p228, %p229
    %p231 = scmp.ne.s32.totalorder %s223, %s225
    %p232 = scmp.eq.s32.totalorder %s26, 3
    %p233 = por %p231, %p232
    %p234 = scmp.ne.s32.totalorder %s225, %s226
    %p235 = scmp.eq.s32.totalorder %s26, 0
    %p236 = por %p234, %p235
    %p237 = scmp.ne.s32.totalorder %s225, %s226
    %p238 = scmp.eq.s32.totalorder %s27, 3
    %p239 = por %p237, %p238
    %p241 = scmp.ne.s32.totalorder %s226, %s240
    %p242 = scmp.eq.s32.totalorder %s27, 0
    %p243 = por %p241, %p242
    %s245 = sadd.s32 %s244, 1
    %p248 = scmp.eq.s32.totalorder %s21, 3
    %p249 = scmp.ne.s32.totalorder %s244, %s246
    %p250 = scmp.eq.s32.totalorder %s21, 0
    %p251 = por %p249, %p250
    %p252 = scmp.ne.s32.totalorder %s244, %s246
    %p253 = scmp.eq.s32.totalorder %s26, 3
    %p254 = por %p252, %p253
    %p255 = scmp.ne.s32.totalorder %s246, %s247
    %p256 = scmp.eq.s32.totalorder %s26, 0
    %p257 = por %p255, %p256
    %p258 = scmp.ne.s32.totalorder %s246, %s247
    %p259 = scmp.eq.s32.totalorder %s27, 3
    %p260 = por %p258, %p259
    %p262 = scmp.ne.s32.totalorder %s247, %s261
    %p263 = scmp.eq.s32.totalorder %s27, 0
    %p264 = por %p262, %p263
    %s266 = sadd.s32 %s265, 1
    %p269 = scmp.eq.s32.totalorder %s21, 3
    %p270 = scmp.ne.s32.totalorder %s265, %s267
    %p271 = scmp.eq.s32.totalorder %s21, 0
    %p272 = por %p270, %p271
    %p273 = scmp.ne.s32.totalorder %s265, %s267
    %p274 = scmp.eq.s32.totalorder %s26, 3
    %p275 = por %p273, %p274
    %p276 = scmp.ne.s32.totalorder %s267, %s268
    %p277 = scmp.eq.s32.totalorder %s26, 0
    %p278 = por %p276, %p277
    %p279 = scmp.ne.s32.totalorder %s267, %s268
    %p280 = scmp.eq.s32.totalorder %s27, 3
    %p281 = por %p279, %p280
    %p283 = scmp.ne.s32.totalorder %s268, %s282
    %p284 = scmp.eq.s32.totalorder %s27, 0
    %p285 = por %p283, %p284
    %s287 = sadd.s32 %s286, 1
    %p290 = scmp.eq.s32.totalorder %s21, 3
    %p291 = scmp.ne.s32.totalorder %s286, %s288
    %p292 = scmp.eq.s32.totalorder %s21, 0
    %p293 = por %p291, %p292
    %p294 = scmp.ne.s32.totalorder %s286, %s288
    %p295 = scmp.eq.s32.totalorder %s26, 3
    %p296 = por %p294, %p295
    %p297 = scmp.ne.s32.totalorder %s288, %s289
    %p298 = scmp.eq.s32.totalorder %s26, 0
    %p299 = por %p297, %p298
    %p300 = scmp.ne.s32.totalorder %s288, %s289
    %p301 = scmp.eq.s32.totalorder %s27, 3
    %p302 = por %p300, %p301
    %p304 = scmp.ne.s32.totalorder %s289, %s303
    %p305 = scmp.eq.s32.totalorder %s27, 0
    %p306 = por %p304, %p305
    %s308 = sadd.s32 %s307, 1
    %p311 = scmp.eq.s32.totalorder %s21, 3
    %p312 = scmp.ne.s32.totalorder %s307, %s309
    %p313 = scmp.eq.s32.totalorder %s21, 0
    %p314 = por %p312, %p313
    %p315 = scmp.ne.s32.totalorder %s307, %s309
    %p316 = scmp.eq.s32.totalorder %s26, 3
    %p317 = por %p315, %p316
    %p318 = scmp.ne.s32.totalorder %s309, %s310
    %p319 = scmp.eq.s32.totalorder %s26, 0
    %p320 = por %p318, %p319
    %p321 = scmp.ne.s32.totalorder %s309, %s310
    %p322 = scmp.eq.s32.totalorder %s27, 3
    %p323 = por %p321, %p322
    %p325 = scmp.ne.s32.totalorder %s310, %s324
    %p326 = scmp.eq.s32.totalorder %s27, 0
    %p327 = por %p325, %p326
    %s329 = sadd.s32 %s328, 1
    %p332 = scmp.eq.s32.totalorder %s21, 3
    %p333 = scmp.ne.s32.totalorder %s328, %s330
    %p334 = scmp.eq.s32.totalorder %s21, 0
    %p335 = por %p333, %p334
    %p336 = scmp.ne.s32.totalorder %s328, %s330
    %p337 = scmp.eq.s32.totalorder %s26, 3
    %p338 = por %p336, %p337
    %p339 = scmp.ne.s32.totalorder %s330, %s331
    %p340 = scmp.eq.s32.totalorder %s26, 0
    %p341 = por %p339, %p340
    %p342 = scmp.ne.s32.totalorder %s330, %s331
    %p343 = scmp.eq.s32.totalorder %s27, 3
    %p344 = por %p342, %p343
    %p346 = scmp.ne.s32.totalorder %s331, %s345
    %p347 = scmp.eq.s32.totalorder %s27, 0
    %p348 = por %p346, %p347
    %s350 = sadd.s32 %s349, 1
    %p353 = scmp.eq.s32.totalorder %s21, 3
    %p354 = scmp.ne.s32.totalorder %s349, %s351
    %p355 = scmp.eq.s32.totalorder %s21, 0
    %p356 = por %p354, %p355
    %p357 = scmp.ne.s32.totalorder %s349, %s351
    %p358 = scmp.eq.s32.totalorder %s26, 3
    %p359 = por %p357, %p358
    %p360 = scmp.ne.s32.totalorder %s351, %s352
    %p361 = scmp.eq.s32.totalorder %s26, 0
    %p362 = por %p360, %p361
    %p363 = scmp.ne.s32.totalorder %s351, %s352
    %p364 = scmp.eq.s32.totalorder %s27, 3
    %p365 = por %p363, %p364
    %p367 = scmp.ne.s32.totalorder %s352, %s366
    %p368 = scmp.eq.s32.totalorder %s27, 0
    %p369 = por %p367, %p368
    %s370 = smul.u32 %s29, %s30
    %s371 = smul.u32 %s43, %s39
    %s372 = ssub.s32 %s28, %s47
    %s373 = ssub.s32 %s370, %s371
    %s374 = sor.u32 %s372, %s373
    %p375 = scmp.eq.s32.totalorder %s374, 0
    %s377 = sadd.s32 %s376, 1
    %s378 = scalar_select %p375, %s376, %s377
    %p381 = pneg %p375
    %p382 = scmp.eq.s32.totalorder %s21, 3
    %p383 = por %p381, %p382
    %p384 = scmp.ne.s32.totalorder %s376, %s379
    %p385 = scmp.eq.s32.totalorder %s21, 0
    %p386 = por %p384, %p385
    %p387 = scmp.ne.s32.totalorder %s376, %s379
    %p388 = scmp.eq.s32.totalorder %s26, 3
    %p389 = por %p387, %p388
    %p390 = scmp.ne.s32.totalorder %s379, %s380
    %p391 = scmp.eq.s32.totalorder %s26, 0
    %p392 = por %p390, %p391
    %p393 = scmp.ne.s32.totalorder %s379, %s380
    %p394 = scmp.eq.s32.totalorder %s27, 3
    %p395 = por %p393, %p394
    %p397 = scmp.ne.s32.totalorder %s380, %s396
    %p398 = scmp.eq.s32.totalorder %s27, 0
    %p399 = por %p397, %p398
    %p400 = scmp.le.s32.totalorder 1, %s21
    %p401 = scmp.lt.s32.totalorder %s21, 5
    %p402 = pnand %p400, %p401
    %p403 = pneg %p402
    // Predicated region
    $region9: #{t2t_forward.3} parent=5 // pred_check
      _
    $region10: #{t2t_forward.3} parent=5 // pred_check_branch
      %405 = sbr.rel (%p402) target = $region12
    $region11: #{t2t_forward.3} parent=5 // pred_region
      %s406 = ssub.s32 %s21, 1
      // Predicated region
      $region13: #{t2t_forward.3} parent=11 // pred_check
        %p407 = pneg %p89
      $region14: #{t2t_forward.3} parent=11 // pred_check_branch
        %409 = sbr.rel (%p407) target = $region16
      $region15: #{t2t_forward.3} parent=11 // pred_region
        _
      $region16: #{t2t_forward.3} parent=11 // pred_fallthru
        _
      // Predicated region
      $region17: #{t2t_forward.3} parent=11 // pred_check
        %p410 = pneg %p110
      $region18: #{t2t_forward.3} parent=11 // pred_check_branch
        %412 = sbr.rel (%p410) target = $region20
      $region19: #{t2t_forward.3} parent=11 // pred_region
        _
      $region20: #{t2t_forward.3} parent=11 // pred_fallthru
        _
      // Predicated region
      $region21: #{t2t_forward.3} parent=11 // pred_check
        %p413 = pneg %p131
      $region22: #{t2t_forward.3} parent=11 // pred_check_branch
        %415 = sbr.rel (%p413) target = $region24
      $region23: #{t2t_forward.3} parent=11 // pred_region
        _
      $region24: #{t2t_forward.3} parent=11 // pred_fallthru
        _
      // Predicated region
      $region25: #{t2t_forward.3} parent=11 // pred_check
        %p416 = pneg %p152
      $region26: #{t2t_forward.3} parent=11 // pred_check_branch
        %418 = sbr.rel (%p416) target = $region28
      $region27: #{t2t_forward.3} parent=11 // pred_region
        _
      $region28: #{t2t_forward.3} parent=11 // pred_fallthru
        _
      // Predicated region
      $region29: #{t2t_forward.3} parent=11 // pred_check
        %p419 = pneg %p173
      $region30: #{t2t_forward.3} parent=11 // pred_check_branch
        %421 = sbr.rel (%p419) target = $region32
      $region31: #{t2t_forward.3} parent=11 // pred_region
        _
      $region32: #{t2t_forward.3} parent=11 // pred_fallthru
        _
      // Predicated region
      $region33: #{t2t_forward.3} parent=11 // pred_check
        %p422 = pneg %p194
      $region34: #{t2t_forward.3} parent=11 // pred_check_branch
        %424 = sbr.rel (%p422) target = $region36
      $region35: #{t2t_forward.3} parent=11 // pred_region
        _
      $region36: #{t2t_forward.3} parent=11 // pred_fallthru
        _
      // Predicated region
      $region37: #{t2t_forward.3} parent=11 // pred_check
        %p425 = pneg %p215
      $region38: #{t2t_forward.3} parent=11 // pred_check_branch
        %427 = sbr.rel (%p425) target = $region40
      $region39: #{t2t_forward.3} parent=11 // pred_region
        _
      $region40: #{t2t_forward.3} parent=11 // pred_fallthru
        _
      // Predicated region
      $region41: #{t2t_forward.3} parent=11 // pred_check
        %p428 = pneg %p236
      $region42: #{t2t_forward.3} parent=11 // pred_check_branch
        %430 = sbr.rel (%p428) target = $region44
      $region43: #{t2t_forward.3} parent=11 // pred_region
        _
      $region44: #{t2t_forward.3} parent=11 // pred_fallthru
        _
      // Predicated region
      $region45: #{t2t_forward.3} parent=11 // pred_check
        %p431 = pneg %p257
      $region46: #{t2t_forward.3} parent=11 // pred_check_branch
        %433 = sbr.rel (%p431) target = $region48
      $region47: #{t2t_forward.3} parent=11 // pred_region
        _
      $region48: #{t2t_forward.3} parent=11 // pred_fallthru
        _
      // Predicated region
      $region49: #{t2t_forward.3} parent=11 // pred_check
        %p434 = pneg %p278
      $region50: #{t2t_forward.3} parent=11 // pred_check_branch
        %436 = sbr.rel (%p434) target = $region52
      $region51: #{t2t_forward.3} parent=11 // pred_region
        _
      $region52: #{t2t_forward.3} parent=11 // pred_fallthru
        _
      // Predicated region
      $region53: #{t2t_forward.3} parent=11 // pred_check
        %p437 = pneg %p299
      $region54: #{t2t_forward.3} parent=11 // pred_check_branch
        %439 = sbr.rel (%p437) target = $region56
      $region55: #{t2t_forward.3} parent=11 // pred_region
        _
      $region56: #{t2t_forward.3} parent=11 // pred_fallthru
        _
      // Predicated region
      $region57: #{t2t_forward.3} parent=11 // pred_check
        %p440 = pneg %p320
      $region58: #{t2t_forward.3} parent=11 // pred_check_branch
        %442 = sbr.rel (%p440) target = $region60
      $region59: #{t2t_forward.3} parent=11 // pred_region
        _
      $region60: #{t2t_forward.3} parent=11 // pred_fallthru
        _
      // Predicated region
      $region61: #{t2t_forward.3} parent=11 // pred_check
        %p443 = pneg %p341
      $region62: #{t2t_forward.3} parent=11 // pred_check_branch
        %445 = sbr.rel (%p443) target = $region64
      $region63: #{t2t_forward.3} parent=11 // pred_region
        _
      $region64: #{t2t_forward.3} parent=11 // pred_fallthru
        _
      // Predicated region
      $region65: #{t2t_forward.3} parent=11 // pred_check
        %p446 = pneg %p362
      $region66: #{t2t_forward.3} parent=11 // pred_check_branch
        %448 = sbr.rel (%p446) target = $region68
      $region67: #{t2t_forward.3} parent=11 // pred_region
        _
      $region68: #{t2t_forward.3} parent=11 // pred_fallthru
        _
    $region12: #{t2t_forward.3} parent=5 // pred_fallthru
      _
    %p449 = scmp.lt.s32.totalorder %s21, 4
    // Predicated region
    $region69: #{t2t_forward.3} parent=5 // pred_check
      %p450 = pneg %p449
    $region70: #{t2t_forward.3} parent=5 // pred_check_branch
      %452 = sbr.rel (%p450) target = $region72
    $region71: #{t2t_forward.3} parent=5 // pred_region
      // Predicated region
      $region73: #{t2t_forward.3} parent=71 // pred_check
        %p453 = pneg %p62
      $region74: #{t2t_forward.3} parent=71 // pred_check_branch
        %455 = sbr.rel (%p453) target = $region76
      $region75: #{t2t_forward.3} parent=71 // pred_region
        %s456 = smul.u32 8, %s30
        %p457 = scmp.lt.s32.totalorder %s28, 1
        %s458 = scalar_select %p457, %s28, 1
        %p459 = scmp.lt.s32.totalorder %s456, 7
        %s460 = scalar_select %p459, %s456, 7
        %s461 = smul.addr %s460, 2
        %s462 = smul.addr %s458, 16
        %s463 = sadd.s32 %s461, %s462
        %s464 = smul.addr %s463, 8
        %s465 = scalar_lea.vmem %s0, %s464
        %s466 = smul.u32 8, %s30
      $region76: #{t2t_forward.3} parent=71 // pred_fallthru
        _
    $region72: #{t2t_forward.3} parent=5 // pred_fallthru
      _
    %p467 = scmp.le.s32.totalorder 1, %s21
    %p468 = scmp.lt.s32.totalorder %s21, 5
    %p469 = pnand %p467, %p468
    %p470 = pneg %p469
    // Predicated region
    $region77: #{t2t_forward.3} parent=5 // pred_check
      _
    $region78: #{t2t_forward.3} parent=5 // pred_check_branch
      %472 = sbr.rel (%p469) target = $region80
    $region79: #{t2t_forward.3} parent=5 // pred_region
      %s473 = ssub.s32 %s21, 1
      %s474 = smul.u32 8, %s33
      %p475 = scmp.lt.s32.totalorder %s31, 1
      %s476 = scalar_select %p475, %s31, 1
      %p477 = scmp.lt.s32.totalorder %s474, 7
      %s478 = scalar_select %p477, %s474, 7
      %s479 = smul.addr %s478, 2
      %s480 = smul.addr %s476, 16
      %s481 = sadd.s32 %s479, %s480
      %s482 = smul.addr %s481, 8
      %s483 = scalar_lea.vmem %s0, %s482
      %p484 = pneg %p68
      %p485 = pneg %p65
      %p486 = pneg %p89
      %p487 = pneg %p86
      %p488 = pneg %p110
      %p489 = pneg %p107
      %p490 = pneg %p131
      %p491 = pneg %p128
      %p492 = pneg %p152
      %p493 = pneg %p149
      %p494 = pneg %p173
      %p495 = pneg %p170
      %p496 = pneg %p194
      %p497 = pneg %p191
      %p498 = pneg %p215
      %p499 = pneg %p212
      %p500 = pneg %p236
      %p501 = pneg %p233
      %p502 = pneg %p257
      %p503 = pneg %p254
      %p504 = pneg %p278
      %p505 = pneg %p275
      %p506 = pneg %p299
      %p507 = pneg %p296
      %p508 = pneg %p320
      %p509 = pneg %p317
      %p510 = pneg %p341
      %p511 = pneg %p338
      %p512 = pneg %p362
      %p513 = pneg %p359
      %p514 = pneg %p392
      %p515 = pneg %p389
      %s516 = smul.u32 %s32, %s33
      %p517 = scmp.lt.s32.totalorder %s31, 1
      %s518 = scalar_select %p517, %s31, 1
      %p519 = scmp.lt.s32.totalorder %s516, 0
      %s520 = scalar_select %p519, %s516, 0
      %s521 = smul.addr %s518, 8
      %s522 = sadd.s32 %s520, %s521
      %s523 = smul.addr %s522, 8
      %s524 = scalar_lea.vmem %s15, %s523
      %s525 = smul.u32 8, %s33
      %p526 = scmp.lt.s32.totalorder %s31, 1
      %s527 = scalar_select %p526, %s31, 1
      %p528 = scmp.lt.s32.totalorder %s525, 7
      %s529 = scalar_select %p528, %s525, 7
      %s530 = smul.addr %s529, 2
      %s531 = smul.addr %s527, 16
      %s532 = sadd.s32 %s530, %s531
      %s533 = smul.addr %s532, 8
      %s534 = scalar_lea.vmem %s0, %s533
      %s535 = smul.u32 8, %s33
      %s536 = smul.u32 %s32, %s33
      %p537 = scmp.lt.s32.totalorder %s31, 1
      %s538 = scalar_select %p537, %s31, 1
      %p539 = scmp.lt.s32.totalorder %s536, 0
      %s540 = scalar_select %p539, %s536, 0
      %s541 = smul.addr %s538, 8
      %s542 = sadd.s32 %s540, %s541
      %s543 = smul.addr %s542, 8
      %s544 = scalar_lea.vmem %s15, %s543
      %s545 = smul.u32 %s32, %s33
      %v546 = vld [vmem:[%s534] sm:$0xff]
      %v547 = vld [vmem:[%s534 + $0x8] sm:$0xff]
      %v548 = vld [vmem:[%s534 + $0x10] sm:$0xff]
      %v549 = vld [vmem:[%s534 + $0x18] sm:$0xff]
      %v550 = vld [vmem:[%s534 + $0x20] sm:$0xff]
      %v551 = vld [vmem:[%s534 + $0x28] sm:$0xff]
      %v552 = vld [vmem:[%s534 + $0x30] sm:$0xff]
      %v553 = vld [vmem:[%s534 + $0x38] sm:$0xff]
      %v554 = vld [vmem:[%s534 + $0x40] sm:$0xff]
      %v555 = vld [vmem:[%s534 + $0x48] sm:$0xff]
      %v556 = vld [vmem:[%s534 + $0x50] sm:$0xff]
      %v557 = vld [vmem:[%s534 + $0x58] sm:$0xff]
      %v558 = vld [vmem:[%s534 + $0x60] sm:$0xff]
      %v559 = vld [vmem:[%s534 + $0x68] sm:$0xff]
      %v560 = vld [vmem:[%s534 + $0x70] sm:$0xff]
      %v561 = vld [vmem:[%s534 + $0x78] sm:$0xff]
      %vm562 = vcmask 154624
      %v563 = vsel %vm562, %v547, 0.0
      %v564 = vadd.f32 %v546, %v563
      %565 = vadd.xlane.f32.xlu0 %v564
      %v566 = vpop.xlane.xlu0 %565
      %v567 = vsel %vm562, %v549, 0.0
      %v568 = vadd.f32 %v548, %v567
      %569 = vadd.xlane.f32.xlu0 %v568
      %v570 = vpop.xlane.xlu0 %569
      %v571 = vsel %vm562, %v551, 0.0
      %v572 = vadd.f32 %v550, %v571
      %573 = vadd.xlane.f32.xlu0 %v572
      %v574 = vpop.xlane.xlu0 %573
      %v575 = vsel %vm562, %v553, 0.0
      %v576 = vadd.f32 %v552, %v575
      %577 = vadd.xlane.f32.xlu0 %v576
      %v578 = vpop.xlane.xlu0 %577
      %v579 = vsel %vm562, %v555, 0.0
      %v580 = vadd.f32 %v554, %v579
      %581 = vadd.xlane.f32.xlu0 %v580
      %v582 = vpop.xlane.xlu0 %581
      %v583 = vsel %vm562, %v557, 0.0
      %v584 = vadd.f32 %v556, %v583
      %585 = vadd.xlane.f32.xlu0 %v584
      %v586 = vpop.xlane.xlu0 %585
      %v587 = vsel %vm562, %v559, 0.0
      %v588 = vadd.f32 %v558, %v587
      %589 = vadd.xlane.f32.xlu0 %v588
      %v590 = vpop.xlane.xlu0 %589
      %v591 = vsel %vm562, %v561, 0.0
      %v592 = vadd.f32 %v560, %v591
      %593 = vadd.xlane.f32.xlu0 %v592
      %v594 = vpop.xlane.xlu0 %593
      %v595 = vrcp.pop 147.0
      %v596 = vmul.f32 %v566, %v595
      %v597 = vmul.f32 %v570, %v595
      %v598 = vmul.f32 %v574, %v595
      %v599 = vmul.f32 %v578, %v595
      %v600 = vmul.f32 %v582, %v595
      %v601 = vmul.f32 %v586, %v595
      %v602 = vmul.f32 %v590, %v595
      %v603 = vmul.f32 %v594, %v595
      %v604 = vsub.f32 %v546, %v596
      %v605 = vsub.f32 %v547, %v596
      %v606 = vsub.f32 %v548, %v597
      %v607 = vsub.f32 %v549, %v597
      %v608 = vsub.f32 %v550, %v598
      %v609 = vsub.f32 %v551, %v598
      %v610 = vsub.f32 %v552, %v599
      %v611 = vsub.f32 %v553, %v599
      %v612 = vsub.f32 %v554, %v600
      %v613 = vsub.f32 %v555, %v600
      %v614 = vsub.f32 %v556, %v601
      %v615 = vsub.f32 %v557, %v601
      %v616 = vsub.f32 %v558, %v602
      %v617 = vsub.f32 %v559, %v602
      %v618 = vsub.f32 %v560, %v603
      %v619 = vsub.f32 %v561, %v603
      %v620 = vmul.f32 %v604, %v604
      %v621 = vmul.f32 %v605, %v605
      %v622 = vmul.f32 %v606, %v606
      %v623 = vmul.f32 %v607, %v607
      %v624 = vmul.f32 %v608, %v608
      %v625 = vmul.f32 %v609, %v609
      %v626 = vmul.f32 %v610, %v610
      %v627 = vmul.f32 %v611, %v611
      %v628 = vmul.f32 %v612, %v612
      %v629 = vmul.f32 %v613, %v613
      %v630 = vmul.f32 %v614, %v614
      %v631 = vmul.f32 %v615, %v615
      %v632 = vmul.f32 %v616, %v616
      %v633 = vmul.f32 %v617, %v617
      %v634 = vmul.f32 %v618, %v618
      %v635 = vmul.f32 %v619, %v619
      %v636 = vsel %vm562, %v621, 0.0
      %v637 = vadd.f32 %v620, %v636
      %638 = vadd.xlane.f32.xlu0 %v637
      %v639 = vpop.xlane.xlu0 %638
      %v640 = vsel %vm562, %v623, 0.0
      %v641 = vadd.f32 %v622, %v640
      %642 = vadd.xlane.f32.xlu0 %v641
      %v643 = vpop.xlane.xlu0 %642
      %v644 = vsel %vm562, %v625, 0.0
      %v645 = vadd.f32 %v624, %v644
      %646 = vadd.xlane.f32.xlu0 %v645
      %v647 = vpop.xlane.xlu0 %646
      %v648 = vsel %vm562, %v627, 0.0
      %v649 = vadd.f32 %v626, %v648
      %650 = vadd.xlane.f32.xlu0 %v649
      %v651 = vpop.xlane.xlu0 %650
      %v652 = vsel %vm562, %v629, 0.0
      %v653 = vadd.f32 %v628, %v652
      %654 = vadd.xlane.f32.xlu0 %v653
      %v655 = vpop.xlane.xlu0 %654
      %v656 = vsel %vm562, %v631, 0.0
      %v657 = vadd.f32 %v630, %v656
      %658 = vadd.xlane.f32.xlu0 %v657
      %v659 = vpop.xlane.xlu0 %658
      %v660 = vsel %vm562, %v633, 0.0
      %v661 = vadd.f32 %v632, %v660
      %662 = vadd.xlane.f32.xlu0 %v661
      %v663 = vpop.xlane.xlu0 %662
      %v664 = vsel %vm562, %v635, 0.0
      %v665 = vadd.f32 %v634, %v664
      %666 = vadd.xlane.f32.xlu0 %v665
      %v667 = vpop.xlane.xlu0 %666
      %v668 = vmul.f32 %v639, %v595
      %v669 = vmul.f32 %v643, %v595
      %v670 = vmul.f32 %v647, %v595
      %v671 = vmul.f32 %v651, %v595
      %v672 = vmul.f32 %v655, %v595
      %v673 = vmul.f32 %v659, %v595
      %v674 = vmul.f32 %v663, %v595
      %v675 = vmul.f32 %v667, %v595
      %v676 = vadd.f32 %v668, 1e-05
      %v677 = vadd.f32 %v669, 1e-05
      %v678 = vadd.f32 %v670, 1e-05
      %v679 = vadd.f32 %v671, 1e-05
      %v680 = vadd.f32 %v672, 1e-05
      %v681 = vadd.f32 %v673, 1e-05
      %v682 = vadd.f32 %v674, 1e-05
      %v683 = vadd.f32 %v675, 1e-05
      %v684 = vrsqrt.pop %v676
      %v685 = vrsqrt.pop %v677
      %v686 = vrsqrt.pop %v678
      %v687 = vrsqrt.pop %v679
      %v688 = vrsqrt.pop %v680
      %v689 = vrsqrt.pop %v681
      %v690 = vrsqrt.pop %v682
      %v691 = vrsqrt.pop %v683
      %v692 = vmul.f32 %v604, %v684
      %v693 = vmul.f32 %v605, %v684
      %v694 = vmul.f32 %v606, %v685
      %v695 = vmul.f32 %v607, %v685
      %v696 = vmul.f32 %v608, %v686
      %v697 = vmul.f32 %v609, %v686
      %v698 = vmul.f32 %v610, %v687
      %v699 = vmul.f32 %v611, %v687
      %v700 = vmul.f32 %v612, %v688
      %v701 = vmul.f32 %v613, %v688
      %v702 = vmul.f32 %v614, %v689
      %v703 = vmul.f32 %v615, %v689
      %v704 = vmul.f32 %v616, %v690
      %v705 = vmul.f32 %v617, %v690
      %v706 = vmul.f32 %v618, %v691
      %v707 = vmul.f32 %v619, %v691
      %v708 = vld [vmem:[%s1] sm:$0x3]
      %v710 = vlaneseq
      %v711 = vshrl.u32 %v710, 7
      %v712 = vsub.s32 0, %v711
      %v713 = vrot.slane %v708, %v712
      %v714 = vlaneseq
      %v715 = vshrl.u32 %v714, 7
      %v716 = vsub.s32 1, %v715
      %v717 = vrot.slane %v708, %v716
      %v720 = vmul.f32 %v692, %v713
      %v721 = vmul.f32 %v693, %v717
      %v722 = vmul.f32 %v694, %v713
      %v723 = vmul.f32 %v695, %v717
      %v724 = vmul.f32 %v696, %v713
      %v725 = vmul.f32 %v697, %v717
      %v726 = vmul.f32 %v698, %v713
      %v727 = vmul.f32 %v699, %v717
      %v728 = vmul.f32 %v700, %v713
      %v729 = vmul.f32 %v701, %v717
      %v730 = vmul.f32 %v702, %v713
      %v731 = vmul.f32 %v703, %v717
      %v732 = vmul.f32 %v704, %v713
      %v733 = vmul.f32 %v705, %v717
      %v734 = vmul.f32 %v706, %v713
      %v735 = vmul.f32 %v707, %v717
      %v736 = vld [vmem:[%s2] sm:$0x3]
      %v738 = vlaneseq
      %v739 = vshrl.u32 %v738, 7
      %v740 = vsub.s32 0, %v739
      %v741 = vrot.slane %v736, %v740
      %v742 = vlaneseq
      %v743 = vshrl.u32 %v742, 7
      %v744 = vsub.s32 1, %v743
      %v745 = vrot.slane %v736, %v744
      %v748 = vadd.f32 %v720, %v741
      %v749 = vadd.f32 %v721, %v745
      %v750 = vadd.f32 %v722, %v741
      %v751 = vadd.f32 %v723, %v745
      %v752 = vadd.f32 %v724, %v741
      %v753 = vadd.f32 %v725, %v745
      %v754 = vadd.f32 %v726, %v741
      %v755 = vadd.f32 %v727, %v745
      %v756 = vadd.f32 %v728, %v741
      %v757 = vadd.f32 %v729, %v745
      %v758 = vadd.f32 %v730, %v741
      %v759 = vadd.f32 %v731, %v745
      %v760 = vadd.f32 %v732, %v741
      %v761 = vadd.f32 %v733, %v745
      %v762 = vadd.f32 %v734, %v741
      %v763 = vadd.f32 %v735, %v745
      %s764 = smul.u32 %s33, 64
      %v765 = vlaneseq
      %v766 = vshrl.u32 %v765, 7
      %v767 = vadd.s32 %v766, 8
      %v768 = vadd.s32 %v766, 16
      %v769 = vadd.s32 %v766, 24
      %v770 = vadd.s32 %v766, 32
      %v771 = vadd.s32 %v766, 40
      %v772 = vadd.s32 %v766, 48
      %v773 = vadd.s32 %v766, 56
      %v774 = vstv %s764
      %v775 = vadd.s32 %v774, %v766
      %v776 = vadd.s32 %v774, %v767
      %v777 = vadd.s32 %v774, %v768
      %v778 = vadd.s32 %v774, %v769
      %v779 = vadd.s32 %v774, %v770
      %v780 = vadd.s32 %v774, %v771
      %v781 = vadd.s32 %v774, %v772
      %v782 = vadd.s32 %v774, %v773
      %vm783 = vcmp.lt.s32.totalorder %v775, 64
      %vm784 = vcmp.lt.s32.totalorder %v776, 64
      %vm785 = vcmp.lt.s32.totalorder %v777, 64
      %vm786 = vcmp.lt.s32.totalorder %v778, 64
      %vm787 = vcmp.lt.s32.totalorder %v779, 64
      %vm788 = vcmp.lt.s32.totalorder %v780, 64
      %vm789 = vcmp.lt.s32.totalorder %v781, 64
      %vm790 = vcmp.lt.s32.totalorder %v782, 64
      %p791 = scmp.eq.s32.totalorder %s32, 0
      // Predicated region
      $region81: #{t2t_forward.3} parent=79 // pred_check
        %p792 = pneg %p791
      $region82: #{t2t_forward.3} parent=79 // pred_check_branch
        %794 = sbr.rel (%p792) target = $region84
      $region83: #{t2t_forward.3} parent=79 // pred_region
        %p795 = scmp.eq.s32.totalorder %s33, 0
        // Predicated region
        $region85: #{t2t_forward.3} parent=83 // pred_check
          %p796 = pneg %p795
        $region86: #{t2t_forward.3} parent=83 // pred_check_branch
          %798 = sbr.rel (%p796) target = $region88
        $region87: #{t2t_forward.3} parent=83 // pred_region
          %vm799 = vcmask 253952
          %800 = vst.msk [vmem:[#allocation2] sm:$0x1] %vm799, 0.0
          %vm801 = vcmask 523264
          %802 = vst.msk [vmem:[#allocation3] sm:$0xff] %vm801, 0.0
          %803 = vst.msk [vmem:[#allocation3 + $0x8] sm:$0xff] %vm801, 0.0
          %804 = vst.msk [vmem:[#allocation3 + $0x10] sm:$0xff] %vm801, 0.0
          %805 = vst.msk [vmem:[#allocation3 + $0x18] sm:$0xff] %vm801, 0.0
        $region88: #{t2t_forward.3} parent=83 // pred_fallthru
          _
        %v806 = vld [vmem:[%s3] sm:$0xff]
        %v807 = vld [vmem:[%s3 + $0x8] sm:$0xff]
        %v808 = vld [vmem:[%s3 + $0x10] sm:$0xff]
        %v809 = vld [vmem:[%s3 + $0x18] sm:$0xff]
        %v810 = vld [vmem:[%s3 + $0x20] sm:$0xff]
        %v811 = vld [vmem:[%s3 + $0x28] sm:$0xff]
        %v812 = vld [vmem:[%s3 + $0x30] sm:$0xff]
        %v813 = vld [vmem:[%s3 + $0x38] sm:$0xff]
        %v814 = vld [vmem:[%s3 + $0x40] sm:$0xff]
        %v815 = vld [vmem:[%s3 + $0x48] sm:$0xff]
        %v816 = vld [vmem:[%s3 + $0x50] sm:$0xff]
        %v817 = vld [vmem:[%s3 + $0x58] sm:$0xff]
        %v818 = vld [vmem:[%s3 + $0x60] sm:$0xff]
        %v819 = vld [vmem:[%s3 + $0x68] sm:$0xff]
        %v820 = vld [vmem:[%s3 + $0x70] sm:$0xff]
        %v821 = vld [vmem:[%s3 + $0x78] sm:$0xff]
        %v822 = vld [vmem:[%s3 + $0x80] sm:$0xff]
        %v823 = vld [vmem:[%s3 + $0x88] sm:$0xff]
        %v824 = vld [vmem:[%s3 + $0x90] sm:$0xff]
        %v825 = vld [vmem:[%s3 + $0x98] sm:$0xff]
        %v826 = vld [vmem:[%s3 + $0xa0] sm:$0xff]
        %v827 = vld [vmem:[%s3 + $0xa8] sm:$0xff]
        %v828 = vld [vmem:[%s3 + $0xb0] sm:$0xff]
        %v829 = vld [vmem:[%s3 + $0xb8] sm:$0xff]
        %v830 = vld [vmem:[%s3 + $0xc0] sm:$0xff]
        %v831 = vld [vmem:[%s3 + $0xc8] sm:$0xff]
        %v832 = vld [vmem:[%s3 + $0xd0] sm:$0xff]
        %v833 = vld [vmem:[%s3 + $0xd8] sm:$0xff]
        %v834 = vld [vmem:[%s3 + $0xe0] sm:$0xff]
        %v835 = vld [vmem:[%s3 + $0xe8] sm:$0xff]
        %v836 = vld [vmem:[%s3 + $0xf0] sm:$0xff]
        %v837 = vld [vmem:[%s3 + $0xf8] sm:$0xff]
        %v838 = vld [vmem:[%s3 + $0x100] sm:$0xff]
        %v839 = vld [vmem:[%s3 + $0x108] sm:$0xff]
        %v840 = vld [vmem:[%s3 + $0x110] sm:$0xff]
        %v841 = vld [vmem:[%s3 + $0x118] sm:$0xff]
        %v842 = vld [vmem:[%s3 + $0x120] sm:$0x7]
        %v843 = vld [vmem:[%s3 + $0x128] sm:$0x7]
        %v844 = vld [vmem:[%s4] sm:$0x3]
        %v846 = vlaneseq
        %v847 = vshrl.u32 %v846, 7
        %v848 = vsub.s32 0, %v847
        %v849 = vrot.slane %v844, %v848
        %v850 = vlaneseq
        %v851 = vshrl.u32 %v850, 7
        %v852 = vsub.s32 1, %v851
        %v853 = vrot.slane %v844, %v852
        %v857 = vsel %vm562, %v749, 0
        %v860 = vsel %vm562, %v751, 0
        %v863 = vsel %vm562, %v753, 0
        %v866 = vsel %vm562, %v755, 0
        %v869 = vsel %vm562, %v757, 0
        %v872 = vsel %vm562, %v759, 0
        %v875 = vsel %vm562, %v761, 0
        %v878 = vsel %vm562, %v763, 0
        %vm880 = vcmask 1042432
        %v882 = vsel %vm880, %v842, 0
        %v885 = vsel %vm880, %v843, 0
        %887 = vmatprep.subr.mxu0 %v807
        %888 = vmatpush1.msra.mxu0 %v806
        %889 = vmatprep.subr.mxu0 %v809
        %890 = vmatpush1.msra.mxu0 %v808
        %891 = vmatprep.subr.mxu0 %v811
        %892 = vmatpush1.msra.mxu0 %v810
        %893 = vmatprep.subr.mxu0 %v813
        %894 = vmatpush1.msra.mxu0 %v812
        %895 = vmatprep.subr.mxu0 %v815
        %896 = vmatpush1.msra.mxu0 %v814
        %897 = vmatprep.subr.mxu0 %v817
        %898 = vmatpush1.msra.mxu0 %v816
        %899 = vmatprep.subr.mxu0 %v819
        %900 = vmatpush1.msra.mxu0 %v818
        %901 = vmatprep.subr.mxu0 %v821
        %902 = vmatpush1.msra.mxu0 %v820
        %903 = vmatprep.subr.mxu0 %v823
        %904 = vmatpush1.msra.mxu0 %v822
        %905 = vmatprep.subr.mxu0 %v825
        %906 = vmatpush1.msra.mxu0 %v824
        %907 = vmatprep.subr.mxu0 %v827
        %908 = vmatpush1.msra.mxu0 %v826
        %909 = vmatprep.subr.mxu0 %v829
        %910 = vmatpush1.msra.mxu0 %v828
        %911 = vmatprep.subr.mxu0 %v831
        %912 = vmatpush1.msra.mxu0 %v830
        %913 = vmatprep.subr.mxu0 %v833
        %914 = vmatpush1.msra.mxu0 %v832
        %915 = vmatprep.subr.mxu0 %v835
        %916 = vmatpush1.msra.mxu0 %v834
        %917 = vmatprep.subr.mxu0 %v837
        %918 = vmatpush1.msra.mxu0 %v836
        %919 = vmatprep.subr.mxu0 %v839
        %920 = vmatpush1.msra.mxu0 %v838
        %921 = vmatprep.subr.mxu0 %v841
        %922 = vmatpush1.msra.mxu0 %v840
        %923 = vmatprep.subr.mxu0 %v885
        %924 = vmatpush1.msra.mxu0 %v882
        %925 = vmatprep.subr.mxu0 0.0
        %926 = vmatpush1.msra.mxu0 0.0
        %927 = vmatprep.subr.mxu0 0.0
        %928 = vmatpush1.msra.mxu0 0.0
        %929 = vmatprep.subr.mxu0 0.0
        %930 = vmatpush1.msra.mxu0 0.0
        %931 = vmatprep.subr.mxu0 0.0
        %932 = vmatpush1.msra.mxu0 0.0
        %933 = vmatprep.subr.mxu0 0.0
        %934 = vmatpush1.msra.mxu0 0.0
        %935 = vmatprep.subr.mxu0 0.0
        %936 = vmatpush1.msra.mxu0 0.0
        %937 = vmatprep.subr.mxu0 0.0
        %938 = vmatpush1.msra.mxu0 0.0
        %939 = vmatprep.subr.mxu0 0.0
        %940 = vmatpush1.msra.mxu0 0.0
        %941 = vmatprep.subr.mxu0 0.0
        %942 = vmatpush1.msra.mxu0 0.0
        %943 = vmatprep.subr.mxu0 0.0
        %944 = vmatpush1.msra.mxu0 0.0
        %945 = vmatprep.subr.mxu0 0.0
        %946 = vmatpush1.msra.mxu0 0.0
        %947 = vmatprep.subr.mxu0 0.0
        %948 = vmatpush1.msra.mxu0 0.0
        %949 = vmatprep.subr.mxu0 0.0
        %950 = vmatpush1.msra.mxu0 0.0
        %951 = vmatprep.mubr.f32.mxu0 %v857
        %952 = vmatmul.mubr.f32.gmra.mrb[0].mxu0 %v748
        %v953 = vpop.f32.mrb[0].mxu0
        %v954 = vadd.f32 %v849, %v953
        %v955 = vpop.f32.mrb[0].mxu0
        %v956 = vadd.f32 %v853, %v955
        %957 = vmatprep.mubr.f32.mxu0 %v860
        %958 = vmatmul.mubr.f32.gmra.mrb[0].mxu0 %v750
        %v959 = vpop.f32.mrb[0].mxu0
        %v960 = vadd.f32 %v849, %v959
        %v961 = vpop.f32.mrb[0].mxu0
        %v962 = vadd.f32 %v853, %v961
        %963 = vmatprep.mubr.f32.mxu0 %v863
        %964 = vmatmul.mubr.f32.gmra.mrb[0].mxu0 %v752
        %v965 = vpop.f32.mrb[0].mxu0
        %v966 = vadd.f32 %v849, %v965
        %v967 = vpop.f32.mrb[0].mxu0
        %v968 = vadd.f32 %v853, %v967
        %969 = vmatprep.mubr.f32.mxu0 %v866
        %970 = vmatmul.mubr.f32.gmra.mrb[0].mxu0 %v754
        %v971 = vpop.f32.mrb[0].mxu0
        %v972 = vadd.f32 %v849, %v971
        %v973 = vpop.f32.mrb[0].mxu0
        %v974 = vadd.f32 %v853, %v973
        %975 = vmatprep.mubr.f32.mxu0 %v869
        %976 = vmatmul.mubr.f32.gmra.mrb[0].mxu0 %v756
        %v977 = vpop.f32.mrb[0].mxu0
        %v978 = vadd.f32 %v849, %v977
        %v979 = vpop.f32.mrb[0].mxu0
        %v980 = vadd.f32 %v853, %v979
        %981 = vmatprep.mubr.f32.mxu0 %v872
        %982 = vmatmul.mubr.f32.gmra.mrb[0].mxu0 %v758
        %v983 = vpop.f32.mrb[0].mxu0
        %v984 = vadd.f32 %v849, %v983
        %v985 = vpop.f32.mrb[0].mxu0
        %v986 = vadd.f32 %v853, %v985
        %987 = vmatprep.mubr.f32.mxu0 %v875
        %988 = vmatmul.mubr.f32.gmra.mrb[0].mxu0 %v760
        %v989 = vpop.f32.mrb[0].mxu0
        %v990 = vadd.f32 %v849, %v989
        %v991 = vpop.f32.mrb[0].mxu0
        %v992 = vadd.f32 %v853, %v991
        %993 = vmatprep.mubr.f32.mxu0 %v878
        %994 = vmatmul.mubr.f32.gmra.mrb[0].mxu0 %v762
        %v995 = vpop.f32.mrb[0].mxu0
        %v996 = vadd.f32 %v849, %v995
        %v997 = vpop.f32.mrb[0].mxu0
        %v998 = vadd.f32 %v853, %v997
        %999 = vdwg.mxu0
        %v1000 = vmul.f32 %v954, %v954
        %v1001 = vmul.f32 %v960, %v960
        %v1002 = vmul.f32 %v966, %v966
        %v1003 = vmul.f32 %v972, %v972
        %v1004 = vmul.f32 %v978, %v978
        %v1005 = vmul.f32 %v984, %v984
        %v1006 = vmul.f32 %v990, %v990
        %v1007 = vmul.f32 %v996, %v996
        %vm1008 = vcmask 523264
        %v1009 = vsel %vm1008, %v1000, 0.0
        %1010 = vadd.xlane.f32.xlu0 %v1009
        %v1011 = vpop.xlane.xlu0 %1010
        %v1012 = vsel %vm1008, %v1001, 0.0
        %1013 = vadd.xlane.f32.xlu0 %v1012
        %v1014 = vpop.xlane.xlu0 %1013
        %v1015 = vsel %vm1008, %v1002, 0.0
        %1016 = vadd.xlane.f32.xlu0 %v1015
        %v1017 = vpop.xlane.xlu0 %1016
        %v1018 = vsel %vm1008, %v1003, 0.0
        %1019 = vadd.xlane.f32.xlu0 %v1018
        %v1020 = vpop.xlane.xlu0 %1019
        %v1021 = vsel %vm1008, %v1004, 0.0
        %1022 = vadd.xlane.f32.xlu0 %v1021
        %v1023 = vpop.xlane.xlu0 %1022
        %v1024 = vsel %vm1008, %v1005, 0.0
        %1025 = vadd.xlane.f32.xlu0 %v1024
        %v1026 = vpop.xlane.xlu0 %1025
        %v1027 = vsel %vm1008, %v1006, 0.0
        %1028 = vadd.xlane.f32.xlu0 %v1027
        %v1029 = vpop.xlane.xlu0 %1028
        %v1030 = vsel %vm1008, %v1007, 0.0
        %1031 = vadd.xlane.f32.xlu0 %v1030
        %v1032 = vpop.xlane.xlu0 %1031
        %v1033 = vmul.f32 %v1011, 0.5
        %v1034 = vmul.f32 %v1014, 0.5
        %v1035 = vmul.f32 %v1017, 0.5
        %v1036 = vmul.f32 %v1020, 0.5
        %v1037 = vmul.f32 %v1023, 0.5
        %v1038 = vmul.f32 %v1026, 0.5
        %v1039 = vmul.f32 %v1029, 0.5
        %v1040 = vmul.f32 %v1032, 0.5
        %v1041 = vsub.f32 %v956, %v1033
        %v1042 = vsub.f32 %v962, %v1034
        %v1043 = vsub.f32 %v968, %v1035
        %v1044 = vsub.f32 %v974, %v1036
        %v1045 = vsub.f32 %v980, %v1037
        %v1046 = vsub.f32 %v986, %v1038
        %v1047 = vsub.f32 %v992, %v1039
        %v1048 = vsub.f32 %v998, %v1040
        %v1049 = vmul.f32 %v1041, 1.442695
        %v1050 = vpow.pop %v1049
        %v1051 = vmul.f32 %v1042, 1.442695
        %v1052 = vpow.pop %v1051
        %v1053 = vmul.f32 %v1043, 1.442695
        %v1054 = vpow.pop %v1053
        %v1055 = vmul.f32 %v1044, 1.442695
        %v1056 = vpow.pop %v1055
        %v1057 = vmul.f32 %v1045, 1.442695
        %v1058 = vpow.pop %v1057
        %v1059 = vmul.f32 %v1046, 1.442695
        %v1060 = vpow.pop %v1059
        %v1061 = vmul.f32 %v1047, 1.442695
        %v1062 = vpow.pop %v1061
        %v1063 = vmul.f32 %v1048, 1.442695
        %v1064 = vpow.pop %v1063
        %v1065 = vmul.f32 %v1050, 0.17677669
        %v1066 = vmul.f32 %v1052, 0.17677669
        %v1067 = vmul.f32 %v1054, 0.17677669
        %v1068 = vmul.f32 %v1056, 0.17677669
        %v1069 = vmul.f32 %v1058, 0.17677669
        %v1070 = vmul.f32 %v1060, 0.17677669
        %v1071 = vmul.f32 %v1062, 0.17677669
        %v1072 = vmul.f32 %v1064, 0.17677669
        %v1073 = vsel %vm783, 1, 0
        %v1074 = vsel %vm784, 1, 0
        %v1075 = vsel %vm785, 1, 0
        %v1076 = vsel %vm786, 1, 0
        %v1077 = vsel %vm787, 1, 0
        %v1078 = vsel %vm788, 1, 0
        %v1079 = vsel %vm789, 1, 0
        %v1080 = vsel %vm790, 1, 0
        %vm1081 = vcmp.eq.s32.totalorder %v1073, 1
        %vm1082 = vcmp.eq.s32.totalorder %v1074, 1
        %vm1083 = vcmp.eq.s32.totalorder %v1075, 1
        %vm1084 = vcmp.eq.s32.totalorder %v1076, 1
        %vm1085 = vcmp.eq.s32.totalorder %v1077, 1
        %vm1086 = vcmp.eq.s32.totalorder %v1078, 1
        %vm1087 = vcmp.eq.s32.totalorder %v1079, 1
        %vm1088 = vcmp.eq.s32.totalorder %v1080, 1
        %v1089 = vsel %vm1081, %v1065, 0.0
        %v1090 = vsel %vm1082, %v1066, 0.0
        %v1091 = vsel %vm1083, %v1067, 0.0
        %v1092 = vsel %vm1084, %v1068, 0.0
        %v1093 = vsel %vm1085, %v1069, 0.0
        %v1094 = vsel %vm1086, %v1070, 0.0
        %v1095 = vsel %vm1087, %v1071, 0.0
        %v1096 = vsel %vm1088, %v1072, 0.0
        %v1097 = vld [vmem:[#allocation2] sm:$0x1]
        %vm1098 = vcmask 261120
        %v1099 = vsel %vm1098, %v1089, 0.0
        %v1100 = vsel %vm1098, %v1090, 0.0
        %v1101 = vadd.f32 %v1099, %v1100
        %v1102 = vsel %vm1098, %v1091, 0.0
        %v1103 = vadd.f32 %v1101, %v1102
        %v1104 = vsel %vm1098, %v1092, 0.0
        %v1105 = vadd.f32 %v1103, %v1104
        %v1106 = vsel %vm1098, %v1093, 0.0
        %v1107 = vadd.f32 %v1105, %v1106
        %v1108 = vsel %vm1098, %v1094, 0.0
        %v1109 = vadd.f32 %v1107, %v1108
        %v1110 = vsel %vm1098, %v1095, 0.0
        %v1111 = vadd.f32 %v1109, %v1110
        %v1112 = vsel %vm1098, %v1096, 0.0
        %v1113 = vadd.f32 %v1111, %v1112
        %v1114 = vrot.slane %v1113, 4
        %v1115 = vadd.f32 %v1113, %v1114
        %v1116 = vrot.slane %v1115, 2
        %v1117 = vadd.f32 %v1115, %v1116
        %v1118 = vrot.slane %v1117, 1
        %v1119 = vadd.f32 %v1117, %v1118
        %v1120 = vadd.f32 %v1097, %v1119
        %vm1121 = vcmask 253952
        %1122 = vst.msk [vmem:[#allocation2] sm:$0x1] %vm1121, %v1120
        %v1123 = vld [vmem:[#allocation3] sm:$0xff]
        %v1124 = vld [vmem:[#allocation3 + $0x8] sm:$0xff]
        %v1125 = vld [vmem:[#allocation3 + $0x10] sm:$0xff]
        %v1126 = vld [vmem:[#allocation3 + $0x18] sm:$0xff]
        %1127 = vxpose.xlu0.b32.start [1/16] %v1089, 128
        %1128 = vxpose.xlu0.b32.cont [2/16] %v1090, 128
        %1129 = vxpose.xlu0.b32.cont [3/16] %v1091, 128
        %1130 = vxpose.xlu0.b32.cont [4/16] %v1092, 128
        %1131 = vxpose.xlu0.b32.cont [5/16] %v1093, 128
        %1132 = vxpose.xlu0.b32.cont [6/16] %v1094, 128
        %1133 = vxpose.xlu0.b32.cont [7/16] %v1095, 128
        %1134 = vxpose.xlu0.b32.cont [8/16] %v1096, 128
        %1135 = vxpose.xlu0.b32.cont [9/16] 0.0, 128
        %1136 = vxpose.xlu0.b32.cont [10/16] 0.0, 128
        %1137 = vxpose.xlu0.b32.cont [11/16] 0.0, 128
        %1138 = vxpose.xlu0.b32.cont [12/16] 0.0, 128
        %1139 = vxpose.xlu0.b32.cont [13/16] 0.0, 128
        %1140 = vxpose.xlu0.b32.cont [14/16] 0.0, 128
        %1141 = vxpose.xlu0.b32.cont [15/16] 0.0, 128
        %1142 = vxpose.xlu0.b32.end [16/16] 0.0, 128
        %v1143 = vpop.trf.xlu0
        %v1144 = vpop.trf.xlu0
        %v1145 = vpop.trf.xlu0
        %v1146 = vpop.trf.xlu0
        %v1147 = vpop.trf.xlu0
        %v1148 = vpop.trf.xlu0
        %v1149 = vpop.trf.xlu0
        %v1150 = vpop.trf.xlu0
        %v1151 = vpop.trf.xlu0
        %v1152 = vpop.trf.xlu0
        %v1153 = vpop.trf.xlu0
        %v1154 = vpop.trf.xlu0
        %v1155 = vpop.trf.xlu0
        %v1156 = vpop.trf.xlu0
        %v1157 = vpop.trf.xlu0
        %v1158 = vpop.trf.xlu0
        %1167 = vrot.lane.b32.xlu0 %v954, 64
        %v1168 = vpop.permute.xlu0 %1167
        %1169 = vrot.lane.b32.xlu0 %v960, 64
        %v1170 = vpop.permute.xlu0 %1169
        %1171 = vrot.lane.b32.xlu0 %v966, 64
        %v1172 = vpop.permute.xlu0 %1171
        %1173 = vrot.lane.b32.xlu0 %v972, 64
        %v1174 = vpop.permute.xlu0 %1173
        %1175 = vrot.lane.b32.xlu0 %v978, 64
        %v1176 = vpop.permute.xlu0 %1175
        %1177 = vrot.lane.b32.xlu0 %v984, 64
        %v1178 = vpop.permute.xlu0 %1177
        %1179 = vrot.lane.b32.xlu0 %v990, 64
        %v1180 = vpop.permute.xlu0 %1179
        %1181 = vrot.lane.b32.xlu0 %v996, 64
        %v1182 = vpop.permute.xlu0 %1181
        %v1192 = vsel %vm1008, %v1143, 0
        %v1195 = vsel %vm1008, %v1144, 0
        %v1198 = vsel %vm1008, %v1145, 0
        %v1201 = vsel %vm1008, %v1146, 0
        %1203 = vmatprep.subr.mxu0 0.0
        %1204 = vmatpush1.msra.mxu0 %v1168
        %1205 = vmatprep.subr.mxu0 0.0
        %1206 = vmatpush1.msra.mxu0 %v1170
        %1207 = vmatprep.subr.mxu0 0.0
        %1208 = vmatpush1.msra.mxu0 %v1172
        %1209 = vmatprep.subr.mxu0 0.0
        %1210 = vmatpush1.msra.mxu0 %v1174
        %1211 = vmatprep.subr.mxu0 0.0
        %1212 = vmatpush1.msra.mxu0 %v1176
        %1213 = vmatprep.subr.mxu0 0.0
        %1214 = vmatpush1.msra.mxu0 %v1178
        %1215 = vmatprep.subr.mxu0 0.0
        %1216 = vmatpush1.msra.mxu0 %v1180
        %1217 = vmatprep.subr.mxu0 0.0
        %1218 = vmatpush1.msra.mxu0 %v1182
        %1219 = vmatprep.subr.mxu0 0.0
        %1220 = vmatpush1.msra.mxu0 0.0
        %1221 = vmatprep.subr.mxu0 0.0
        %1222 = vmatpush1.msra.mxu0 0.0
        %1223 = vmatprep.subr.mxu0 0.0
        %1224 = vmatpush1.msra.mxu0 0.0
        %1225 = vmatprep.subr.mxu0 0.0
        %1226 = vmatpush1.msra.mxu0 0.0
        %1227 = vmatprep.subr.mxu0 0.0
        %1228 = vmatpush1.msra.mxu0 0.0
        %1229 = vmatprep.subr.mxu0 0.0
        %1230 = vmatpush1.msra.mxu0 0.0
        %1231 = vmatprep.subr.mxu0 0.0
        %1232 = vmatpush1.msra.mxu0 0.0
        %1233 = vmatprep.subr.mxu0 0.0
        %1234 = vmatpush1.msra.mxu0 0.0
        %1235 = vmatprep.subr.mxu0 0.0
        %1236 = vmatpush1.msra.mxu0 0.0
        %1237 = vmatprep.subr.mxu0 0.0
        %1238 = vmatpush1.msra.mxu0 0.0
        %1239 = vmatprep.subr.mxu0 0.0
        %1240 = vmatpush1.msra.mxu0 0.0
        %1241 = vmatprep.subr.mxu0 0.0
        %1242 = vmatpush1.msra.mxu0 0.0
        %1243 = vmatprep.subr.mxu0 0.0
        %1244 = vmatpush1.msra.mxu0 0.0
        %1245 = vmatprep.subr.mxu0 0.0
        %1246 = vmatpush1.msra.mxu0 0.0
        %1247 = vmatprep.subr.mxu0 0.0
        %1248 = vmatpush1.msra.mxu0 0.0
        %1249 = vmatprep.subr.mxu0 0.0
        %1250 = vmatpush1.msra.mxu0 0.0
        %1251 = vmatprep.subr.mxu0 0.0
        %1252 = vmatpush1.msra.mxu0 0.0
        %1253 = vmatprep.subr.mxu0 0.0
        %1254 = vmatpush1.msra.mxu0 0.0
        %1255 = vmatprep.subr.mxu0 0.0
        %1256 = vmatpush1.msra.mxu0 0.0
        %1257 = vmatprep.subr.mxu0 0.0
        %1258 = vmatpush1.msra.mxu0 0.0
        %1259 = vmatprep.subr.mxu0 0.0
        %1260 = vmatpush1.msra.mxu0 0.0
        %1261 = vmatprep.subr.mxu0 0.0
        %1262 = vmatpush1.msra.mxu0 0.0
        %1263 = vmatprep.subr.mxu0 0.0
        %1264 = vmatpush1.msra.mxu0 0.0
        %1265 = vmatprep.subr.mxu0 0.0
        %1266 = vmatpush1.msra.mxu0 0.0
        %1267 = vmatprep.mubr.f32.mxu0 0.0
        %1268 = vmatmul.mubr.f32.gmra.mrb[0].mxu0 %v1192
        %v1269 = vpop.f32.mrb[0].mxu0
        %v1270 = vadd.f32 0.0, %v1269
        %v1271 = vpop.f32.mrb[0].mxu0
        %1272 = vmatprep.mubr.f32.mxu0 0.0
        %1273 = vmatmul.mubr.f32.gmra.mrb[0].mxu0 %v1195
        %v1274 = vpop.f32.mrb[0].mxu0
        %v1275 = vadd.f32 0.0, %v1274
        %v1276 = vpop.f32.mrb[0].mxu0
        %1277 = vmatprep.mubr.f32.mxu0 0.0
        %1278 = vmatmul.mubr.f32.gmra.mrb[0].mxu0 %v1198
        %v1279 = vpop.f32.mrb[0].mxu0
        %v1280 = vadd.f32 0.0, %v1279
        %v1281 = vpop.f32.mrb[0].mxu0
        %1282 = vmatprep.mubr.f32.mxu0 0.0
        %1283 = vmatmul.mubr.f32.gmra.mrb[0].mxu0 %v1201
        %v1284 = vpop.f32.mrb[0].mxu0
        %v1285 = vadd.f32 0.0, %v1284
        %v1286 = vpop.f32.mrb[0].mxu0
        %1287 = vdwg.mxu0
        %v1288 = vadd.f32 %v1123, %v1270
        %v1289 = vadd.f32 %v1124, %v1275
        %v1290 = vadd.f32 %v1125, %v1280
        %v1291 = vadd.f32 %v1126, %v1285
        %1292 = vst.msk [vmem:[#allocation3] sm:$0xff] %vm1008, %v1288
        %1293 = vst.msk [vmem:[#allocation3 + $0x8] sm:$0xff] %vm1008, %v1289
        %1294 = vst.msk [vmem:[#allocation3 + $0x10] sm:$0xff] %vm1008, %v1290
        %1295 = vst.msk [vmem:[#allocation3 + $0x18] sm:$0xff] %vm1008, %v1291
      $region84: #{t2t_forward.3} parent=79 // pred_fallthru
        _
      %p1296 = scmp.eq.s32.totalorder %s32, 1
      // Predicated region
      $region89: #{t2t_forward.3} parent=79 // pred_check
        %p1297 = pneg %p1296
      $region90: #{t2t_forward.3} parent=79 // pred_check_branch
        %1299 = sbr.rel (%p1297) target = $region92
      $region91: #{t2t_forward.3} parent=79 // pred_region
        %v1300 = vld [vmem:[%s5] sm:$0xff]
        %v1301 = vld [vmem:[%s5 + $0x8] sm:$0xff]
        %v1302 = vld [vmem:[%s5 + $0x10] sm:$0xff]
        %v1303 = vld [vmem:[%s5 + $0x18] sm:$0xff]
        %v1304 = vld [vmem:[%s5 + $0x20] sm:$0xff]
        %v1305 = vld [vmem:[%s5 + $0x28] sm:$0xff]
        %v1306 = vld [vmem:[%s5 + $0x30] sm:$0xff]
        %v1307 = vld [vmem:[%s5 + $0x38] sm:$0xff]
        %v1308 = vld [vmem:[%s5 + $0x40] sm:$0xff]
        %v1309 = vld [vmem:[%s5 + $0x48] sm:$0xff]
        %v1310 = vld [vmem:[%s5 + $0x50] sm:$0xff]
        %v1311 = vld [vmem:[%s5 + $0x58] sm:$0xff]
        %v1312 = vld [vmem:[%s5 + $0x60] sm:$0xff]
        %v1313 = vld [vmem:[%s5 + $0x68] sm:$0xff]
        %v1314 = vld [vmem:[%s5 + $0x70] sm:$0xff]
        %v1315 = vld [vmem:[%s5 + $0x78] sm:$0xff]
        %v1316 = vld [vmem:[%s5 + $0x80] sm:$0xff]
        %v1317 = vld [vmem:[%s5 + $0x88] sm:$0xff]
        %v1318 = vld [vmem:[%s5 + $0x90] sm:$0xff]
        %v1319 = vld [vmem:[%s5 + $0x98] sm:$0xff]
        %v1320 = vld [vmem:[%s5 + $0xa0] sm:$0xff]
        %v1321 = vld [vmem:[%s5 + $0xa8] sm:$0xff]
        %v1322 = vld [vmem:[%s5 + $0xb0] sm:$0xff]
        %v1323 = vld [vmem:[%s5 + $0xb8] sm:$0xff]
        %v1324 = vld [vmem:[%s5 + $0xc0] sm:$0xff]
        %v1325 = vld [vmem:[%s5 + $0xc8] sm:$0xff]
        %v1326 = vld [vmem:[%s5 + $0xd0] sm:$0xff]
        %v1327 = vld [vmem:[%s5 + $0xd8] sm:$0xff]
        %v1328 = vld [vmem:[%s5 + $0xe0] sm:$0xff]
        %v1329 = vld [vmem:[%s5 + $0xe8] sm:$0xff]
        %v1330 = vld [vmem:[%s5 + $0xf0] sm:$0xff]
        %v1331 = vld [vmem:[%s5 + $0xf8] sm:$0xff]
        %v1332 = vld [vmem:[%s5 + $0x100] sm:$0xff]
        %v1333 = vld [vmem:[%s5 + $0x108] sm:$0xff]
        %v1334 = vld [vmem:[%s5 + $0x110] sm:$0xff]
        %v1335 = vld [vmem:[%s5 + $0x118] sm:$0xff]
        %v1336 = vld [vmem:[%s5 + $0x120] sm:$0x7]
        %v1337 = vld [vmem:[%s5 + $0x128] sm:$0x7]
        %v1338 = vld [vmem:[%s6] sm:$0x3]
        %v1340 = vlaneseq
        %v1341 = vshrl.u32 %v1340, 7
        %v1342 = vsub.s32 0, %v1341
        %v1343 = vrot.slane %v1338, %v1342
        %v1344 = vlaneseq
        %v1345 = vshrl.u32 %v1344, 7
        %v1346 = vsub.s32 1, %v1345
        %v1347 = vrot.slane %v1338, %v1346
        %v1351 = vsel %vm562, %v749, 0
        %v1354 = vsel %vm562, %v751, 0
        %v1357 = vsel %vm562, %v753, 0
        %v1360 = vsel %vm562, %v755, 0
        %v1363 = vsel %vm562, %v757, 0
        %v1366 = vsel %vm562, %v759, 0
        %v1369 = vsel %vm562, %v761, 0
        %v1372 = vsel %vm562, %v763, 0
        %vm1374 = vcmask 1042432
        %v1376 = vsel %vm1374, %v1336, 0
        %v1379 = vsel %vm1374, %v1337, 0
        %1381 = vmatprep.subr.mxu0 %v1301
        %1382 = vmatpush1.msra.mxu0 %v1300
        %1383 = vmatprep.subr.mxu0 %v1303
        %1384 = vmatpush1.msra.mxu0 %v1302
        %1385 = vmatprep.subr.mxu0 %v1305
        %1386 = vmatpush1.msra.mxu0 %v1304
        %1387 = vmatprep.subr.mxu0 %v1307
        %1388 = vmatpush1.msra.mxu0 %v1306
        %1389 = vmatprep.subr.mxu0 %v1309
        %1390 = vmatpush1.msra.mxu0 %v1308
        %1391 = vmatprep.subr.mxu0 %v1311
        %1392 = vmatpush1.msra.mxu0 %v1310
        %1393 = vmatprep.subr.mxu0 %v1313
        %1394 = vmatpush1.msra.mxu0 %v1312
        %1395 = vmatprep.subr.mxu0 %v1315
        %1396 = vmatpush1.msra.mxu0 %v1314
        %1397 = vmatprep.subr.mxu0 %v1317
        %1398 = vmatpush1.msra.mxu0 %v1316
        %1399 = vmatprep.subr.mxu0 %v1319
        %1400 = vmatpush1.msra.mxu0 %v1318
        %1401 = vmatprep.subr.mxu0 %v1321
        %1402 = vmatpush1.msra.mxu0 %v1320
        %1403 = vmatprep.subr.mxu0 %v1323
        %1404 = vmatpush1.msra.mxu0 %v1322
        %1405 = vmatprep.subr.mxu0 %v1325
        %1406 = vmatpush1.msra.mxu0 %v1324
        %1407 = vmatprep.subr.mxu0 %v1327
        %1408 = vmatpush1.msra.mxu0 %v1326
        %1409 = vmatprep.subr.mxu0 %v1329
        %1410 = vmatpush1.msra.mxu0 %v1328
        %1411 = vmatprep.subr.mxu0 %v1331
        %1412 = vmatpush1.msra.mxu0 %v1330
        %1413 = vmatprep.subr.mxu0 %v1333
        %1414 = vmatpush1.msra.mxu0 %v1332
        %1415 = vmatprep.subr.mxu0 %v1335
        %1416 = vmatpush1.msra.mxu0 %v1334
        %1417 = vmatprep.subr.mxu0 %v1379
        %1418 = vmatpush1.msra.mxu0 %v1376
        %1419 = vmatprep.subr.mxu0 0.0
        %1420 = vmatpush1.msra.mxu0 0.0
        %1421 = vmatprep.subr.mxu0 0.0
        %1422 = vmatpush1.msra.mxu0 0.0
        %1423 = vmatprep.subr.mxu0 0.0
        %1424 = vmatpush1.msra.mxu0 0.0
        %1425 = vmatprep.subr.mxu0 0.0
        %1426 = vmatpush1.msra.mxu0 0.0
        %1427 = vmatprep.subr.mxu0 0.0
        %1428 = vmatpush1.msra.mxu0 0.0
        %1429 = vmatprep.subr.mxu0 0.0
        %1430 = vmatpush1.msra.mxu0 0.0
        %1431 = vmatprep.subr.mxu0 0.0
        %1432 = vmatpush1.msra.mxu0 0.0
        %1433 = vmatprep.subr.mxu0 0.0
        %1434 = vmatpush1.msra.mxu0 0.0
        %1435 = vmatprep.subr.mxu0 0.0
        %1436 = vmatpush1.msra.mxu0 0.0
        %1437 = vmatprep.subr.mxu0 0.0
        %1438 = vmatpush1.msra.mxu0 0.0
        %1439 = vmatprep.subr.mxu0 0.0
        %1440 = vmatpush1.msra.mxu0 0.0
        %1441 = vmatprep.subr.mxu0 0.0
        %1442 = vmatpush1.msra.mxu0 0.0
        %1443 = vmatprep.subr.mxu0 0.0
        %1444 = vmatpush1.msra.mxu0 0.0
        %1445 = vmatprep.mubr.f32.mxu0 %v1351
        %1446 = vmatmul.mubr.f32.gmra.mrb[0].mxu0 %v748
        %v1447 = vpop.f32.mrb[0].mxu0
        %v1448 = vadd.f32 %v1343, %v1447
        %v1449 = vpop.f32.mrb[0].mxu0
        %v1450 = vadd.f32 %v1347, %v1449
        %1451 = vmatprep.mubr.f32.mxu0 %v1354
        %1452 = vmatmul.mubr.f32.gmra.mrb[0].mxu0 %v750
        %v1453 = vpop.f32.mrb[0].mxu0
        %v1454 = vadd.f32 %v1343, %v1453
        %v1455 = vpop.f32.mrb[0].mxu0
        %v1456 = vadd.f32 %v1347, %v1455
        %1457 = vmatprep.mubr.f32.mxu0 %v1357
        %1458 = vmatmul.mubr.f32.gmra.mrb[0].mxu0 %v752
        %v1459 = vpop.f32.mrb[0].mxu0
        %v1460 = vadd.f32 %v1343, %v1459
        %v1461 = vpop.f32.mrb[0].mxu0
        %v1462 = vadd.f32 %v1347, %v1461
        %1463 = vmatprep.mubr.f32.mxu0 %v1360
        %1464 = vmatmul.mubr.f32.gmra.mrb[0].mxu0 %v754
        %v1465 = vpop.f32.mrb[0].mxu0
        %v1466 = vadd.f32 %v1343, %v1465
        %v1467 = vpop.f32.mrb[0].mxu0
        %v1468 = vadd.f32 %v1347, %v1467
        %1469 = vmatprep.mubr.f32.mxu0 %v1363
        %1470 = vmatmul.mubr.f32.gmra.mrb[0].mxu0 %v756
        %v1471 = vpop.f32.mrb[0].mxu0
        %v1472 = vadd.f32 %v1343, %v1471
        %v1473 = vpop.f32.mrb[0].mxu0
        %v1474 = vadd.f32 %v1347, %v1473
        %1475 = vmatprep.mubr.f32.mxu0 %v1366
        %1476 = vmatmul.mubr.f32.gmra.mrb[0].mxu0 %v758
        %v1477 = vpop.f32.mrb[0].mxu0
        %v1478 = vadd.f32 %v1343, %v1477
        %v1479 = vpop.f32.mrb[0].mxu0
        %v1480 = vadd.f32 %v1347, %v1479
        %1481 = vmatprep.mubr.f32.mxu0 %v1369
        %1482 = vmatmul.mubr.f32.gmra.mrb[0].mxu0 %v760
        %v1483 = vpop.f32.mrb[0].mxu0
        %v1484 = vadd.f32 %v1343, %v1483
        %v1485 = vpop.f32.mrb[0].mxu0
        %v1486 = vadd.f32 %v1347, %v1485
        %1487 = vmatprep.mubr.f32.mxu0 %v1372
        %1488 = vmatmul.mubr.f32.gmra.mrb[0].mxu0 %v762
        %v1489 = vpop.f32.mrb[0].mxu0
        %v1490 = vadd.f32 %v1343, %v1489
        %v1491 = vpop.f32.mrb[0].mxu0
        %v1492 = vadd.f32 %v1347, %v1491
        %1493 = vdwg.mxu0
        %v1494 = vmul.f32 %v1448, %v1448
        %v1495 = vmul.f32 %v1454, %v1454
        %v1496 = vmul.f32 %v1460, %v1460
        %v1497 = vmul.f32 %v1466, %v1466
        %v1498 = vmul.f32 %v1472, %v1472
        %v1499 = vmul.f32 %v1478, %v1478
        %v1500 = vmul.f32 %v1484, %v1484
        %v1501 = vmul.f32 %v1490, %v1490
        %1510 = vrot.lane.b32.xlu0 %v1494, 64
        %v1511 = vpop.permute.xlu0 %1510
        %1512 = vrot.lane.b32.xlu0 %v1495, 64
        %v1513 = vpop.permute.xlu0 %1512
        %1514 = vrot.lane.b32.xlu0 %v1496, 64
        %v1515 = vpop.permute.xlu0 %1514
        %1516 = vrot.lane.b32.xlu0 %v1497, 64
        %v1517 = vpop.permute.xlu0 %1516
        %1518 = vrot.lane.b32.xlu0 %v1498, 64
        %v1519 = vpop.permute.xlu0 %1518
        %1520 = vrot.lane.b32.xlu0 %v1499, 64
        %v1521 = vpop.permute.xlu0 %1520
        %1522 = vrot.lane.b32.xlu0 %v1500, 64
        %v1523 = vpop.permute.xlu0 %1522
        %1524 = vrot.lane.b32.xlu0 %v1501, 64
        %v1525 = vpop.permute.xlu0 %1524
        %vm1534 = vcmask 523264
        %v1535 = vsel %vm1534, %v1511, 0.0
        %1536 = vadd.xlane.f32.xlu0 %v1535
        %v1537 = vpop.xlane.xlu0 %1536
        %v1538 = vsel %vm1534, %v1513, 0.0
        %1539 = vadd.xlane.f32.xlu0 %v1538
        %v1540 = vpop.xlane.xlu0 %1539
        %v1541 = vsel %vm1534, %v1515, 0.0
        %1542 = vadd.xlane.f32.xlu0 %v1541
        %v1543 = vpop.xlane.xlu0 %1542
        %v1544 = vsel %vm1534, %v1517, 0.0
        %1545 = vadd.xlane.f32.xlu0 %v1544
        %v1546 = vpop.xlane.xlu0 %1545
        %v1547 = vsel %vm1534, %v1519, 0.0
        %1548 = vadd.xlane.f32.xlu0 %v1547
        %v1549 = vpop.xlane.xlu0 %1548
        %v1550 = vsel %vm1534, %v1521, 0.0
        %1551 = vadd.xlane.f32.xlu0 %v1550
        %v1552 = vpop.xlane.xlu0 %1551
        %v1553 = vsel %vm1534, %v1523, 0.0
        %1554 = vadd.xlane.f32.xlu0 %v1553
        %v1555 = vpop.xlane.xlu0 %1554
        %v1556 = vsel %vm1534, %v1525, 0.0
        %1557 = vadd.xlane.f32.xlu0 %v1556
        %v1558 = vpop.xlane.xlu0 %1557
        %v1559 = vmul.f32 %v1537, 0.5
        %v1560 = vmul.f32 %v1540, 0.5
        %v1561 = vmul.f32 %v1543, 0.5
        %v1562 = vmul.f32 %v1546, 0.5
        %v1563 = vmul.f32 %v1549, 0.5
        %v1564 = vmul.f32 %v1552, 0.5
        %v1565 = vmul.f32 %v1555, 0.5
        %v1566 = vmul.f32 %v1558, 0.5
        %v1567 = vsub.f32 %v1450, %v1559
        %v1568 = vsub.f32 %v1456, %v1560
        %v1569 = vsub.f32 %v1462, %v1561
        %v1570 = vsub.f32 %v1468, %v1562
        %v1571 = vsub.f32 %v1474, %v1563
        %v1572 = vsub.f32 %v1480, %v1564
        %v1573 = vsub.f32 %v1486, %v1565
        %v1574 = vsub.f32 %v1492, %v1566
        %v1575 = vmul.f32 %v1567, 1.442695
        %v1576 = vpow.pop %v1575
        %v1577 = vmul.f32 %v1568, 1.442695
        %v1578 = vpow.pop %v1577
        %v1579 = vmul.f32 %v1569, 1.442695
        %v1580 = vpow.pop %v1579
        %v1581 = vmul.f32 %v1570, 1.442695
        %v1582 = vpow.pop %v1581
        %v1583 = vmul.f32 %v1571, 1.442695
        %v1584 = vpow.pop %v1583
        %v1585 = vmul.f32 %v1572, 1.442695
        %v1586 = vpow.pop %v1585
        %v1587 = vmul.f32 %v1573, 1.442695
        %v1588 = vpow.pop %v1587
        %v1589 = vmul.f32 %v1574, 1.442695
        %v1590 = vpow.pop %v1589
        %v1591 = vmul.f32 %v1576, 0.17677669
        %v1592 = vmul.f32 %v1578, 0.17677669
        %v1593 = vmul.f32 %v1580, 0.17677669
        %v1594 = vmul.f32 %v1582, 0.17677669
        %v1595 = vmul.f32 %v1584, 0.17677669
        %v1596 = vmul.f32 %v1586, 0.17677669
        %v1597 = vmul.f32 %v1588, 0.17677669
        %v1598 = vmul.f32 %v1590, 0.17677669
        %v1599 = vld [vmem:[#allocation2] sm:$0x1]
        %v1601 = vlaneseq
        %v1602 = vshrl.u32 %v1601, 7
        %v1603 = vsub.s32 0, %v1602
        %v1604 = vrot.slane %v1599, %v1603
        %v1606 = vmul.f32 %v1591, %v1604
        %v1607 = vmul.f32 %v1592, %v1604
        %v1608 = vmul.f32 %v1593, %v1604
        %v1609 = vmul.f32 %v1594, %v1604
        %v1610 = vmul.f32 %v1595, %v1604
        %v1611 = vmul.f32 %v1596, %v1604
        %v1612 = vmul.f32 %v1597, %v1604
        %v1613 = vmul.f32 %v1598, %v1604
        %vm1614 = vcmask 261120
        %v1615 = vsel %vm1614, %v1606, 0.0
        %1616 = vadd.xlane.f32.xlu0 %v1615
        %v1617 = vpop.xlane.xlu0 %1616
        %v1618 = vsel %vm1614, %v1607, 0.0
        %1619 = vadd.xlane.f32.xlu0 %v1618
        %v1620 = vpop.xlane.xlu0 %1619
        %v1621 = vsel %vm1614, %v1608, 0.0
        %1622 = vadd.xlane.f32.xlu0 %v1621
        %v1623 = vpop.xlane.xlu0 %1622
        %v1624 = vsel %vm1614, %v1609, 0.0
        %1625 = vadd.xlane.f32.xlu0 %v1624
        %v1626 = vpop.xlane.xlu0 %1625
        %v1627 = vsel %vm1614, %v1610, 0.0
        %1628 = vadd.xlane.f32.xlu0 %v1627
        %v1629 = vpop.xlane.xlu0 %1628
        %v1630 = vsel %vm1614, %v1611, 0.0
        %1631 = vadd.xlane.f32.xlu0 %v1630
        %v1632 = vpop.xlane.xlu0 %1631
        %v1633 = vsel %vm1614, %v1612, 0.0
        %1634 = vadd.xlane.f32.xlu0 %v1633
        %v1635 = vpop.xlane.xlu0 %1634
        %v1636 = vsel %vm1614, %v1613, 0.0
        %1637 = vadd.xlane.f32.xlu0 %v1636
        %v1638 = vpop.xlane.xlu0 %1637
        %v1639 = vld [vmem:[#allocation3] sm:$0xff]
        %v1640 = vld [vmem:[#allocation3 + $0x8] sm:$0xff]
        %v1641 = vld [vmem:[#allocation3 + $0x10] sm:$0xff]
        %v1642 = vld [vmem:[#allocation3 + $0x18] sm:$0xff]
        %v1644 = vsel %vm1614, %v1591, 0
        %v1647 = vsel %vm1614, %v1592, 0
        %v1650 = vsel %vm1614, %v1593, 0
        %v1653 = vsel %vm1614, %v1594, 0
        %v1656 = vsel %vm1614, %v1595, 0
        %v1659 = vsel %vm1614, %v1596, 0
        %v1662 = vsel %vm1614, %v1597, 0
        %v1665 = vsel %vm1614, %v1598, 0
        %1667 = vmatprep.subr.mxu0 0.0
        %1668 = vmatpush1.msra.mxu0 %v1639
        %1669 = vmatprep.subr.mxu0 0.0
        %1670 = vmatpush1.msra.mxu0 %v1640
        %1671 = vmatprep.subr.mxu0 0.0
        %1672 = vmatpush1.msra.mxu0 %v1641
        %1673 = vmatprep.subr.mxu0 0.0
        %1674 = vmatpush1.msra.mxu0 %v1642
        %1675 = vmatprep.subr.mxu0 0.0
        %1676 = vmatpush1.msra.mxu0 0.0
        %1677 = vmatprep.subr.mxu0 0.0
        %1678 = vmatpush1.msra.mxu0 0.0
        %1679 = vmatprep.subr.mxu0 0.0
        %1680 = vmatpush1.msra.mxu0 0.0
        %1681 = vmatprep.subr.mxu0 0.0
        %1682 = vmatpush1.msra.mxu0 0.0
        %1683 = vmatprep.subr.mxu0 0.0
        %1684 = vmatpush1.msra.mxu0 0.0
        %1685 = vmatprep.subr.mxu0 0.0
        %1686 = vmatpush1.msra.mxu0 0.0
        %1687 = vmatprep.subr.mxu0 0.0
        %1688 = vmatpush1.msra.mxu0 0.0
        %1689 = vmatprep.subr.mxu0 0.0
        %1690 = vmatpush1.msra.mxu0 0.0
        %1691 = vmatprep.subr.mxu0 0.0
        %1692 = vmatpush1.msra.mxu0 0.0
        %1693 = vmatprep.subr.mxu0 0.0
        %1694 = vmatpush1.msra.mxu0 0.0
        %1695 = vmatprep.subr.mxu0 0.0
        %1696 = vmatpush1.msra.mxu0 0.0
        %1697 = vmatprep.subr.mxu0 0.0
        %1698 = vmatpush1.msra.mxu0 0.0
        %1699 = vmatprep.subr.mxu0 0.0
        %1700 = vmatpush1.msra.mxu0 0.0
        %1701 = vmatprep.subr.mxu0 0.0
        %1702 = vmatpush1.msra.mxu0 0.0
        %1703 = vmatprep.subr.mxu0 0.0
        %1704 = vmatpush1.msra.mxu0 0.0
        %1705 = vmatprep.subr.mxu0 0.0
        %1706 = vmatpush1.msra.mxu0 0.0
        %1707 = vmatprep.subr.mxu0 0.0
        %1708 = vmatpush1.msra.mxu0 0.0
        %1709 = vmatprep.subr.mxu0 0.0
        %1710 = vmatpush1.msra.mxu0 0.0
        %1711 = vmatprep.subr.mxu0 0.0
        %1712 = vmatpush1.msra.mxu0 0.0
        %1713 = vmatprep.subr.mxu0 0.0
        %1714 = vmatpush1.msra.mxu0 0.0
        %1715 = vmatprep.subr.mxu0 0.0
        %1716 = vmatpush1.msra.mxu0 0.0
        %1717 = vmatprep.subr.mxu0 0.0
        %1718 = vmatpush1.msra.mxu0 0.0
        %1719 = vmatprep.subr.mxu0 0.0
        %1720 = vmatpush1.msra.mxu0 0.0
        %1721 = vmatprep.subr.mxu0 0.0
        %1722 = vmatpush1.msra.mxu0 0.0
        %1723 = vmatprep.subr.mxu0 0.0
        %1724 = vmatpush1.msra.mxu0 0.0
        %1725 = vmatprep.subr.mxu0 0.0
        %1726 = vmatpush1.msra.mxu0 0.0
        %1727 = vmatprep.subr.mxu0 0.0
        %1728 = vmatpush1.msra.mxu0 0.0
        %1729 = vmatprep.subr.mxu0 0.0
        %1730 = vmatpush1.msra.mxu0 0.0
        %1731 = vmatprep.mubr.f32.mxu0 0.0
        %1732 = vmatmul.mubr.f32.gmra.mrb[0].mxu0 %v1644
        %v1733 = vpop.f32.mrb[0].mxu0
        %v1734 = vadd.f32 0.0, %v1733
        %v1735 = vpop.f32.mrb[0].mxu0
        %1736 = vmatprep.mubr.f32.mxu0 0.0
        %1737 = vmatmul.mubr.f32.gmra.mrb[0].mxu0 %v1647
        %v1738 = vpop.f32.mrb[0].mxu0
        %v1739 = vadd.f32 0.0, %v1738
        %v1740 = vpop.f32.mrb[0].mxu0
        %1741 = vmatprep.mubr.f32.mxu0 0.0
        %1742 = vmatmul.mubr.f32.gmra.mrb[0].mxu0 %v1650
        %v1743 = vpop.f32.mrb[0].mxu0
        %v1744 = vadd.f32 0.0, %v1743
        %v1745 = vpop.f32.mrb[0].mxu0
        %1746 = vmatprep.mubr.f32.mxu0 0.0
        %1747 = vmatmul.mubr.f32.gmra.mrb[0].mxu0 %v1653
        %v1748 = vpop.f32.mrb[0].mxu0
        %v1749 = vadd.f32 0.0, %v1748
        %v1750 = vpop.f32.mrb[0].mxu0
        %1751 = vmatprep.mubr.f32.mxu0 0.0
        %1752 = vmatmul.mubr.f32.gmra.mrb[0].mxu0 %v1656
        %v1753 = vpop.f32.mrb[0].mxu0
        %v1754 = vadd.f32 0.0, %v1753
        %v1755 = vpop.f32.mrb[0].mxu0
        %1756 = vmatprep.mubr.f32.mxu0 0.0
        %1757 = vmatmul.mubr.f32.gmra.mrb[0].mxu0 %v1659
        %v1758 = vpop.f32.mrb[0].mxu0
        %v1759 = vadd.f32 0.0, %v1758
        %v1760 = vpop.f32.mrb[0].mxu0
        %1761 = vmatprep.mubr.f32.mxu0 0.0
        %1762 = vmatmul.mubr.f32.gmra.mrb[0].mxu0 %v1662
        %v1763 = vpop.f32.mrb[0].mxu0
        %v1764 = vadd.f32 0.0, %v1763
        %v1765 = vpop.f32.mrb[0].mxu0
        %1766 = vmatprep.mubr.f32.mxu0 0.0
        %1767 = vmatmul.mubr.f32.gmra.mrb[0].mxu0 %v1665
        %v1768 = vpop.f32.mrb[0].mxu0
        %v1769 = vadd.f32 0.0, %v1768
        %v1770 = vpop.f32.mrb[0].mxu0
        %1771 = vdwg.mxu0
        %v1772 = vadd.f32 %v1617, 1e-08
        %v1773 = vadd.f32 %v1620, 1e-08
        %v1774 = vadd.f32 %v1623, 1e-08
        %v1775 = vadd.f32 %v1626, 1e-08
        %v1776 = vadd.f32 %v1629, 1e-08
        %v1777 = vadd.f32 %v1632, 1e-08
        %v1778 = vadd.f32 %v1635, 1e-08
        %v1779 = vadd.f32 %v1638, 1e-08
        %v1780 = vrcp.pop %v1772
        %v1781 = vrcp.pop %v1773
        %v1782 = vrcp.pop %v1774
        %v1783 = vrcp.pop %v1775
        %v1784 = vrcp.pop %v1776
        %v1785 = vrcp.pop %v1777
        %v1786 = vrcp.pop %v1778
        %v1787 = vrcp.pop %v1779
        %v1788 = vmul.f32 %v1734, %v1780
        %v1789 = vmul.f32 %v1739, %v1781
        %v1790 = vmul.f32 %v1744, %v1782
        %v1791 = vmul.f32 %v1749, %v1783
        %v1792 = vmul.f32 %v1754, %v1784
        %v1793 = vmul.f32 %v1759, %v1785
        %v1794 = vmul.f32 %v1764, %v1786
        %v1795 = vmul.f32 %v1769, %v1787
        %v1796 = vld [vmem:[%s7] sm:$0xff]
        %v1797 = vld [vmem:[%s7 + $0x8] sm:$0xff]
        %v1798 = vld [vmem:[%s7 + $0x10] sm:$0xff]
        %v1799 = vld [vmem:[%s7 + $0x18] sm:$0xff]
        %v1800 = vld [vmem:[%s7 + $0x20] sm:$0xff]
        %v1801 = vld [vmem:[%s7 + $0x28] sm:$0xff]
        %v1802 = vld [vmem:[%s7 + $0x30] sm:$0xff]
        %v1803 = vld [vmem:[%s7 + $0x38] sm:$0xff]
        %v1804 = vld [vmem:[%s8] sm:$0x1]
        %v1806 = vlaneseq
        %v1807 = vshrl.u32 %v1806, 7
        %v1808 = vsub.s32 0, %v1807
        %v1809 = vrot.slane %v1804, %v1808
        %v1812 = vsel %vm1534, %v1788, 0
        %v1815 = vsel %vm1534, %v1789, 0
        %v1818 = vsel %vm1534, %v1790, 0
        %v1821 = vsel %vm1534, %v1791, 0
        %v1824 = vsel %vm1534, %v1792, 0
        %v1827 = vsel %vm1534, %v1793, 0
        %v1830 = vsel %vm1534, %v1794, 0
        %v1833 = vsel %vm1534, %v1795, 0
        %1835 = vmatprep.subr.mxu0 0.0
        %1836 = vmatpush1.msra.mxu0 %v1796
        %1837 = vmatprep.subr.mxu0 0.0
        %1838 = vmatpush1.msra.mxu0 %v1797
        %1839 = vmatprep.subr.mxu0 0.0
        %1840 = vmatpush1.msra.mxu0 %v1798
        %1841 = vmatprep.subr.mxu0 0.0
        %1842 = vmatpush1.msra.mxu0 %v1799
        %1843 = vmatprep.subr.mxu0 0.0
        %1844 = vmatpush1.msra.mxu0 %v1800
        %1845 = vmatprep.subr.mxu0 0.0
        %1846 = vmatpush1.msra.mxu0 %v1801
        %1847 = vmatprep.subr.mxu0 0.0
        %1848 = vmatpush1.msra.mxu0 %v1802
        %1849 = vmatprep.subr.mxu0 0.0
        %1850 = vmatpush1.msra.mxu0 %v1803
        %1851 = vmatprep.subr.mxu0 0.0
        %1852 = vmatpush1.msra.mxu0 0.0
        %1853 = vmatprep.subr.mxu0 0.0
        %1854 = vmatpush1.msra.mxu0 0.0
        %1855 = vmatprep.subr.mxu0 0.0
        %1856 = vmatpush1.msra.mxu0 0.0
        %1857 = vmatprep.subr.mxu0 0.0
        %1858 = vmatpush1.msra.mxu0 0.0
        %1859 = vmatprep.subr.mxu0 0.0
        %1860 = vmatpush1.msra.mxu0 0.0
        %1861 = vmatprep.subr.mxu0 0.0
        %1862 = vmatpush1.msra.mxu0 0.0
        %1863 = vmatprep.subr.mxu0 0.0
        %1864 = vmatpush1.msra.mxu0 0.0
        %1865 = vmatprep.subr.mxu0 0.0
        %1866 = vmatpush1.msra.mxu0 0.0
        %1867 = vmatprep.subr.mxu0 0.0
        %1868 = vmatpush1.msra.mxu0 0.0
        %1869 = vmatprep.subr.mxu0 0.0
        %1870 = vmatpush1.msra.mxu0 0.0
        %1871 = vmatprep.subr.mxu0 0.0
        %1872 = vmatpush1.msra.mxu0 0.0
        %1873 = vmatprep.subr.mxu0 0.0
        %1874 = vmatpush1.msra.mxu0 0.0
        %1875 = vmatprep.subr.mxu0 0.0
        %1876 = vmatpush1.msra.mxu0 0.0
        %1877 = vmatprep.subr.mxu0 0.0
        %1878 = vmatpush1.msra.mxu0 0.0
        %1879 = vmatprep.subr.mxu0 0.0
        %1880 = vmatpush1.msra.mxu0 0.0
        %1881 = vmatprep.subr.mxu0 0.0
        %1882 = vmatpush1.msra.mxu0 0.0
        %1883 = vmatprep.subr.mxu0 0.0
        %1884 = vmatpush1.msra.mxu0 0.0
        %1885 = vmatprep.subr.mxu0 0.0
        %1886 = vmatpush1.msra.mxu0 0.0
        %1887 = vmatprep.subr.mxu0 0.0
        %1888 = vmatpush1.msra.mxu0 0.0
        %1889 = vmatprep.subr.mxu0 0.0
        %1890 = vmatpush1.msra.mxu0 0.0
        %1891 = vmatprep.subr.mxu0 0.0
        %1892 = vmatpush1.msra.mxu0 0.0
        %1893 = vmatprep.subr.mxu0 0.0
        %1894 = vmatpush1.msra.mxu0 0.0
        %1895 = vmatprep.subr.mxu0 0.0
        %1896 = vmatpush1.msra.mxu0 0.0
        %1897 = vmatprep.subr.mxu0 0.0
        %1898 = vmatpush1.msra.mxu0 0.0
        %1899 = vmatprep.mubr.f32.mxu0 0.0
        %1900 = vmatmul.mubr.f32.gmra.mrb[0].mxu0 %v1812
        %v1901 = vpop.f32.mrb[0].mxu0
        %v1902 = vadd.f32 %v1809, %v1901
        %v1903 = vpop.f32.mrb[0].mxu0
        %1904 = vmatprep.mubr.f32.mxu0 0.0
        %1905 = vmatmul.mubr.f32.gmra.mrb[0].mxu0 %v1815
        %v1906 = vpop.f32.mrb[0].mxu0
        %v1907 = vadd.f32 %v1809, %v1906
        %v1908 = vpop.f32.mrb[0].mxu0
        %1909 = vmatprep.mubr.f32.mxu0 0.0
        %1910 = vmatmul.mubr.f32.gmra.mrb[0].mxu0 %v1818
        %v1911 = vpop.f32.mrb[0].mxu0
        %v1912 = vadd.f32 %v1809, %v1911
        %v1913 = vpop.f32.mrb[0].mxu0
        %1914 = vmatprep.mubr.f32.mxu0 0.0
        %1915 = vmatmul.mubr.f32.gmra.mrb[0].mxu0 %v1821
        %v1916 = vpop.f32.mrb[0].mxu0
        %v1917 = vadd.f32 %v1809, %v1916
        %v1918 = vpop.f32.mrb[0].mxu0
        %1919 = vmatprep.mubr.f32.mxu0 0.0
        %1920 = vmatmul.mubr.f32.gmra.mrb[0].mxu0 %v1824
        %v1921 = vpop.f32.mrb[0].mxu0
        %v1922 = vadd.f32 %v1809, %v1921
        %v1923 = vpop.f32.mrb[0].mxu0
        %1924 = vmatprep.mubr.f32.mxu0 0.0
        %1925 = vmatmul.mubr.f32.gmra.mrb[0].mxu0 %v1827
        %v1926 = vpop.f32.mrb[0].mxu0
        %v1927 = vadd.f32 %v1809, %v1926
        %v1928 = vpop.f32.mrb[0].mxu0
        %1929 = vmatprep.mubr.f32.mxu0 0.0
        %1930 = vmatmul.mubr.f32.gmra.mrb[0].mxu0 %v1830
        %v1931 = vpop.f32.mrb[0].mxu0
        %v1932 = vadd.f32 %v1809, %v1931
        %v1933 = vpop.f32.mrb[0].mxu0
        %1934 = vmatprep.mubr.f32.mxu0 0.0
        %1935 = vmatmul.mubr.f32.gmra.mrb[0].mxu0 %v1833
        %v1936 = vpop.f32.mrb[0].mxu0
        %v1937 = vadd.f32 %v1809, %v1936
        %v1938 = vpop.f32.mrb[0].mxu0
        %1939 = vdwg.mxu0
        %v1940 = vadd.f32 %v1448, %v1902
        %v1941 = vadd.f32 %v1454, %v1907
        %v1942 = vadd.f32 %v1460, %v1912
        %v1943 = vadd.f32 %v1466, %v1917
        %v1944 = vadd.f32 %v1472, %v1922
        %v1945 = vadd.f32 %v1478, %v1927
        %v1946 = vadd.f32 %v1484, %v1932
        %v1947 = vadd.f32 %v1490, %v1937
        %v1948 = vsel %vm1534, %v1940, 0.0
        %1949 = vadd.xlane.f32.xlu0 %v1948
        %v1950 = vpop.xlane.xlu0 %1949
        %v1951 = vsel %vm1534, %v1941, 0.0
        %1952 = vadd.xlane.f32.xlu0 %v1951
        %v1953 = vpop.xlane.xlu0 %1952
        %v1954 = vsel %vm1534, %v1942, 0.0
        %1955 = vadd.xlane.f32.xlu0 %v1954
        %v1956 = vpop.xlane.xlu0 %1955
        %v1957 = vsel %vm1534, %v1943, 0.0
        %1958 = vadd.xlane.f32.xlu0 %v1957
        %v1959 = vpop.xlane.xlu0 %1958
        %v1960 = vsel %vm1534, %v1944, 0.0
        %1961 = vadd.xlane.f32.xlu0 %v1960
        %v1962 = vpop.xlane.xlu0 %1961
        %v1963 = vsel %vm1534, %v1945, 0.0
        %1964 = vadd.xlane.f32.xlu0 %v1963
        %v1965 = vpop.xlane.xlu0 %1964
        %v1966 = vsel %vm1534, %v1946, 0.0
        %1967 = vadd.xlane.f32.xlu0 %v1966
        %v1968 = vpop.xlane.xlu0 %1967
        %v1969 = vsel %vm1534, %v1947, 0.0
        %1970 = vadd.xlane.f32.xlu0 %v1969
        %v1971 = vpop.xlane.xlu0 %1970
        %v1972 = vrcp.pop 64.0
        %v1973 = vmul.f32 %v1950, %v1972
        %v1974 = vmul.f32 %v1953, %v1972
        %v1975 = vmul.f32 %v1956, %v1972
        %v1976 = vmul.f32 %v1959, %v1972
        %v1977 = vmul.f32 %v1962, %v1972
        %v1978 = vmul.f32 %v1965, %v1972
        %v1979 = vmul.f32 %v1968, %v1972
        %v1980 = vmul.f32 %v1971, %v1972
        %v1981 = vsub.f32 %v1940, %v1973
        %v1982 = vsub.f32 %v1941, %v1974
        %v1983 = vsub.f32 %v1942, %v1975
        %v1984 = vsub.f32 %v1943, %v1976
        %v1985 = vsub.f32 %v1944, %v1977
        %v1986 = vsub.f32 %v1945, %v1978
        %v1987 = vsub.f32 %v1946, %v1979
        %v1988 = vsub.f32 %v1947, %v1980
        %v1989 = vmul.f32 %v1981, %v1981
        %v1990 = vmul.f32 %v1982, %v1982
        %v1991 = vmul.f32 %v1983, %v1983
        %v1992 = vmul.f32 %v1984, %v1984
        %v1993 = vmul.f32 %v1985, %v1985
        %v1994 = vmul.f32 %v1986, %v1986
        %v1995 = vmul.f32 %v1987, %v1987
        %v1996 = vmul.f32 %v1988, %v1988
        %v1997 = vsel %vm1534, %v1989, 0.0
        %1998 = vadd.xlane.f32.xlu0 %v1997
        %v1999 = vpop.xlane.xlu0 %1998
        %v2000 = vsel %vm1534, %v1990, 0.0
        %2001 = vadd.xlane.f32.xlu0 %v2000
        %v2002 = vpop.xlane.xlu0 %2001
        %v2003 = vsel %vm1534, %v1991, 0.0
        %2004 = vadd.xlane.f32.xlu0 %v2003
        %v2005 = vpop.xlane.xlu0 %2004
        %v2006 = vsel %vm1534, %v1992, 0.0
        %2007 = vadd.xlane.f32.xlu0 %v2006
        %v2008 = vpop.xlane.xlu0 %2007
        %v2009 = vsel %vm1534, %v1993, 0.0
        %2010 = vadd.xlane.f32.xlu0 %v2009
        %v2011 = vpop.xlane.xlu0 %2010
        %v2012 = vsel %vm1534, %v1994, 0.0
        %2013 = vadd.xlane.f32.xlu0 %v2012
        %v2014 = vpop.xlane.xlu0 %2013
        %v2015 = vsel %vm1534, %v1995, 0.0
        %2016 = vadd.xlane.f32.xlu0 %v2015
        %v2017 = vpop.xlane.xlu0 %2016
        %v2018 = vsel %vm1534, %v1996, 0.0
        %2019 = vadd.xlane.f32.xlu0 %v2018
        %v2020 = vpop.xlane.xlu0 %2019
        %v2021 = vmul.f32 %v1999, %v1972
        %v2022 = vmul.f32 %v2002, %v1972
        %v2023 = vmul.f32 %v2005, %v1972
        %v2024 = vmul.f32 %v2008, %v1972
        %v2025 = vmul.f32 %v2011, %v1972
        %v2026 = vmul.f32 %v2014, %v1972
        %v2027 = vmul.f32 %v2017, %v1972
        %v2028 = vmul.f32 %v2020, %v1972
        %v2029 = vadd.f32 %v2021, 1e-05
        %v2030 = vadd.f32 %v2022, 1e-05
        %v2031 = vadd.f32 %v2023, 1e-05
        %v2032 = vadd.f32 %v2024, 1e-05
        %v2033 = vadd.f32 %v2025, 1e-05
        %v2034 = vadd.f32 %v2026, 1e-05
        %v2035 = vadd.f32 %v2027, 1e-05
        %v2036 = vadd.f32 %v2028, 1e-05
        %v2037 = vrsqrt.pop %v2029
        %v2038 = vrsqrt.pop %v2030
        %v2039 = vrsqrt.pop %v2031
        %v2040 = vrsqrt.pop %v2032
        %v2041 = vrsqrt.pop %v2033
        %v2042 = vrsqrt.pop %v2034
        %v2043 = vrsqrt.pop %v2035
        %v2044 = vrsqrt.pop %v2036
        %v2045 = vmul.f32 %v1981, %v2037
        %v2046 = vmul.f32 %v1982, %v2038
        %v2047 = vmul.f32 %v1983, %v2039
        %v2048 = vmul.f32 %v1984, %v2040
        %v2049 = vmul.f32 %v1985, %v2041
        %v2050 = vmul.f32 %v1986, %v2042
        %v2051 = vmul.f32 %v1987, %v2043
        %v2052 = vmul.f32 %v1988, %v2044
        %v2053 = vld [vmem:[%s9] sm:$0x1]
        %v2055 = vlaneseq
        %v2056 = vshrl.u32 %v2055, 7
        %v2057 = vsub.s32 0, %v2056
        %v2058 = vrot.slane %v2053, %v2057
        %v2060 = vmul.f32 %v2045, %v2058
        %v2061 = vmul.f32 %v2046, %v2058
        %v2062 = vmul.f32 %v2047, %v2058
        %v2063 = vmul.f32 %v2048, %v2058
        %v2064 = vmul.f32 %v2049, %v2058
        %v2065 = vmul.f32 %v2050, %v2058
        %v2066 = vmul.f32 %v2051, %v2058
        %v2067 = vmul.f32 %v2052, %v2058
        %v2068 = vld [vmem:[%s10] sm:$0x1]
        %v2070 = vlaneseq
        %v2071 = vshrl.u32 %v2070, 7
        %v2072 = vsub.s32 0, %v2071
        %v2073 = vrot.slane %v2068, %v2072
        %v2075 = vadd.f32 %v2060, %v2073
        %v2076 = vadd.f32 %v2061, %v2073
        %v2077 = vadd.f32 %v2062, %v2073
        %v2078 = vadd.f32 %v2063, %v2073
        %v2079 = vadd.f32 %v2064, %v2073
        %v2080 = vadd.f32 %v2065, %v2073
        %v2081 = vadd.f32 %v2066, %v2073
        %v2082 = vadd.f32 %v2067, %v2073
        %v2083 = vld [vmem:[%s11] sm:$0xff]
        %v2084 = vld [vmem:[%s11 + $0x8] sm:$0xff]
        %v2085 = vld [vmem:[%s11 + $0x10] sm:$0xff]
        %v2086 = vld [vmem:[%s11 + $0x18] sm:$0xff]
        %v2087 = vld [vmem:[%s11 + $0x20] sm:$0xff]
        %v2088 = vld [vmem:[%s11 + $0x28] sm:$0xff]
        %v2089 = vld [vmem:[%s11 + $0x30] sm:$0xff]
        %v2090 = vld [vmem:[%s11 + $0x38] sm:$0xff]
        %v2091 = vld [vmem:[%s12] sm:$0x1]
        %v2093 = vlaneseq
        %v2094 = vshrl.u32 %v2093, 7
        %v2095 = vsub.s32 0, %v2094
        %v2096 = vrot.slane %v2091, %v2095
        %v2099 = vsel %vm1534, %v2075, 0
        %v2102 = vsel %vm1534, %v2076, 0
        %v2105 = vsel %vm1534, %v2077, 0
        %v2108 = vsel %vm1534, %v2078, 0
        %v2111 = vsel %vm1534, %v2079, 0
        %v2114 = vsel %vm1534, %v2080, 0
        %v2117 = vsel %vm1534, %v2081, 0
        %v2120 = vsel %vm1534, %v2082, 0
        %2122 = vmatprep.subr.mxu0 0.0
        %2123 = vmatpush1.msra.mxu0 %v2083
        %2124 = vmatprep.subr.mxu0 0.0
        %2125 = vmatpush1.msra.mxu0 %v2084
        %2126 = vmatprep.subr.mxu0 0.0
        %2127 = vmatpush1.msra.mxu0 %v2085
        %2128 = vmatprep.subr.mxu0 0.0
        %2129 = vmatpush1.msra.mxu0 %v2086
        %2130 = vmatprep.subr.mxu0 0.0
        %2131 = vmatpush1.msra.mxu0 %v2087
        %2132 = vmatprep.subr.mxu0 0.0
        %2133 = vmatpush1.msra.mxu0 %v2088
        %2134 = vmatprep.subr.mxu0 0.0
        %2135 = vmatpush1.msra.mxu0 %v2089
        %2136 = vmatprep.subr.mxu0 0.0
        %2137 = vmatpush1.msra.mxu0 %v2090
        %2138 = vmatprep.subr.mxu0 0.0
        %2139 = vmatpush1.msra.mxu0 0.0
        %2140 = vmatprep.subr.mxu0 0.0
        %2141 = vmatpush1.msra.mxu0 0.0
        %2142 = vmatprep.subr.mxu0 0.0
        %2143 = vmatpush1.msra.mxu0 0.0
        %2144 = vmatprep.subr.mxu0 0.0
        %2145 = vmatpush1.msra.mxu0 0.0
        %2146 = vmatprep.subr.mxu0 0.0
        %2147 = vmatpush1.msra.mxu0 0.0
        %2148 = vmatprep.subr.mxu0 0.0
        %2149 = vmatpush1.msra.mxu0 0.0
        %2150 = vmatprep.subr.mxu0 0.0
        %2151 = vmatpush1.msra.mxu0 0.0
        %2152 = vmatprep.subr.mxu0 0.0
        %2153 = vmatpush1.msra.mxu0 0.0
        %2154 = vmatprep.subr.mxu0 0.0
        %2155 = vmatpush1.msra.mxu0 0.0
        %2156 = vmatprep.subr.mxu0 0.0
        %2157 = vmatpush1.msra.mxu0 0.0
        %2158 = vmatprep.subr.mxu0 0.0
        %2159 = vmatpush1.msra.mxu0 0.0
        %2160 = vmatprep.subr.mxu0 0.0
        %2161 = vmatpush1.msra.mxu0 0.0
        %2162 = vmatprep.subr.mxu0 0.0
        %2163 = vmatpush1.msra.mxu0 0.0
        %2164 = vmatprep.subr.mxu0 0.0
        %2165 = vmatpush1.msra.mxu0 0.0
        %2166 = vmatprep.subr.mxu0 0.0
        %2167 = vmatpush1.msra.mxu0 0.0
        %2168 = vmatprep.subr.mxu0 0.0
        %2169 = vmatpush1.msra.mxu0 0.0
        %2170 = vmatprep.subr.mxu0 0.0
        %2171 = vmatpush1.msra.mxu0 0.0
        %2172 = vmatprep.subr.mxu0 0.0
        %2173 = vmatpush1.msra.mxu0 0.0
        %2174 = vmatprep.subr.mxu0 0.0
        %2175 = vmatpush1.msra.mxu0 0.0
        %2176 = vmatprep.subr.mxu0 0.0
        %2177 = vmatpush1.msra.mxu0 0.0
        %2178 = vmatprep.subr.mxu0 0.0
        %2179 = vmatpush1.msra.mxu0 0.0
        %2180 = vmatprep.subr.mxu0 0.0
        %2181 = vmatpush1.msra.mxu0 0.0
        %2182 = vmatprep.subr.mxu0 0.0
        %2183 = vmatpush1.msra.mxu0 0.0
        %2184 = vmatprep.subr.mxu0 0.0
        %2185 = vmatpush1.msra.mxu0 0.0
        %2186 = vmatprep.mubr.f32.mxu0 0.0
        %2187 = vmatmul.mubr.f32.gmra.mrb[0].mxu0 %v2099
        %v2188 = vpop.f32.mrb[0].mxu0
        %v2189 = vadd.f32 %v2096, %v2188
        %v2190 = vpop.f32.mrb[0].mxu0
        %2191 = vmatprep.mubr.f32.mxu0 0.0
        %2192 = vmatmul.mubr.f32.gmra.mrb[0].mxu0 %v2102
        %v2193 = vpop.f32.mrb[0].mxu0
        %v2194 = vadd.f32 %v2096, %v2193
        %v2195 = vpop.f32.mrb[0].mxu0
        %2196 = vmatprep.mubr.f32.mxu0 0.0
        %2197 = vmatmul.mubr.f32.gmra.mrb[0].mxu0 %v2105
        %v2198 = vpop.f32.mrb[0].mxu0
        %v2199 = vadd.f32 %v2096, %v2198
        %v2200 = vpop.f32.mrb[0].mxu0
        %2201 = vmatprep.mubr.f32.mxu0 0.0
        %2202 = vmatmul.mubr.f32.gmra.mrb[0].mxu0 %v2108
        %v2203 = vpop.f32.mrb[0].mxu0
        %v2204 = vadd.f32 %v2096, %v2203
        %v2205 = vpop.f32.mrb[0].mxu0
        %2206 = vmatprep.mubr.f32.mxu0 0.0
        %2207 = vmatmul.mubr.f32.gmra.mrb[0].mxu0 %v2111
        %v2208 = vpop.f32.mrb[0].mxu0
        %v2209 = vadd.f32 %v2096, %v2208
        %v2210 = vpop.f32.mrb[0].mxu0
        %2211 = vmatprep.mubr.f32.mxu0 0.0
        %2212 = vmatmul.mubr.f32.gmra.mrb[0].mxu0 %v2114
        %v2213 = vpop.f32.mrb[0].mxu0
        %v2214 = vadd.f32 %v2096, %v2213
        %v2215 = vpop.f32.mrb[0].mxu0
        %2216 = vmatprep.mubr.f32.mxu0 0.0
        %2217 = vmatmul.mubr.f32.gmra.mrb[0].mxu0 %v2117
        %v2218 = vpop.f32.mrb[0].mxu0
        %v2219 = vadd.f32 %v2096, %v2218
        %v2220 = vpop.f32.mrb[0].mxu0
        %2221 = vmatprep.mubr.f32.mxu0 0.0
        %2222 = vmatmul.mubr.f32.gmra.mrb[0].mxu0 %v2120
        %v2223 = vpop.f32.mrb[0].mxu0
        %v2224 = vadd.f32 %v2096, %v2223
        %v2225 = vpop.f32.mrb[0].mxu0
        %2226 = vdwg.mxu0
        %v2227 = vmul.f32 %v2189, 0.5
        %v2228 = vmul.f32 %v2194, 0.5
        %v2229 = vmul.f32 %v2199, 0.5
        %v2230 = vmul.f32 %v2204, 0.5
        %v2231 = vmul.f32 %v2209, 0.5
        %v2232 = vmul.f32 %v2214, 0.5
        %v2233 = vmul.f32 %v2219, 0.5
        %v2234 = vmul.f32 %v2224, 0.5
        %v2235 = vmul.f32 %v2189, 0.70710677
        %v2236 = vmul.f32 %v2194, 0.70710677
        %v2237 = vmul.f32 %v2199, 0.70710677
        %v2238 = vmul.f32 %v2204, 0.70710677
        %v2239 = vmul.f32 %v2209, 0.70710677
        %v2240 = vmul.f32 %v2214, 0.70710677
        %v2241 = vmul.f32 %v2219, 0.70710677
        %v2242 = vmul.f32 %v2224, 0.70710677
        %v2243 = verf.f32.pop %v2235
        %v2244 = verf.f32.pop %v2236
        %v2245 = verf.f32.pop %v2237
        %v2246 = verf.f32.pop %v2238
        %v2247 = verf.f32.pop %v2239
        %v2248 = verf.f32.pop %v2240
        %v2249 = verf.f32.pop %v2241
        %v2250 = verf.f32.pop %v2242
        %v2251 = vadd.f32 %v2243, 1.0
        %v2252 = vadd.f32 %v2244, 1.0
        %v2253 = vadd.f32 %v2245, 1.0
        %v2254 = vadd.f32 %v2246, 1.0
        %v2255 = vadd.f32 %v2247, 1.0
        %v2256 = vadd.f32 %v2248, 1.0
        %v2257 = vadd.f32 %v2249, 1.0
        %v2258 = vadd.f32 %v2250, 1.0
        %v2259 = vmul.f32 %v2227, %v2251
        %v2260 = vmul.f32 %v2228, %v2252
        %v2261 = vmul.f32 %v2229, %v2253
        %v2262 = vmul.f32 %v2230, %v2254
        %v2263 = vmul.f32 %v2231, %v2255
        %v2264 = vmul.f32 %v2232, %v2256
        %v2265 = vmul.f32 %v2233, %v2257
        %v2266 = vmul.f32 %v2234, %v2258
        %v2267 = vld [vmem:[%s13] sm:$0xff]
        %v2268 = vld [vmem:[%s13 + $0x8] sm:$0xff]
        %v2269 = vld [vmem:[%s13 + $0x10] sm:$0xff]
        %v2270 = vld [vmem:[%s13 + $0x18] sm:$0xff]
        %v2271 = vld [vmem:[%s13 + $0x20] sm:$0xff]
        %v2272 = vld [vmem:[%s13 + $0x28] sm:$0xff]
        %v2273 = vld [vmem:[%s13 + $0x30] sm:$0xff]
        %v2274 = vld [vmem:[%s13 + $0x38] sm:$0xff]
        %v2275 = vld [vmem:[%s14] sm:$0x1]
        %v2277 = vlaneseq
        %v2278 = vshrl.u32 %v2277, 7
        %v2279 = vsub.s32 0, %v2278
        %v2280 = vrot.slane %v2275, %v2279
        %v2283 = vsel %vm1534, %v2259, 0
        %v2286 = vsel %vm1534, %v2260, 0
        %v2289 = vsel %vm1534, %v2261, 0
        %v2292 = vsel %vm1534, %v2262, 0
        %v2295 = vsel %vm1534, %v2263, 0
        %v2298 = vsel %vm1534, %v2264, 0
        %v2301 = vsel %vm1534, %v2265, 0
        %v2304 = vsel %vm1534, %v2266, 0
        %2306 = vmatprep.subr.mxu0 0.0
        %2307 = vmatpush1.msra.mxu0 %v2267
        %2308 = vmatprep.subr.mxu0 0.0
        %2309 = vmatpush1.msra.mxu0 %v2268
        %2310 = vmatprep.subr.mxu0 0.0
        %2311 = vmatpush1.msra.mxu0 %v2269
        %2312 = vmatprep.subr.mxu0 0.0
        %2313 = vmatpush1.msra.mxu0 %v2270
        %2314 = vmatprep.subr.mxu0 0.0
        %2315 = vmatpush1.msra.mxu0 %v2271
        %2316 = vmatprep.subr.mxu0 0.0
        %2317 = vmatpush1.msra.mxu0 %v2272
        %2318 = vmatprep.subr.mxu0 0.0
        %2319 = vmatpush1.msra.mxu0 %v2273
        %2320 = vmatprep.subr.mxu0 0.0
        %2321 = vmatpush1.msra.mxu0 %v2274
        %2322 = vmatprep.subr.mxu0 0.0
        %2323 = vmatpush1.msra.mxu0 0.0
        %2324 = vmatprep.subr.mxu0 0.0
        %2325 = vmatpush1.msra.mxu0 0.0
        %2326 = vmatprep.subr.mxu0 0.0
        %2327 = vmatpush1.msra.mxu0 0.0
        %2328 = vmatprep.subr.mxu0 0.0
        %2329 = vmatpush1.msra.mxu0 0.0
        %2330 = vmatprep.subr.mxu0 0.0
        %2331 = vmatpush1.msra.mxu0 0.0
        %2332 = vmatprep.subr.mxu0 0.0
        %2333 = vmatpush1.msra.mxu0 0.0
        %2334 = vmatprep.subr.mxu0 0.0
        %2335 = vmatpush1.msra.mxu0 0.0
        %2336 = vmatprep.subr.mxu0 0.0
        %2337 = vmatpush1.msra.mxu0 0.0
        %2338 = vmatprep.subr.mxu0 0.0
        %2339 = vmatpush1.msra.mxu0 0.0
        %2340 = vmatprep.subr.mxu0 0.0
        %2341 = vmatpush1.msra.mxu0 0.0
        %2342 = vmatprep.subr.mxu0 0.0
        %2343 = vmatpush1.msra.mxu0 0.0
        %2344 = vmatprep.subr.mxu0 0.0
        %2345 = vmatpush1.msra.mxu0 0.0
        %2346 = vmatprep.subr.mxu0 0.0
        %2347 = vmatpush1.msra.mxu0 0.0
        %2348 = vmatprep.subr.mxu0 0.0
        %2349 = vmatpush1.msra.mxu0 0.0
        %2350 = vmatprep.subr.mxu0 0.0
        %2351 = vmatpush1.msra.mxu0 0.0
        %2352 = vmatprep.subr.mxu0 0.0
        %2353 = vmatpush1.msra.mxu0 0.0
        %2354 = vmatprep.subr.mxu0 0.0
        %2355 = vmatpush1.msra.mxu0 0.0
        %2356 = vmatprep.subr.mxu0 0.0
        %2357 = vmatpush1.msra.mxu0 0.0
        %2358 = vmatprep.subr.mxu0 0.0
        %2359 = vmatpush1.msra.mxu0 0.0
        %2360 = vmatprep.subr.mxu0 0.0
        %2361 = vmatpush1.msra.mxu0 0.0
        %2362 = vmatprep.subr.mxu0 0.0
        %2363 = vmatpush1.msra.mxu0 0.0
        %2364 = vmatprep.subr.mxu0 0.0
        %2365 = vmatpush1.msra.mxu0 0.0
        %2366 = vmatprep.subr.mxu0 0.0
        %2367 = vmatpush1.msra.mxu0 0.0
        %2368 = vmatprep.subr.mxu0 0.0
        %2369 = vmatpush1.msra.mxu0 0.0
        %2370 = vmatprep.mubr.f32.mxu0 0.0
        %2371 = vmatmul.mubr.f32.gmra.mrb[0].mxu0 %v2283
        %v2372 = vpop.f32.mrb[0].mxu0
        %v2373 = vadd.f32 %v2280, %v2372
        %v2374 = vpop.f32.mrb[0].mxu0
        %2375 = vmatprep.mubr.f32.mxu0 0.0
        %2376 = vmatmul.mubr.f32.gmra.mrb[0].mxu0 %v2286
        %v2377 = vpop.f32.mrb[0].mxu0
        %v2378 = vadd.f32 %v2280, %v2377
        %v2379 = vpop.f32.mrb[0].mxu0
        %2380 = vmatprep.mubr.f32.mxu0 0.0
        %2381 = vmatmul.mubr.f32.gmra.mrb[0].mxu0 %v2289
        %v2382 = vpop.f32.mrb[0].mxu0
        %v2383 = vadd.f32 %v2280, %v2382
        %v2384 = vpop.f32.mrb[0].mxu0
        %2385 = vmatprep.mubr.f32.mxu0 0.0
        %2386 = vmatmul.mubr.f32.gmra.mrb[0].mxu0 %v2292
        %v2387 = vpop.f32.mrb[0].mxu0
        %v2388 = vadd.f32 %v2280, %v2387
        %v2389 = vpop.f32.mrb[0].mxu0
        %2390 = vmatprep.mubr.f32.mxu0 0.0
        %2391 = vmatmul.mubr.f32.gmra.mrb[0].mxu0 %v2295
        %v2392 = vpop.f32.mrb[0].mxu0
        %v2393 = vadd.f32 %v2280, %v2392
        %v2394 = vpop.f32.mrb[0].mxu0
        %2395 = vmatprep.mubr.f32.mxu0 0.0
        %2396 = vmatmul.mubr.f32.gmra.mrb[0].mxu0 %v2298
        %v2397 = vpop.f32.mrb[0].mxu0
        %v2398 = vadd.f32 %v2280, %v2397
        %v2399 = vpop.f32.mrb[0].mxu0
        %2400 = vmatprep.mubr.f32.mxu0 0.0
        %2401 = vmatmul.mubr.f32.gmra.mrb[0].mxu0 %v2301
        %v2402 = vpop.f32.mrb[0].mxu0
        %v2403 = vadd.f32 %v2280, %v2402
        %v2404 = vpop.f32.mrb[0].mxu0
        %2405 = vmatprep.mubr.f32.mxu0 0.0
        %2406 = vmatmul.mubr.f32.gmra.mrb[0].mxu0 %v2304
        %v2407 = vpop.f32.mrb[0].mxu0
        %v2408 = vadd.f32 %v2280, %v2407
        %v2409 = vpop.f32.mrb[0].mxu0
        %2410 = vdwg.mxu0
        %v2411 = vadd.f32 %v1940, %v2373
        %v2412 = vadd.f32 %v1941, %v2378
        %v2413 = vadd.f32 %v1942, %v2383
        %v2414 = vadd.f32 %v1943, %v2388
        %v2415 = vadd.f32 %v1944, %v2393
        %v2416 = vadd.f32 %v1945, %v2398
        %v2417 = vadd.f32 %v1946, %v2403
        %v2418 = vadd.f32 %v1947, %v2408
        %2419 = vxpose.xlu0.b32.start [1/16] %v2411, 128
        %2420 = vxpose.xlu0.b32.cont [2/16] %v2412, 128
        %2421 = vxpose.xlu0.b32.cont [3/16] %v2413, 128
        %2422 = vxpose.xlu0.b32.cont [4/16] %v2414, 128
        %2423 = vxpose.xlu0.b32.cont [5/16] %v2415, 128
        %2424 = vxpose.xlu0.b32.cont [6/16] %v2416, 128
        %2425 = vxpose.xlu0.b32.cont [7/16] %v2417, 128
        %2426 = vxpose.xlu0.b32.cont [8/16] %v2418, 128
        %2427 = vxpose.xlu0.b32.cont [9/16] 0.0, 128
        %2428 = vxpose.xlu0.b32.cont [10/16] 0.0, 128
        %2429 = vxpose.xlu0.b32.cont [11/16] 0.0, 128
        %2430 = vxpose.xlu0.b32.cont [12/16] 0.0, 128
        %2431 = vxpose.xlu0.b32.cont [13/16] 0.0, 128
        %2432 = vxpose.xlu0.b32.cont [14/16] 0.0, 128
        %2433 = vxpose.xlu0.b32.cont [15/16] 0.0, 128
        %2434 = vxpose.xlu0.b32.end [16/16] 0.0, 128
        %v2435 = vpop.trf.xlu0
        %v2436 = vpop.trf.xlu0
        %v2437 = vpop.trf.xlu0
        %v2438 = vpop.trf.xlu0
        %v2439 = vpop.trf.xlu0
        %v2440 = vpop.trf.xlu0
        %v2441 = vpop.trf.xlu0
        %v2442 = vpop.trf.xlu0
        %v2443 = vpop.trf.xlu0
        %v2444 = vpop.trf.xlu0
        %v2445 = vpop.trf.xlu0
        %v2446 = vpop.trf.xlu0
        %v2447 = vpop.trf.xlu0
        %v2448 = vpop.trf.xlu0
        %v2449 = vpop.trf.xlu0
        %v2450 = vpop.trf.xlu0
        %2451 = vst.msk [vmem:[%s544] sm:$0xff] %vm1534, %v2435
        %2452 = vst.msk [vmem:[%s544 + $0x8] sm:$0xff] %vm1534, %v2436
        %2453 = vst.msk [vmem:[%s544 + $0x10] sm:$0xff] %vm1534, %v2437
        %2454 = vst.msk [vmem:[%s544 + $0x18] sm:$0xff] %vm1534, %v2438
        %2455 = vst.msk [vmem:[%s544 + $0x20] sm:$0xff] %vm1534, %v2439
        %2456 = vst.msk [vmem:[%s544 + $0x28] sm:$0xff] %vm1534, %v2440
        %2457 = vst.msk [vmem:[%s544 + $0x30] sm:$0xff] %vm1534, %v2441
        %2458 = vst.msk [vmem:[%s544 + $0x38] sm:$0xff] %vm1534, %v2442
      $region92: #{t2t_forward.3} parent=79 // pred_fallthru
        _
      %s2459 = smul.u32 %s32, %s33
      %p2460 = scmp.lt.s32.totalorder %s31, 1
      %s2461 = scalar_select %p2460, %s31, 1
      %p2462 = scmp.lt.s32.totalorder %s2459, 0
      %s2463 = scalar_select %p2462, %s2459, 0
      %s2464 = smul.addr %s2461, 8
      %s2465 = sadd.s32 %s2463, %s2464
      %s2466 = smul.addr %s2465, 8
      %s2467 = scalar_lea.vmem %s15, %s2466
      // Predicated region
      $region93: #{t2t_forward.3} parent=79 // pred_check
        %p2468 = pneg %p389
      $region94: #{t2t_forward.3} parent=79 // pred_check_branch
        %2470 = sbr.rel (%p2468) target = $region96
      $region95: #{t2t_forward.3} parent=79 // pred_region
        %s2471 = smul.u32 %s32, %s33
      $region96: #{t2t_forward.3} parent=79 // pred_fallthru
        _
    $region80: #{t2t_forward.3} parent=5 // pred_fallthru
      _
    %p2472 = scmp.le.s32.totalorder 2, %s21
    // Predicated region
    $region97: #{t2t_forward.3} parent=5 // pred_check
      %p2473 = pneg %p2472
    $region98: #{t2t_forward.3} parent=5 // pred_check_branch
      %2475 = sbr.rel (%p2473) target = $region100
    $region99: #{t2t_forward.3} parent=5 // pred_region
      %s2476 = ssub.s32 %s21, 2
      // Predicated region
      $region101: #{t2t_forward.3} parent=99 // pred_check
        %p2477 = pneg %p395
      $region102: #{t2t_forward.3} parent=99 // pred_check_branch
        %2479 = sbr.rel (%p2477) target = $region104
      $region103: #{t2t_forward.3} parent=99 // pred_region
        %s2480 = smul.u32 %s35, %s36
        %p2481 = scmp.lt.s32.totalorder %s34, 1
        %s2482 = scalar_select %p2481, %s34, 1
        %p2483 = scmp.lt.s32.totalorder %s2480, 0
        %s2484 = scalar_select %p2483, %s2480, 0
        %s2485 = smul.addr %s2482, 8
        %s2486 = sadd.s32 %s2484, %s2485
        %s2487 = smul.addr %s2486, 8
        %s2488 = scalar_lea.vmem %s15, %s2487
      $region104: #{t2t_forward.3} parent=99 // pred_fallthru
        _
    $region100: #{t2t_forward.3} parent=5 // pred_fallthru
      _
  $region6: #{t2t_forward.3} parent=0 // loop_footer
    %s25 = sadd.s32 1, %s21
  $region7: #{t2t_forward.3} parent=0 // loop_footer_branch
    %20 = sbr.rel target = $region3
  $region8: #{t2t_forward.3} parent=0 // loop_exit
    _

// kernel: t2t_forward.4
$region0: #{t2t_forward.4}
  #allocation0 [shape = 'u32[]', space=smem, size = 0x4, offset = 0x4, fixed_abs, tag = 'smem constant byte address 0x4 - core index']
  #allocation1 [shape = 'u32[144,128]{1,0:T(1,128)}', space=vmem, size = 0x12000, scoped, tag = 'internal scratch']
  #allocation2 [shape = 'f32[1,32]{1,0:T(1,128)}', space=vmem, size = 0x200, scoped, tag = 'scratch operand']
  #allocation3 [shape = 'f32[32,64]{1,0:T(8,128)}', space=vmem, size = 0x4000, scoped, tag = 'scratch operand']
  %s0 = inlined_call_operand.vmem [shape: f32[2,16,576], index: 0, kind: input, shape index: {}]
  %s1 = inlined_call_operand.vmem [shape: f32[1,576], index: 1, kind: input, shape index: {}]
  %s2 = inlined_call_operand.vmem [shape: f32[1,576], index: 2, kind: input, shape index: {}]
  %s3 = inlined_call_operand.vmem [shape: f32[576,160], index: 3, kind: input, shape index: {}]
  %s4 = inlined_call_operand.vmem [shape: f32[1,160], index: 4, kind: input, shape index: {}]
  %s5 = inlined_call_operand.vmem [shape: f32[576,160], index: 5, kind: input, shape index: {}]
  %s6 = inlined_call_operand.vmem [shape: f32[1,160], index: 6, kind: input, shape index: {}]
  %s7 = inlined_call_operand.vmem [shape: f32[64,64], index: 7, kind: input, shape index: {}]
  %s8 = inlined_call_operand.vmem [shape: f32[1,64], index: 8, kind: input, shape index: {}]
  %s9 = inlined_call_operand.vmem [shape: f32[1,64], index: 9, kind: input, shape index: {}]
  %s10 = inlined_call_operand.vmem [shape: f32[1,64], index: 10, kind: input, shape index: {}]
  %s11 = inlined_call_operand.vmem [shape: f32[64,64], index: 11, kind: input, shape index: {}]
  %s12 = inlined_call_operand.vmem [shape: f32[1,64], index: 12, kind: input, shape index: {}]
  %s13 = inlined_call_operand.vmem [shape: f32[64,64], index: 13, kind: input, shape index: {}]
  %s14 = inlined_call_operand.vmem [shape: f32[1,64], index: 14, kind: input, shape index: {}]
  %s15 = inlined_call_operand.vmem [shape: f32[2,64,16], index: 15, kind: output, shape index: {}]
  %s16 = sld [smem:[#allocation0]]
  $region105: #{t2t_forward.4} parent=0
    _
  %s18 = ssub.s32 1, %s16
  %s19 = scalar_select 0, %s18, %s16
  loop: start=0, step=1, limit=6
  $region2: #{t2t_forward.4} parent=0 // loop_pre_header
    _
  $region3: #{t2t_forward.4} parent=0 // loop_header
    %s21 = sphi 0, %s25
    %p22 = scmp.ge.s32.totalorder %s21, 6
    %s28 = sphi 0, %s47
    %s29 = sphi 0, %s43
    %s30 = sphi 0, %s39
    %s31 = sphi 0, %s28
    %s32 = sphi 0, %s29
    %s33 = sphi 0, %s30
    %s34 = sphi 0, %s31
    %s35 = sphi 0, %s32
    %s36 = sphi 0, %s33
    %s52 = sphi 0, %s54
    %s55 = sphi 0, %s52
    %s56 = sphi 0, %s55
    %s72 = sphi 0, %s56
    %s76 = sphi 0, %s76
    %s78 = sphi 0, %s76
    %s79 = sphi 0, %s78
    %s93 = sphi 0, %s79
    %s97 = sphi 0, %s97
    %s99 = sphi 0, %s97
    %s100 = sphi 0, %s99
    %s114 = sphi 0, %s100
    %s118 = sphi 0, %s118
    %s120 = sphi 0, %s118
    %s121 = sphi 0, %s120
    %s135 = sphi 0, %s121
    %s139 = sphi 0, %s139
    %s141 = sphi 0, %s139
    %s142 = sphi 0, %s141
    %s156 = sphi 0, %s142
    %s160 = sphi 0, %s160
    %s162 = sphi 0, %s160
    %s163 = sphi 0, %s162
    %s177 = sphi 0, %s163
    %s181 = sphi 0, %s181
    %s183 = sphi 0, %s181
    %s184 = sphi 0, %s183
    %s198 = sphi 0, %s184
    %s202 = sphi 0, %s202
    %s204 = sphi 0, %s202
    %s205 = sphi 0, %s204
    %s219 = sphi 0, %s205
    %s223 = sphi 0, %s223
    %s225 = sphi 0, %s223
    %s226 = sphi 0, %s225
    %s240 = sphi 0, %s226
    %s244 = sphi 0, %s244
    %s246 = sphi 0, %s244
    %s247 = sphi 0, %s246
    %s261 = sphi 0, %s247
    %s265 = sphi 0, %s265
    %s267 = sphi 0, %s265
    %s268 = sphi 0, %s267
    %s282 = sphi 0, %s268
    %s286 = sphi 0, %s286
    %s288 = sphi 0, %s286
    %s289 = sphi 0, %s288
    %s303 = sphi 0, %s289
    %s307 = sphi 0, %s307
    %s309 = sphi 0, %s307
    %s310 = sphi 0, %s309
    %s324 = sphi 0, %s310
    %s328 = sphi 0, %s328
    %s330 = sphi 0, %s328
    %s331 = sphi 0, %s330
    %s345 = sphi 0, %s331
    %s349 = sphi 0, %s349
    %s351 = sphi 0, %s349
    %s352 = sphi 0, %s351
    %s366 = sphi 0, %s352
    %s376 = sphi 0, %s378
    %s379 = sphi 0, %s376
    %s380 = sphi 0, %s379
    %s396 = sphi 0, %s380
  $region4: #{t2t_forward.4} parent=0 // loop_header_branch
    %24 = sbr.rel (%p22) target = $region8
  $region5: #{t2t_forward.4} parent=0 // loop_body
    %s26 = ssub.s32 %s21, 1
    %s27 = ssub.s32 %s21, 2
    %s37 = sadd.s32 1, %s30
    %p38 = scmp.ge.s32.totalorder %s37, 1
    %s39 = scalar_select %p38, 0, %s37
    %s40 = sadd.s32 1, %s29
    %s41 = scalar_select %p38, %s40, %s29
    %p42 = scmp.ge.s32.totalorder %s41, 2
    %s43 = scalar_select %p42, 0, %s41
    %s44 = sadd.s32 1, %s28
    %s45 = scalar_select %p42, %s44, %s28
    %p46 = scmp.ge.s32.totalorder %s45, 2
    %s47 = scalar_select %p46, 0, %s45
    %s48 = ssub.s32 %s28, %s47
    %s49 = ssub.s32 %s30, %s39
    %s50 = sor.u32 %s48, %s49
    %p51 = scmp.eq.s32.totalorder %s50, 0
    %s53 = sadd.s32 %s52, 1
    %s54 = scalar_select %p51, %s52, %s53
    %p57 = pneg %p51
    %p58 = scmp.eq.s32.totalorder %s21, 3
    %p59 = por %p57, %p58
    %p60 = scmp.ne.s32.totalorder %s52, %s55
    %p61 = scmp.eq.s32.totalorder %s21, 0
    %p62 = por %p60, %p61
    %p63 = scmp.ne.s32.totalorder %s52, %s55
    %p64 = scmp.eq.s32.totalorder %s26, 3
    %p65 = por %p63, %p64
    %p66 = scmp.ne.s32.totalorder %s55, %s56
    %p67 = scmp.eq.s32.totalorder %s26, 0
    %p68 = por %p66, %p67
    %p69 = scmp.ne.s32.totalorder %s55, %s56
    %p70 = scmp.eq.s32.totalorder %s27, 3
    %p71 = por %p69, %p70
    %p73 = scmp.ne.s32.totalorder %s56, %s72
    %p74 = scmp.eq.s32.totalorder %s27, 0
    %p75 = por %p73, %p74
    %s77 = sadd.s32 %s76, 1
    %p80 = scmp.eq.s32.totalorder %s21, 3
    %p81 = scmp.ne.s32.totalorder %s76, %s78
    %p82 = scmp.eq.s32.totalorder %s21, 0
    %p83 = por %p81, %p82
    %p84 = scmp.ne.s32.totalorder %s76, %s78
    %p85 = scmp.eq.s32.totalorder %s26, 3
    %p86 = por %p84, %p85
    %p87 = scmp.ne.s32.totalorder %s78, %s79
    %p88 = scmp.eq.s32.totalorder %s26, 0
    %p89 = por %p87, %p88
    %p90 = scmp.ne.s32.totalorder %s78, %s79
    %p91 = scmp.eq.s32.totalorder %s27, 3
    %p92 = por %p90, %p91
    %p94 = scmp.ne.s32.totalorder %s79, %s93
    %p95 = scmp.eq.s32.totalorder %s27, 0
    %p96 = por %p94, %p95
    %s98 = sadd.s32 %s97, 1
    %p101 = scmp.eq.s32.totalorder %s21, 3
    %p102 = scmp.ne.s32.totalorder %s97, %s99
    %p103 = scmp.eq.s32.totalorder %s21, 0
    %p104 = por %p102, %p103
    %p105 = scmp.ne.s32.totalorder %s97, %s99
    %p106 = scmp.eq.s32.totalorder %s26, 3
    %p107 = por %p105, %p106
    %p108 = scmp.ne.s32.totalorder %s99, %s100
    %p109 = scmp.eq.s32.totalorder %s26, 0
    %p110 = por %p108, %p109
    %p111 = scmp.ne.s32.totalorder %s99, %s100
    %p112 = scmp.eq.s32.totalorder %s27, 3
    %p113 = por %p111, %p112
    %p115 = scmp.ne.s32.totalorder %s100, %s114
    %p116 = scmp.eq.s32.totalorder %s27, 0
    %p117 = por %p115, %p116
    %s119 = sadd.s32 %s118, 1
    %p122 = scmp.eq.s32.totalorder %s21, 3
    %p123 = scmp.ne.s32.totalorder %s118, %s120
    %p124 = scmp.eq.s32.totalorder %s21, 0
    %p125 = por %p123, %p124
    %p126 = scmp.ne.s32.totalorder %s118, %s120
    %p127 = scmp.eq.s32.totalorder %s26, 3
    %p128 = por %p126, %p127
    %p129 = scmp.ne.s32.totalorder %s120, %s121
    %p130 = scmp.eq.s32.totalorder %s26, 0
    %p131 = por %p129, %p130
    %p132 = scmp.ne.s32.totalorder %s120, %s121
    %p133 = scmp.eq.s32.totalorder %s27, 3
    %p134 = por %p132, %p133
    %p136 = scmp.ne.s32.totalorder %s121, %s135
    %p137 = scmp.eq.s32.totalorder %s27, 0
    %p138 = por %p136, %p137
    %s140 = sadd.s32 %s139, 1
    %p143 = scmp.eq.s32.totalorder %s21, 3
    %p144 = scmp.ne.s32.totalorder %s139, %s141
    %p145 = scmp.eq.s32.totalorder %s21, 0
    %p146 = por %p144, %p145
    %p147 = scmp.ne.s32.totalorder %s139, %s141
    %p148 = scmp.eq.s32.totalorder %s26, 3
    %p149 = por %p147, %p148
    %p150 = scmp.ne.s32.totalorder %s141, %s142
    %p151 = scmp.eq.s32.totalorder %s26, 0
    %p152 = por %p150, %p151
    %p153 = scmp.ne.s32.totalorder %s141, %s142
    %p154 = scmp.eq.s32.totalorder %s27, 3
    %p155 = por %p153, %p154
    %p157 = scmp.ne.s32.totalorder %s142, %s156
    %p158 = scmp.eq.s32.totalorder %s27, 0
    %p159 = por %p157, %p158
    %s161 = sadd.s32 %s160, 1
    %p164 = scmp.eq.s32.totalorder %s21, 3
    %p165 = scmp.ne.s32.totalorder %s160, %s162
    %p166 = scmp.eq.s32.totalorder %s21, 0
    %p167 = por %p165, %p166
    %p168 = scmp.ne.s32.totalorder %s160, %s162
    %p169 = scmp.eq.s32.totalorder %s26, 3
    %p170 = por %p168, %p169
    %p171 = scmp.ne.s32.totalorder %s162, %s163
    %p172 = scmp.eq.s32.totalorder %s26, 0
    %p173 = por %p171, %p172
    %p174 = scmp.ne.s32.totalorder %s162, %s163
    %p175 = scmp.eq.s32.totalorder %s27, 3
    %p176 = por %p174, %p175
    %p178 = scmp.ne.s32.totalorder %s163, %s177
    %p179 = scmp.eq.s32.totalorder %s27, 0
    %p180 = por %p178, %p179
    %s182 = sadd.s32 %s181, 1
    %p185 = scmp.eq.s32.totalorder %s21, 3
    %p186 = scmp.ne.s32.totalorder %s181, %s183
    %p187 = scmp.eq.s32.totalorder %s21, 0
    %p188 = por %p186, %p187
    %p189 = scmp.ne.s32.totalorder %s181, %s183
    %p190 = scmp.eq.s32.totalorder %s26, 3
    %p191 = por %p189, %p190
    %p192 = scmp.ne.s32.totalorder %s183, %s184
    %p193 = scmp.eq.s32.totalorder %s26, 0
    %p194 = por %p192, %p193
    %p195 = scmp.ne.s32.totalorder %s183, %s184
    %p196 = scmp.eq.s32.totalorder %s27, 3
    %p197 = por %p195, %p196
    %p199 = scmp.ne.s32.totalorder %s184, %s198
    %p200 = scmp.eq.s32.totalorder %s27, 0
    %p201 = por %p199, %p200
    %s203 = sadd.s32 %s202, 1
    %p206 = scmp.eq.s32.totalorder %s21, 3
    %p207 = scmp.ne.s32.totalorder %s202, %s204
    %p208 = scmp.eq.s32.totalorder %s21, 0
    %p209 = por %p207, %p208
    %p210 = scmp.ne.s32.totalorder %s202, %s204
    %p211 = scmp.eq.s32.totalorder %s26, 3
    %p212 = por %p210, %p211
    %p213 = scmp.ne.s32.totalorder %s204, %s205
    %p214 = scmp.eq.s32.totalorder %s26, 0
    %p215 = por %p213, %p214
    %p216 = scmp.ne.s32.totalorder %s204, %s205
    %p217 = scmp.eq.s32.totalorder %s27, 3
    %p218 = por %p216, %p217
    %p220 = scmp.ne.s32.totalorder %s205, %s219
    %p221 = scmp.eq.s32.totalorder %s27, 0
    %p222 = por %p220, %p221
    %s224 = sadd.s32 %s223, 1
    %p227 = scmp.eq.s32.totalorder %s21, 3
    %p228 = scmp.ne.s32.totalorder %s223, %s225
    %p229 = scmp.eq.s32.totalorder %s21, 0
    %p230 = por %p228, %p229
    %p231 = scmp.ne.s32.totalorder %s223, %s225
    %p232 = scmp.eq.s32.totalorder %s26, 3
    %p233 = por %p231, %p232
    %p234 = scmp.ne.s32.totalorder %s225, %s226
    %p235 = scmp.eq.s32.totalorder %s26, 0
    %p236 = por %p234, %p235
    %p237 = scmp.ne.s32.totalorder %s225, %s226
    %p238 = scmp.eq.s32.totalorder %s27, 3
    %p239 = por %p237, %p238
    %p241 = scmp.ne.s32.totalorder %s226, %s240
    %p242 = scmp.eq.s32.totalorder %s27, 0
    %p243 = por %p241, %p242
    %s245 = sadd.s32 %s244, 1
    %p248 = scmp.eq.s32.totalorder %s21, 3
    %p249 = scmp.ne.s32.totalorder %s244, %s246
    %p250 = scmp.eq.s32.totalorder %s21, 0
    %p251 = por %p249, %p250
    %p252 = scmp.ne.s32.totalorder %s244, %s246
    %p253 = scmp.eq.s32.totalorder %s26, 3
    %p254 = por %p252, %p253
    %p255 = scmp.ne.s32.totalorder %s246, %s247
    %p256 = scmp.eq.s32.totalorder %s26, 0
    %p257 = por %p255, %p256
    %p258 = scmp.ne.s32.totalorder %s246, %s247
    %p259 = scmp.eq.s32.totalorder %s27, 3
    %p260 = por %p258, %p259
    %p262 = scmp.ne.s32.totalorder %s247, %s261
    %p263 = scmp.eq.s32.totalorder %s27, 0
    %p264 = por %p262, %p263
    %s266 = sadd.s32 %s265, 1
    %p269 = scmp.eq.s32.totalorder %s21, 3
    %p270 = scmp.ne.s32.totalorder %s265, %s267
    %p271 = scmp.eq.s32.totalorder %s21, 0
    %p272 = por %p270, %p271
    %p273 = scmp.ne.s32.totalorder %s265, %s267
    %p274 = scmp.eq.s32.totalorder %s26, 3
    %p275 = por %p273, %p274
    %p276 = scmp.ne.s32.totalorder %s267, %s268
    %p277 = scmp.eq.s32.totalorder %s26, 0
    %p278 = por %p276, %p277
    %p279 = scmp.ne.s32.totalorder %s267, %s268
    %p280 = scmp.eq.s32.totalorder %s27, 3
    %p281 = por %p279, %p280
    %p283 = scmp.ne.s32.totalorder %s268, %s282
    %p284 = scmp.eq.s32.totalorder %s27, 0
    %p285 = por %p283, %p284
    %s287 = sadd.s32 %s286, 1
    %p290 = scmp.eq.s32.totalorder %s21, 3
    %p291 = scmp.ne.s32.totalorder %s286, %s288
    %p292 = scmp.eq.s32.totalorder %s21, 0
    %p293 = por %p291, %p292
    %p294 = scmp.ne.s32.totalorder %s286, %s288
    %p295 = scmp.eq.s32.totalorder %s26, 3
    %p296 = por %p294, %p295
    %p297 = scmp.ne.s32.totalorder %s288, %s289
    %p298 = scmp.eq.s32.totalorder %s26, 0
    %p299 = por %p297, %p298
    %p300 = scmp.ne.s32.totalorder %s288, %s289
    %p301 = scmp.eq.s32.totalorder %s27, 3
    %p302 = por %p300, %p301
    %p304 = scmp.ne.s32.totalorder %s289, %s303
    %p305 = scmp.eq.s32.totalorder %s27, 0
    %p306 = por %p304, %p305
    %s308 = sadd.s32 %s307, 1
    %p311 = scmp.eq.s32.totalorder %s21, 3
    %p312 = scmp.ne.s32.totalorder %s307, %s309
    %p313 = scmp.eq.s32.totalorder %s21, 0
    %p314 = por %p312, %p313
    %p315 = scmp.ne.s32.totalorder %s307, %s309
    %p316 = scmp.eq.s32.totalorder %s26, 3
    %p317 = por %p315, %p316
    %p318 = scmp.ne.s32.totalorder %s309, %s310
    %p319 = scmp.eq.s32.totalorder %s26, 0
    %p320 = por %p318, %p319
    %p321 = scmp.ne.s32.totalorder %s309, %s310
    %p322 = scmp.eq.s32.totalorder %s27, 3
    %p323 = por %p321, %p322
    %p325 = scmp.ne.s32.totalorder %s310, %s324
    %p326 = scmp.eq.s32.totalorder %s27, 0
    %p327 = por %p325, %p326
    %s329 = sadd.s32 %s328, 1
    %p332 = scmp.eq.s32.totalorder %s21, 3
    %p333 = scmp.ne.s32.totalorder %s328, %s330
    %p334 = scmp.eq.s32.totalorder %s21, 0
    %p335 = por %p333, %p334
    %p336 = scmp.ne.s32.totalorder %s328, %s330
    %p337 = scmp.eq.s32.totalorder %s26, 3
    %p338 = por %p336, %p337
    %p339 = scmp.ne.s32.totalorder %s330, %s331
    %p340 = scmp.eq.s32.totalorder %s26, 0
    %p341 = por %p339, %p340
    %p342 = scmp.ne.s32.totalorder %s330, %s331
    %p343 = scmp.eq.s32.totalorder %s27, 3
    %p344 = por %p342, %p343
    %p346 = scmp.ne.s32.totalorder %s331, %s345
    %p347 = scmp.eq.s32.totalorder %s27, 0
    %p348 = por %p346, %p347
    %s350 = sadd.s32 %s349, 1
    %p353 = scmp.eq.s32.totalorder %s21, 3
    %p354 = scmp.ne.s32.totalorder %s349, %s351
    %p355 = scmp.eq.s32.totalorder %s21, 0
    %p356 = por %p354, %p355
    %p357 = scmp.ne.s32.totalorder %s349, %s351
    %p358 = scmp.eq.s32.totalorder %s26, 3
    %p359 = por %p357, %p358
    %p360 = scmp.ne.s32.totalorder %s351, %s352
    %p361 = scmp.eq.s32.totalorder %s26, 0
    %p362 = por %p360, %p361
    %p363 = scmp.ne.s32.totalorder %s351, %s352
    %p364 = scmp.eq.s32.totalorder %s27, 3
    %p365 = por %p363, %p364
    %p367 = scmp.ne.s32.totalorder %s352, %s366
    %p368 = scmp.eq.s32.totalorder %s27, 0
    %p369 = por %p367, %p368
    %s370 = smul.u32 %s29, %s30
    %s371 = smul.u32 %s43, %s39
    %s372 = ssub.s32 %s28, %s47
    %s373 = ssub.s32 %s370, %s371
    %s374 = sor.u32 %s372, %s373
    %p375 = scmp.eq.s32.totalorder %s374, 0
    %s377 = sadd.s32 %s376, 1
    %s378 = scalar_select %p375, %s376, %s377
    %p381 = pneg %p375
    %p382 = scmp.eq.s32.totalorder %s21, 3
    %p383 = por %p381, %p382
    %p384 = scmp.ne.s32.totalorder %s376, %s379
    %p385 = scmp.eq.s32.totalorder %s21, 0
    %p386 = por %p384, %p385
    %p387 = scmp.ne.s32.totalorder %s376, %s379
    %p388 = scmp.eq.s32.totalorder %s26, 3
    %p389 = por %p387, %p388
    %p390 = scmp.ne.s32.totalorder %s379, %s380
    %p391 = scmp.eq.s32.totalorder %s26, 0
    %p392 = por %p390, %p391
    %p393 = scmp.ne.s32.totalorder %s379, %s380
    %p394 = scmp.eq.s32.totalorder %s27, 3
    %p395 = por %p393, %p394
    %p397 = scmp.ne.s32.totalorder %s380, %s396
    %p398 = scmp.eq.s32.totalorder %s27, 0
    %p399 = por %p397, %p398
    %p400 = scmp.le.s32.totalorder 1, %s21
    %p401 = scmp.lt.s32.totalorder %s21, 5
    %p402 = pnand %p400, %p401
    %p403 = pneg %p402
    // Predicated region
    $region9: #{t2t_forward.4} parent=5 // pred_check
      _
    $region10: #{t2t_forward.4} parent=5 // pred_check_branch
      %405 = sbr.rel (%p402) target = $region12
    $region11: #{t2t_forward.4} parent=5 // pred_region
      %s406 = ssub.s32 %s21, 1
      // Predicated region
      $region13: #{t2t_forward.4} parent=11 // pred_check
        %p407 = pneg %p89
      $region14: #{t2t_forward.4} parent=11 // pred_check_branch
        %409 = sbr.rel (%p407) target = $region16
      $region15: #{t2t_forward.4} parent=11 // pred_region
        _
      $region16: #{t2t_forward.4} parent=11 // pred_fallthru
        _
      // Predicated region
      $region17: #{t2t_forward.4} parent=11 // pred_check
        %p410 = pneg %p110
      $region18: #{t2t_forward.4} parent=11 // pred_check_branch
        %412 = sbr.rel (%p410) target = $region20
      $region19: #{t2t_forward.4} parent=11 // pred_region
        _
      $region20: #{t2t_forward.4} parent=11 // pred_fallthru
        _
      // Predicated region
      $region21: #{t2t_forward.4} parent=11 // pred_check
        %p413 = pneg %p131
      $region22: #{t2t_forward.4} parent=11 // pred_check_branch
        %415 = sbr.rel (%p413) target = $region24
      $region23: #{t2t_forward.4} parent=11 // pred_region
        _
      $region24: #{t2t_forward.4} parent=11 // pred_fallthru
        _
      // Predicated region
      $region25: #{t2t_forward.4} parent=11 // pred_check
        %p416 = pneg %p152
      $region26: #{t2t_forward.4} parent=11 // pred_check_branch
        %418 = sbr.rel (%p416) target = $region28
      $region27: #{t2t_forward.4} parent=11 // pred_region
        _
      $region28: #{t2t_forward.4} parent=11 // pred_fallthru
        _
      // Predicated region
      $region29: #{t2t_forward.4} parent=11 // pred_check
        %p419 = pneg %p173
      $region30: #{t2t_forward.4} parent=11 // pred_check_branch
        %421 = sbr.rel (%p419) target = $region32
      $region31: #{t2t_forward.4} parent=11 // pred_region
        _
      $region32: #{t2t_forward.4} parent=11 // pred_fallthru
        _
      // Predicated region
      $region33: #{t2t_forward.4} parent=11 // pred_check
        %p422 = pneg %p194
      $region34: #{t2t_forward.4} parent=11 // pred_check_branch
        %424 = sbr.rel (%p422) target = $region36
      $region35: #{t2t_forward.4} parent=11 // pred_region
        _
      $region36: #{t2t_forward.4} parent=11 // pred_fallthru
        _
      // Predicated region
      $region37: #{t2t_forward.4} parent=11 // pred_check
        %p425 = pneg %p215
      $region38: #{t2t_forward.4} parent=11 // pred_check_branch
        %427 = sbr.rel (%p425) target = $region40
      $region39: #{t2t_forward.4} parent=11 // pred_region
        _
      $region40: #{t2t_forward.4} parent=11 // pred_fallthru
        _
      // Predicated region
      $region41: #{t2t_forward.4} parent=11 // pred_check
        %p428 = pneg %p236
      $region42: #{t2t_forward.4} parent=11 // pred_check_branch
        %430 = sbr.rel (%p428) target = $region44
      $region43: #{t2t_forward.4} parent=11 // pred_region
        _
      $region44: #{t2t_forward.4} parent=11 // pred_fallthru
        _
      // Predicated region
      $region45: #{t2t_forward.4} parent=11 // pred_check
        %p431 = pneg %p257
      $region46: #{t2t_forward.4} parent=11 // pred_check_branch
        %433 = sbr.rel (%p431) target = $region48
      $region47: #{t2t_forward.4} parent=11 // pred_region
        _
      $region48: #{t2t_forward.4} parent=11 // pred_fallthru
        _
      // Predicated region
      $region49: #{t2t_forward.4} parent=11 // pred_check
        %p434 = pneg %p278
      $region50: #{t2t_forward.4} parent=11 // pred_check_branch
        %436 = sbr.rel (%p434) target = $region52
      $region51: #{t2t_forward.4} parent=11 // pred_region
        _
      $region52: #{t2t_forward.4} parent=11 // pred_fallthru
        _
      // Predicated region
      $region53: #{t2t_forward.4} parent=11 // pred_check
        %p437 = pneg %p299
      $region54: #{t2t_forward.4} parent=11 // pred_check_branch
        %439 = sbr.rel (%p437) target = $region56
      $region55: #{t2t_forward.4} parent=11 // pred_region
        _
      $region56: #{t2t_forward.4} parent=11 // pred_fallthru
        _
      // Predicated region
      $region57: #{t2t_forward.4} parent=11 // pred_check
        %p440 = pneg %p320
      $region58: #{t2t_forward.4} parent=11 // pred_check_branch
        %442 = sbr.rel (%p440) target = $region60
      $region59: #{t2t_forward.4} parent=11 // pred_region
        _
      $region60: #{t2t_forward.4} parent=11 // pred_fallthru
        _
      // Predicated region
      $region61: #{t2t_forward.4} parent=11 // pred_check
        %p443 = pneg %p341
      $region62: #{t2t_forward.4} parent=11 // pred_check_branch
        %445 = sbr.rel (%p443) target = $region64
      $region63: #{t2t_forward.4} parent=11 // pred_region
        _
      $region64: #{t2t_forward.4} parent=11 // pred_fallthru
        _
      // Predicated region
      $region65: #{t2t_forward.4} parent=11 // pred_check
        %p446 = pneg %p362
      $region66: #{t2t_forward.4} parent=11 // pred_check_branch
        %448 = sbr.rel (%p446) target = $region68
      $region67: #{t2t_forward.4} parent=11 // pred_region
        _
      $region68: #{t2t_forward.4} parent=11 // pred_fallthru
        _
    $region12: #{t2t_forward.4} parent=5 // pred_fallthru
      _
    %p449 = scmp.lt.s32.totalorder %s21, 4
    // Predicated region
    $region69: #{t2t_forward.4} parent=5 // pred_check
      %p450 = pneg %p449
    $region70: #{t2t_forward.4} parent=5 // pred_check_branch
      %452 = sbr.rel (%p450) target = $region72
    $region71: #{t2t_forward.4} parent=5 // pred_region
      // Predicated region
      $region73: #{t2t_forward.4} parent=71 // pred_check
        %p453 = pneg %p62
      $region74: #{t2t_forward.4} parent=71 // pred_check_branch
        %455 = sbr.rel (%p453) target = $region76
      $region75: #{t2t_forward.4} parent=71 // pred_region
        %s456 = smul.u32 2, %s30
        %p457 = scmp.lt.s32.totalorder %s28, 1
        %s458 = scalar_select %p457, %s28, 1
        %p459 = scmp.lt.s32.totalorder %s456, 1
        %s460 = scalar_select %p459, %s456, 1
        %s461 = smul.addr %s460, 5
        %s462 = smul.addr %s458, 10
        %s463 = sadd.s32 %s461, %s462
        %s464 = smul.addr %s463, 8
        %s465 = scalar_lea.vmem %s0, %s464
        %s466 = smul.u32 2, %s30
      $region76: #{t2t_forward.4} parent=71 // pred_fallthru
        _
    $region72: #{t2t_forward.4} parent=5 // pred_fallthru
      _
    %p467 = scmp.le.s32.totalorder 1, %s21
    %p468 = scmp.lt.s32.totalorder %s21, 5
    %p469 = pnand %p467, %p468
    %p470 = pneg %p469
    // Predicated region
    $region77: #{t2t_forward.4} parent=5 // pred_check
      _
    $region78: #{t2t_forward.4} parent=5 // pred_check_branch
      %472 = sbr.rel (%p469) target = $region80
    $region79: #{t2t_forward.4} parent=5 // pred_region
      %s473 = ssub.s32 %s21, 1
      %s474 = smul.u32 2, %s33
      %p475 = scmp.lt.s32.totalorder %s31, 1
      %s476 = scalar_select %p475, %s31, 1
      %p477 = scmp.lt.s32.totalorder %s474, 1
      %s478 = scalar_select %p477, %s474, 1
      %s479 = smul.addr %s478, 5
      %s480 = smul.addr %s476, 10
      %s481 = sadd.s32 %s479, %s480
      %s482 = smul.addr %s481, 8
      %s483 = scalar_lea.vmem %s0, %s482
      %p484 = pneg %p68
      %p485 = pneg %p65
      %p486 = pneg %p89
      %p487 = pneg %p86
      %p488 = pneg %p110
      %p489 = pneg %p107
      %p490 = pneg %p131
      %p491 = pneg %p128
      %p492 = pneg %p152
      %p493 = pneg %p149
      %p494 = pneg %p173
      %p495 = pneg %p170
      %p496 = pneg %p194
      %p497 = pneg %p191
      %p498 = pneg %p215
      %p499 = pneg %p212
      %p500 = pneg %p236
      %p501 = pneg %p233
      %p502 = pneg %p257
      %p503 = pneg %p254
      %p504 = pneg %p278
      %p505 = pneg %p275
      %p506 = pneg %p299
      %p507 = pneg %p296
      %p508 = pneg %p320
      %p509 = pneg %p317
      %p510 = pneg %p341
      %p511 = pneg %p338
      %p512 = pneg %p362
      %p513 = pneg %p359
      %p514 = pneg %p392
      %p515 = pneg %p389
      %s516 = smul.u32 %s32, %s33
      %p517 = scmp.lt.s32.totalorder %s31, 1
      %s518 = scalar_select %p517, %s31, 1
      %p519 = scmp.lt.s32.totalorder %s516, 0
      %s520 = scalar_select %p519, %s516, 0
      %s521 = smul.addr %s518, 8
      %s522 = sadd.s32 %s520, %s521
      %s523 = smul.addr %s522, 8
      %s524 = scalar_lea.vmem %s15, %s523
      %s525 = smul.u32 2, %s33
      %p526 = scmp.lt.s32.totalorder %s31, 1
      %s527 = scalar_select %p526, %s31, 1
      %p528 = scmp.lt.s32.totalorder %s525, 1
      %s529 = scalar_select %p528, %s525, 1
      %s530 = smul.addr %s529, 5
      %s531 = smul.addr %s527, 10
      %s532 = sadd.s32 %s530, %s531
      %s533 = smul.addr %s532, 8
      %s534 = scalar_lea.vmem %s0, %s533
      %s535 = smul.u32 2, %s33
      %s536 = smul.u32 %s32, %s33
      %p537 = scmp.lt.s32.totalorder %s31, 1
      %s538 = scalar_select %p537, %s31, 1
      %p539 = scmp.lt.s32.totalorder %s536, 0
      %s540 = scalar_select %p539, %s536, 0
      %s541 = smul.addr %s538, 8
      %s542 = sadd.s32 %s540, %s541
      %s543 = smul.addr %s542, 8
      %s544 = scalar_lea.vmem %s15, %s543
      %s545 = smul.u32 %s32, %s33
      %v546 = vld [vmem:[%s534] sm:$0xff]
      %v547 = vld [vmem:[%s534 + $0x8] sm:$0xff]
      %v548 = vld [vmem:[%s534 + $0x10] sm:$0xff]
      %v549 = vld [vmem:[%s534 + $0x18] sm:$0xff]
      %v550 = vld [vmem:[%s534 + $0x20] sm:$0xff]
      %v551 = vld [vmem:[%s534 + $0x28] sm:$0xff]
      %v552 = vld [vmem:[%s534 + $0x30] sm:$0xff]
      %v553 = vld [vmem:[%s534 + $0x38] sm:$0xff]
      %v554 = vld [vmem:[%s534 + $0x40] sm:$0xff]
      %v555 = vld [vmem:[%s534 + $0x48] sm:$0xff]
      %v556 = vadd.f32 %v546, %v547
      %v557 = vadd.f32 %v556, %v548
      %v558 = vadd.f32 %v557, %v549
      %vm559 = vcmask 523264
      %v560 = vsel %vm559, %v550, 0.0
      %v561 = vadd.f32 %v558, %v560
      %562 = vadd.xlane.f32.xlu0 %v561
      %v563 = vpop.xlane.xlu0 %562
      %v564 = vadd.f32 %v551, %v552
      %v565 = vadd.f32 %v564, %v553
      %v566 = vadd.f32 %v565, %v554
      %v567 = vsel %vm559, %v555, 0.0
      %v568 = vadd.f32 %v566, %v567
      %569 = vadd.xlane.f32.xlu0 %v568
      %v570 = vpop.xlane.xlu0 %569
      %v571 = vrcp.pop 576.0
      %v572 = vmul.f32 %v563, %v571
      %v573 = vmul.f32 %v570, %v571
      %v574 = vsub.f32 %v546, %v572
      %v575 = vsub.f32 %v547, %v572
      %v576 = vsub.f32 %v548, %v572
      %v577 = vsub.f32 %v549, %v572
      %v578 = vsub.f32 %v550, %v572
      %v579 = vsub.f32 %v551, %v573
      %v580 = vsub.f32 %v552, %v573
      %v581 = vsub.f32 %v553, %v573
      %v582 = vsub.f32 %v554, %v573
      %v583 = vsub.f32 %v555, %v573
      %v584 = vmul.f32 %v574, %v574
      %v585 = vmul.f32 %v575, %v575
      %v586 = vmul.f32 %v576, %v576
      %v587 = vmul.f32 %v577, %v577
      %v588 = vmul.f32 %v578, %v578
      %v589 = vmul.f32 %v579, %v579
      %v590 = vmul.f32 %v580, %v580
      %v591 = vmul.f32 %v581, %v581
      %v592 = vmul.f32 %v582, %v582
      %v593 = vmul.f32 %v583, %v583
      %v594 = vadd.f32 %v584, %v585
      %v595 = vadd.f32 %v594, %v586
      %v596 = vadd.f32 %v595, %v587
      %v597 = vsel %vm559, %v588, 0.0
      %v598 = vadd.f32 %v596, %v597
      %599 = vadd.xlane.f32.xlu0 %v598
      %v600 = vpop.xlane.xlu0 %599
      %v601 = vadd.f32 %v589, %v590
      %v602 = vadd.f32 %v601, %v591
      %v603 = vadd.f32 %v602, %v592
      %v604 = vsel %vm559, %v593, 0.0
      %v605 = vadd.f32 %v603, %v604
      %606 = vadd.xlane.f32.xlu0 %v605
      %v607 = vpop.xlane.xlu0 %606
      %v608 = vmul.f32 %v600, %v571
      %v609 = vmul.f32 %v607, %v571
      %v610 = vadd.f32 %v608, 1e-05
      %v611 = vadd.f32 %v609, 1e-05
      %v612 = vrsqrt.pop %v610
      %v613 = vrsqrt.pop %v611
      %v614 = vmul.f32 %v574, %v612
      %v615 = vmul.f32 %v575, %v612
      %v616 = vmul.f32 %v576, %v612
      %v617 = vmul.f32 %v577, %v612
      %v618 = vmul.f32 %v578, %v612
      %v619 = vmul.f32 %v579, %v613
      %v620 = vmul.f32 %v580, %v613
      %v621 = vmul.f32 %v581, %v613
      %v622 = vmul.f32 %v582, %v613
      %v623 = vmul.f32 %v583, %v613
      %v624 = vld [vmem:[%s1] sm:$0x1f]
      %v626 = vlaneseq
      %v627 = vshrl.u32 %v626, 7
      %v628 = vsub.s32 0, %v627
      %v629 = vrot.slane %v624, %v628
      %v630 = vlaneseq
      %v631 = vshrl.u32 %v630, 7
      %v632 = vsub.s32 1, %v631
      %v633 = vrot.slane %v624, %v632
      %v634 = vlaneseq
      %v635 = vshrl.u32 %v634, 7
      %v636 = vsub.s32 2, %v635
      %v637 = vrot.slane %v624, %v636
      %v638 = vlaneseq
      %v639 = vshrl.u32 %v638, 7
      %v640 = vsub.s32 3, %v639
      %v641 = vrot.slane %v624, %v640
      %v642 = vlaneseq
      %v643 = vshrl.u32 %v642, 7
      %v644 = vsub.s32 4, %v643
      %v645 = vrot.slane %v624, %v644
      %v651 = vmul.f32 %v614, %v629
      %v652 = vmul.f32 %v615, %v633
      %v653 = vmul.f32 %v616, %v637
      %v654 = vmul.f32 %v617, %v641
      %v655 = vmul.f32 %v618, %v645
      %v656 = vmul.f32 %v619, %v629
      %v657 = vmul.f32 %v620, %v633
      %v658 = vmul.f32 %v621, %v637
      %v659 = vmul.f32 %v622, %v641
      %v660 = vmul.f32 %v623, %v645
      %v661 = vld [vmem:[%s2] sm:$0x1f]
      %v663 = vlaneseq
      %v664 = vshrl.u32 %v663, 7
      %v665 = vsub.s32 0, %v664
      %v666 = vrot.slane %v661, %v665
      %v667 = vlaneseq
      %v668 = vshrl.u32 %v667, 7
      %v669 = vsub.s32 1, %v668
      %v670 = vrot.slane %v661, %v669
      %v671 = vlaneseq
      %v672 = vshrl.u32 %v671, 7
      %v673 = vsub.s32 2, %v672
      %v674 = vrot.slane %v661, %v673
      %v675 = vlaneseq
      %v676 = vshrl.u32 %v675, 7
      %v677 = vsub.s32 3, %v676
      %v678 = vrot.slane %v661, %v677
      %v679 = vlaneseq
      %v680 = vshrl.u32 %v679, 7
      %v681 = vsub.s32 4, %v680
      %v682 = vrot.slane %v661, %v681
      %v688 = vadd.f32 %v651, %v666
      %v689 = vadd.f32 %v652, %v670
      %v690 = vadd.f32 %v653, %v674
      %v691 = vadd.f32 %v654, %v678
      %v692 = vadd.f32 %v655, %v682
      %v693 = vadd.f32 %v656, %v666
      %v694 = vadd.f32 %v657, %v670
      %v695 = vadd.f32 %v658, %v674
      %v696 = vadd.f32 %v659, %v678
      %v697 = vadd.f32 %v660, %v682
      %s698 = smul.u32 %s33, 16
      %v699 = vlaneseq
      %v700 = vshrl.u32 %v699, 7
      %v701 = vadd.s32 %v700, 8
      %v702 = vstv %s698
      %v703 = vadd.s32 %v702, %v700
      %v704 = vadd.s32 %v702, %v701
      %vm705 = vcmp.lt.s32.totalorder %v703, 16
      %vm706 = vcmp.lt.s32.totalorder %v704, 16
      %p707 = scmp.eq.s32.totalorder %s32, 0
      // Predicated region
      $region81: #{t2t_forward.4} parent=79 // pred_check
        %p708 = pneg %p707
      $region82: #{t2t_forward.4} parent=79 // pred_check_branch
        %710 = sbr.rel (%p708) target = $region84
      $region83: #{t2t_forward.4} parent=79 // pred_region
        %p711 = scmp.eq.s32.totalorder %s33, 0
        // Predicated region
        $region85: #{t2t_forward.4} parent=83 // pred_check
          %p712 = pneg %p711
        $region86: #{t2t_forward.4} parent=83 // pred_check_branch
          %714 = sbr.rel (%p712) target = $region88
        $region87: #{t2t_forward.4} parent=83 // pred_region
          %vm715 = vcmask 253952
          %716 = vst.msk [vmem:[#allocation2] sm:$0x1] %vm715, 0.0
          %717 = vst.msk [vmem:[#allocation3] sm:$0xff] %vm559, 0.0
          %718 = vst.msk [vmem:[#allocation3 + $0x8] sm:$0xff] %vm559, 0.0
          %719 = vst.msk [vmem:[#allocation3 + $0x10] sm:$0xff] %vm559, 0.0
          %720 = vst.msk [vmem:[#allocation3 + $0x18] sm:$0xff] %vm559, 0.0
        $region88: #{t2t_forward.4} parent=83 // pred_fallthru
          _
        %v721 = vld [vmem:[%s3] sm:$0xff]
        %v722 = vld [vmem:[%s3 + $0x8] sm:$0xff]
        %v723 = vld [vmem:[%s3 + $0x10] sm:$0xff]
        %v724 = vld [vmem:[%s3 + $0x18] sm:$0xff]
        %v725 = vld [vmem:[%s3 + $0x20] sm:$0xff]
        %v726 = vld [vmem:[%s3 + $0x28] sm:$0xff]
        %v727 = vld [vmem:[%s3 + $0x30] sm:$0xff]
        %v728 = vld [vmem:[%s3 + $0x38] sm:$0xff]
        %v729 = vld [vmem:[%s3 + $0x40] sm:$0xff]
        %v730 = vld [vmem:[%s3 + $0x48] sm:$0xff]
        %v731 = vld [vmem:[%s3 + $0x50] sm:$0xff]
        %v732 = vld [vmem:[%s3 + $0x58] sm:$0xff]
        %v733 = vld [vmem:[%s3 + $0x60] sm:$0xff]
        %v734 = vld [vmem:[%s3 + $0x68] sm:$0xff]
        %v735 = vld [vmem:[%s3 + $0x70] sm:$0xff]
        %v736 = vld [vmem:[%s3 + $0x78] sm:$0xff]
        %v737 = vld [vmem:[%s3 + $0x80] sm:$0xff]
        %v738 = vld [vmem:[%s3 + $0x88] sm:$0xff]
        %v739 = vld [vmem:[%s3 + $0x90] sm:$0xff]
        %v740 = vld [vmem:[%s3 + $0x98] sm:$0xff]
        %v741 = vld [vmem:[%s3 + $0xa0] sm:$0xff]
        %v742 = vld [vmem:[%s3 + $0xa8] sm:$0xff]
        %v743 = vld [vmem:[%s3 + $0xb0] sm:$0xff]
        %v744 = vld [vmem:[%s3 + $0xb8] sm:$0xff]
        %v745 = vld [vmem:[%s3 + $0xc0] sm:$0xff]
        %v746 = vld [vmem:[%s3 + $0xc8] sm:$0xff]
        %v747 = vld [vmem:[%s3 + $0xd0] sm:$0xff]
        %v748 = vld [vmem:[%s3 + $0xd8] sm:$0xff]
        %v749 = vld [vmem:[%s3 + $0xe0] sm:$0xff]
        %v750 = vld [vmem:[%s3 + $0xe8] sm:$0xff]
        %v751 = vld [vmem:[%s3 + $0xf0] sm:$0xff]
        %v752 = vld [vmem:[%s3 + $0xf8] sm:$0xff]
        %v753 = vld [vmem:[%s3 + $0x100] sm:$0xff]
        %v754 = vld [vmem:[%s3 + $0x108] sm:$0xff]
        %v755 = vld [vmem:[%s3 + $0x110] sm:$0xff]
        %v756 = vld [vmem:[%s3 + $0x118] sm:$0xff]
        %v757 = vld [vmem:[%s3 + $0x120] sm:$0xff]
        %v758 = vld [vmem:[%s3 + $0x128] sm:$0xff]
        %v759 = vld [vmem:[%s3 + $0x130] sm:$0xff]
        %v760 = vld [vmem:[%s3 + $0x138] sm:$0xff]
        %v761 = vld [vmem:[%s3 + $0x140] sm:$0xff]
        %v762 = vld [vmem:[%s3 + $0x148] sm:$0xff]
        %v763 = vld [vmem:[%s3 + $0x150] sm:$0xff]
        %v764 = vld [vmem:[%s3 + $0x158] sm:$0xff]
        %v765 = vld [vmem:[%s3 + $0x160] sm:$0xff]
        %v766 = vld [vmem:[%s3 + $0x168] sm:$0xff]
        %v767 = vld [vmem:[%s3 + $0x170] sm:$0xff]
        %v768 = vld [vmem:[%s3 + $0x178] sm:$0xff]
        %v769 = vld [vmem:[%s3 + $0x180] sm:$0xff]
        %v770 = vld [vmem:[%s3 + $0x188] sm:$0xff]
        %v771 = vld [vmem:[%s3 + $0x190] sm:$0xff]
        %v772 = vld [vmem:[%s3 + $0x198] sm:$0xff]
        %v773 = vld [vmem:[%s3 + $0x1a0] sm:$0xff]
        %v774 = vld [vmem:[%s3 + $0x1a8] sm:$0xff]
        %v775 = vld [vmem:[%s3 + $0x1b0] sm:$0xff]
        %v776 = vld [vmem:[%s3 + $0x1b8] sm:$0xff]
        %v777 = vld [vmem:[%s3 + $0x1c0] sm:$0xff]
        %v778 = vld [vmem:[%s3 + $0x1c8] sm:$0xff]
        %v779 = vld [vmem:[%s3 + $0x1d0] sm:$0xff]
        %v780 = vld [vmem:[%s3 + $0x1d8] sm:$0xff]
        %v781 = vld [vmem:[%s3 + $0x1e0] sm:$0xff]
        %v782 = vld [vmem:[%s3 + $0x1e8] sm:$0xff]
        %v783 = vld [vmem:[%s3 + $0x1f0] sm:$0xff]
        %v784 = vld [vmem:[%s3 + $0x1f8] sm:$0xff]
        %v785 = vld [vmem:[%s3 + $0x200] sm:$0xff]
        %v786 = vld [vmem:[%s3 + $0x208] sm:$0xff]
        %v787 = vld [vmem:[%s3 + $0x210] sm:$0xff]
        %v788 = vld [vmem:[%s3 + $0x218] sm:$0xff]
        %v789 = vld [vmem:[%s3 + $0x220] sm:$0xff]
        %v790 = vld [vmem:[%s3 + $0x228] sm:$0xff]
        %v791 = vld [vmem:[%s3 + $0x230] sm:$0xff]
        %v792 = vld [vmem:[%s3 + $0x238] sm:$0xff]
        %v793 = vld [vmem:[%s3 + $0x240] sm:$0xff]
        %v794 = vld [vmem:[%s3 + $0x248] sm:$0xff]
        %v795 = vld [vmem:[%s3 + $0x250] sm:$0xff]
        %v796 = vld [vmem:[%s3 + $0x258] sm:$0xff]
        %v797 = vld [vmem:[%s3 + $0x260] sm:$0xff]
        %v798 = vld [vmem:[%s3 + $0x268] sm:$0xff]
        %v799 = vld [vmem:[%s3 + $0x270] sm:$0xff]
        %v800 = vld [vmem:[%s3 + $0x278] sm:$0xff]
        %v801 = vld [vmem:[%s3 + $0x280] sm:$0xff]
        %v802 = vld [vmem:[%s3 + $0x288] sm:$0xff]
        %v803 = vld [vmem:[%s3 + $0x290] sm:$0xff]
        %v804 = vld [vmem:[%s3 + $0x298] sm:$0xff]
        %v805 = vld [vmem:[%s3 + $0x2a0] sm:$0xff]
        %v806 = vld [vmem:[%s3 + $0x2a8] sm:$0xff]
        %v807 = vld [vmem:[%s3 + $0x2b0] sm:$0xff]
        %v808 = vld [vmem:[%s3 + $0x2b8] sm:$0xff]
        %v809 = vld [vmem:[%s3 + $0x2c0] sm:$0xff]
        %v810 = vld [vmem:[%s3 + $0x2c8] sm:$0xff]
        %v811 = vld [vmem:[%s3 + $0x2d0] sm:$0xff]
        %v812 = vld [vmem:[%s3 + $0x2d8] sm:$0xff]
        %v813 = vld [vmem:[%s3 + $0x2e0] sm:$0xff]
        %v814 = vld [vmem:[%s3 + $0x2e8] sm:$0xff]
        %v815 = vld [vmem:[%s3 + $0x2f0] sm:$0xff]
        %v816 = vld [vmem:[%s3 + $0x2f8] sm:$0xff]
        %v817 = vld [vmem:[%s3 + $0x300] sm:$0xff]
        %v818 = vld [vmem:[%s3 + $0x308] sm:$0xff]
        %v819 = vld [vmem:[%s3 + $0x310] sm:$0xff]
        %v820 = vld [vmem:[%s3 + $0x318] sm:$0xff]
        %v821 = vld [vmem:[%s3 + $0x320] sm:$0xff]
        %v822 = vld [vmem:[%s3 + $0x328] sm:$0xff]
        %v823 = vld [vmem:[%s3 + $0x330] sm:$0xff]
        %v824 = vld [vmem:[%s3 + $0x338] sm:$0xff]
        %v825 = vld [vmem:[%s3 + $0x340] sm:$0xff]
        %v826 = vld [vmem:[%s3 + $0x348] sm:$0xff]
        %v827 = vld [vmem:[%s3 + $0x350] sm:$0xff]
        %v828 = vld [vmem:[%s3 + $0x358] sm:$0xff]
        %v829 = vld [vmem:[%s3 + $0x360] sm:$0xff]
        %v830 = vld [vmem:[%s3 + $0x368] sm:$0xff]
        %v831 = vld [vmem:[%s3 + $0x370] sm:$0xff]
        %v832 = vld [vmem:[%s3 + $0x378] sm:$0xff]
        %v833 = vld [vmem:[%s3 + $0x380] sm:$0xff]
        %v834 = vld [vmem:[%s3 + $0x388] sm:$0xff]
        %v835 = vld [vmem:[%s3 + $0x390] sm:$0xff]
        %v836 = vld [vmem:[%s3 + $0x398] sm:$0xff]
        %v837 = vld [vmem:[%s3 + $0x3a0] sm:$0xff]
        %v838 = vld [vmem:[%s3 + $0x3a8] sm:$0xff]
        %v839 = vld [vmem:[%s3 + $0x3b0] sm:$0xff]
        %v840 = vld [vmem:[%s3 + $0x3b8] sm:$0xff]
        %v841 = vld [vmem:[%s3 + $0x3c0] sm:$0xff]
        %v842 = vld [vmem:[%s3 + $0x3c8] sm:$0xff]
        %v843 = vld [vmem:[%s3 + $0x3d0] sm:$0xff]
        %v844 = vld [vmem:[%s3 + $0x3d8] sm:$0xff]
        %v845 = vld [vmem:[%s3 + $0x3e0] sm:$0xff]
        %v846 = vld [vmem:[%s3 + $0x3e8] sm:$0xff]
        %v847 = vld [vmem:[%s3 + $0x3f0] sm:$0xff]
        %v848 = vld [vmem:[%s3 + $0x3f8] sm:$0xff]
        %v849 = vld [vmem:[%s3 + $0x400] sm:$0xff]
        %v850 = vld [vmem:[%s3 + $0x408] sm:$0xff]
        %v851 = vld [vmem:[%s3 + $0x410] sm:$0xff]
        %v852 = vld [vmem:[%s3 + $0x418] sm:$0xff]
        %v853 = vld [vmem:[%s3 + $0x420] sm:$0xff]
        %v854 = vld [vmem:[%s3 + $0x428] sm:$0xff]
        %v855 = vld [vmem:[%s3 + $0x430] sm:$0xff]
        %v856 = vld [vmem:[%s3 + $0x438] sm:$0xff]
        %v857 = vld [vmem:[%s3 + $0x440] sm:$0xff]
        %v858 = vld [vmem:[%s3 + $0x448] sm:$0xff]
        %v859 = vld [vmem:[%s3 + $0x450] sm:$0xff]
        %v860 = vld [vmem:[%s3 + $0x458] sm:$0xff]
        %v861 = vld [vmem:[%s3 + $0x460] sm:$0xff]
        %v862 = vld [vmem:[%s3 + $0x468] sm:$0xff]
        %v863 = vld [vmem:[%s3 + $0x470] sm:$0xff]
        %v864 = vld [vmem:[%s3 + $0x478] sm:$0xff]
        %v865 = vld [vmem:[%s4] sm:$0x3]
        %v867 = vlaneseq
        %v868 = vshrl.u32 %v867, 7
        %v869 = vsub.s32 0, %v868
        %v870 = vrot.slane %v865, %v869
        %v871 = vlaneseq
        %v872 = vshrl.u32 %v871, 7
        %v873 = vsub.s32 1, %v872
        %v874 = vrot.slane %v865, %v873
        %v878 = vsel %vm559, %v692, 0
        %v881 = vsel %vm559, %v697, 0
        %883 = vmatprep.subr.mxu0 %v722
        %884 = vmatpush1.msra.mxu0 %v721
        %885 = vmatprep.subr.mxu0 %v724
        %886 = vmatpush1.msra.mxu0 %v723
        %887 = vmatprep.subr.mxu0 %v726
        %888 = vmatpush1.msra.mxu0 %v725
        %889 = vmatprep.subr.mxu0 %v728
        %890 = vmatpush1.msra.mxu0 %v727
        %891 = vmatprep.subr.mxu0 %v730
        %892 = vmatpush1.msra.mxu0 %v729
        %893 = vmatprep.subr.mxu0 %v732
        %894 = vmatpush1.msra.mxu0 %v731
        %895 = vmatprep.subr.mxu0 %v734
        %896 = vmatpush1.msra.mxu0 %v733
        %897 = vmatprep.subr.mxu0 %v736
        %898 = vmatpush1.msra.mxu0 %v735
        %899 = vmatprep.subr.mxu0 %v738
        %900 = vmatpush1.msra.mxu0 %v737
        %901 = vmatprep.subr.mxu0 %v740
        %902 = vmatpush1.msra.mxu0 %v739
        %903 = vmatprep.subr.mxu0 %v742
        %904 = vmatpush1.msra.mxu0 %v741
        %905 = vmatprep.subr.mxu0 %v744
        %906 = vmatpush1.msra.mxu0 %v743
        %907 = vmatprep.subr.mxu0 %v746
        %908 = vmatpush1.msra.mxu0 %v745
        %909 = vmatprep.subr.mxu0 %v748
        %910 = vmatpush1.msra.mxu0 %v747
        %911 = vmatprep.subr.mxu0 %v750
        %912 = vmatpush1.msra.mxu0 %v749
        %913 = vmatprep.subr.mxu0 %v752
        %914 = vmatpush1.msra.mxu0 %v751
        %915 = vmatprep.subr.mxu0 %v754
        %916 = vmatpush1.msra.mxu0 %v753
        %917 = vmatprep.subr.mxu0 %v756
        %918 = vmatpush1.msra.mxu0 %v755
        %919 = vmatprep.subr.mxu0 %v758
        %920 = vmatpush1.msra.mxu0 %v757
        %921 = vmatprep.subr.mxu0 %v760
        %922 = vmatpush1.msra.mxu0 %v759
        %923 = vmatprep.subr.mxu0 %v762
        %924 = vmatpush1.msra.mxu0 %v761
        %925 = vmatprep.subr.mxu0 %v764
        %926 = vmatpush1.msra.mxu0 %v763
        %927 = vmatprep.subr.mxu0 %v766
        %928 = vmatpush1.msra.mxu0 %v765
        %929 = vmatprep.subr.mxu0 %v768
        %930 = vmatpush1.msra.mxu0 %v767
        %931 = vmatprep.subr.mxu0 %v770
        %932 = vmatpush1.msra.mxu0 %v769
        %933 = vmatprep.subr.mxu0 %v772
        %934 = vmatpush1.msra.mxu0 %v771
        %935 = vmatprep.subr.mxu0 %v774
        %936 = vmatpush1.msra.mxu0 %v773
        %937 = vmatprep.subr.mxu0 %v776
        %938 = vmatpush1.msra.mxu0 %v775
        %939 = vmatprep.subr.mxu0 %v778
        %940 = vmatpush1.msra.mxu0 %v777
        %941 = vmatprep.subr.mxu0 %v780
        %942 = vmatpush1.msra.mxu0 %v779
        %943 = vmatprep.subr.mxu0 %v782
        %944 = vmatpush1.msra.mxu0 %v781
        %945 = vmatprep.subr.mxu0 %v784
        %946 = vmatpush1.msra.mxu0 %v783
        %947 = vmatprep.mubr.f32.mxu0 %v689
        %948 = vmatmul.mubr.f32.gmra.mrb[0].mxu0 %v688
        %v949 = vpop.f32.mrb[0].mxu0
        %v950 = vadd.f32 %v870, %v949
        %v951 = vpop.f32.mrb[0].mxu0
        %v952 = vadd.f32 %v874, %v951
        %953 = vmatprep.mubr.f32.mxu0 %v694
        %954 = vmatmul.mubr.f32.gmra.mrb[0].mxu0 %v693
        %v955 = vpop.f32.mrb[0].mxu0
        %v956 = vadd.f32 %v870, %v955
        %v957 = vpop.f32.mrb[0].mxu0
        %v958 = vadd.f32 %v874, %v957
        %959 = vdwg.mxu0
        %960 = vmatprep.subr.mxu0 %v786
        %961 = vmatpush1.msra.mxu0 %v785
        %962 = vmatprep.subr.mxu0 %v788
        %963 = vmatpush1.msra.mxu0 %v787
        %964 = vmatprep.subr.mxu0 %v790
        %965 = vmatpush1.msra.mxu0 %v789
        %966 = vmatprep.subr.mxu0 %v792
        %967 = vmatpush1.msra.mxu0 %v791
        %968 = vmatprep.subr.mxu0 %v794
        %969 = vmatpush1.msra.mxu0 %v793
        %970 = vmatprep.subr.mxu0 %v796
        %971 = vmatpush1.msra.mxu0 %v795
        %972 = vmatprep.subr.mxu0 %v798
        %973 = vmatpush1.msra.mxu0 %v797
        %974 = vmatprep.subr.mxu0 %v800
        %975 = vmatpush1.msra.mxu0 %v799
        %976 = vmatprep.subr.mxu0 %v802
        %977 = vmatpush1.msra.mxu0 %v801
        %978 = vmatprep.subr.mxu0 %v804
        %979 = vmatpush1.msra.mxu0 %v803
        %980 = vmatprep.subr.mxu0 %v806
        %981 = vmatpush1.msra.mxu0 %v805
        %982 = vmatprep.subr.mxu0 %v808
        %983 = vmatpush1.msra.mxu0 %v807
        %984 = vmatprep.subr.mxu0 %v810
        %985 = vmatpush1.msra.mxu0 %v809
        %986 = vmatprep.subr.mxu0 %v812
        %987 = vmatpush1.msra.mxu0 %v811
        %988 = vmatprep.subr.mxu0 %v814
        %989 = vmatpush1.msra.mxu0 %v813
        %990 = vmatprep.subr.mxu0 %v816
        %991 = vmatpush1.msra.mxu0 %v815
        %992 = vmatprep.subr.mxu0 %v818
        %993 = vmatpush1.msra.mxu0 %v817
        %994 = vmatprep.subr.mxu0 %v820
        %995 = vmatpush1.msra.mxu0 %v819
        %996 = vmatprep.subr.mxu0 %v822
        %997 = vmatpush1.msra.mxu0 %v821
        %998 = vmatprep.subr.mxu0 %v824
        %999 = vmatpush1.msra.mxu0 %v823
        %1000 = vmatprep.subr.mxu0 %v826
        %1001 = vmatpush1.msra.mxu0 %v825
        %1002 = vmatprep.subr.mxu0 %v828
        %1003 = vmatpush1.msra.mxu0 %v827
        %1004 = vmatprep.subr.mxu0 %v830
        %1005 = vmatpush1.msra.mxu0 %v829
        %1006 = vmatprep.subr.mxu0 %v832
        %1007 = vmatpush1.msra.mxu0 %v831
        %1008 = vmatprep.subr.mxu0 %v834
        %1009 = vmatpush1.msra.mxu0 %v833
        %1010 = vmatprep.subr.mxu0 %v836
        %1011 = vmatpush1.msra.mxu0 %v835
        %1012 = vmatprep.subr.mxu0 %v838
        %1013 = vmatpush1.msra.mxu0 %v837
        %1014 = vmatprep.subr.mxu0 %v840
        %1015 = vmatpush1.msra.mxu0 %v839
        %1016 = vmatprep.subr.mxu0 %v842
        %1017 = vmatpush1.msra.mxu0 %v841
        %1018 = vmatprep.subr.mxu0 %v844
        %1019 = vmatpush1.msra.mxu0 %v843
        %1020 = vmatprep.subr.mxu0 %v846
        %1021 = vmatpush1.msra.mxu0 %v845
        %1022 = vmatprep.subr.mxu0 %v848
        %1023 = vmatpush1.msra.mxu0 %v847
        %1024 = vmatprep.mubr.f32.mxu0 %v691
        %1025 = vmatmul.mubr.f32.gmra.mrb[0].mxu0 %v690
        %v1026 = vpop.f32.mrb[0].mxu0
        %v1027 = vadd.f32 %v950, %v1026
        %v1028 = vpop.f32.mrb[0].mxu0
        %v1029 = vadd.f32 %v952, %v1028
        %1030 = vmatprep.mubr.f32.mxu0 %v696
        %1031 = vmatmul.mubr.f32.gmra.mrb[0].mxu0 %v695
        %v1032 = vpop.f32.mrb[0].mxu0
        %v1033 = vadd.f32 %v956, %v1032
        %v1034 = vpop.f32.mrb[0].mxu0
        %v1035 = vadd.f32 %v958, %v1034
        %1036 = vdwg.mxu0
        %1037 = vmatprep.subr.mxu0 %v850
        %1038 = vmatpush1.msra.mxu0 %v849
        %1039 = vmatprep.subr.mxu0 %v852
        %1040 = vmatpush1.msra.mxu0 %v851
        %1041 = vmatprep.subr.mxu0 %v854
        %1042 = vmatpush1.msra.mxu0 %v853
        %1043 = vmatprep.subr.mxu0 %v856
        %1044 = vmatpush1.msra.mxu0 %v855
        %1045 = vmatprep.subr.mxu0 %v858
        %1046 = vmatpush1.msra.mxu0 %v857
        %1047 = vmatprep.subr.mxu0 %v860
        %1048 = vmatpush1.msra.mxu0 %v859
        %1049 = vmatprep.subr.mxu0 %v862
        %1050 = vmatpush1.msra.mxu0 %v861
        %1051 = vmatprep.subr.mxu0 %v864
        %1052 = vmatpush1.msra.mxu0 %v863
        %1053 = vmatprep.subr.mxu0 0.0
        %1054 = vmatpush1.msra.mxu0 0.0
        %1055 = vmatprep.subr.mxu0 0.0
        %1056 = vmatpush1.msra.mxu0 0.0
        %1057 = vmatprep.subr.mxu0 0.0
        %1058 = vmatpush1.msra.mxu0 0.0
        %1059 = vmatprep.subr.mxu0 0.0
        %1060 = vmatpush1.msra.mxu0 0.0
        %1061 = vmatprep.subr.mxu0 0.0
        %1062 = vmatpush1.msra.mxu0 0.0
        %1063 = vmatprep.subr.mxu0 0.0
        %1064 = vmatpush1.msra.mxu0 0.0
        %1065 = vmatprep.subr.mxu0 0.0
        %1066 = vmatpush1.msra.mxu0 0.0
        %1067 = vmatprep.subr.mxu0 0.0
        %1068 = vmatpush1.msra.mxu0 0.0
        %1069 = vmatprep.subr.mxu0 0.0
        %1070 = vmatpush1.msra.mxu0 0.0
        %1071 = vmatprep.subr.mxu0 0.0
        %1072 = vmatpush1.msra.mxu0 0.0
        %1073 = vmatprep.subr.mxu0 0.0
        %1074 = vmatpush1.msra.mxu0 0.0
        %1075 = vmatprep.subr.mxu0 0.0
        %1076 = vmatpush1.msra.mxu0 0.0
        %1077 = vmatprep.subr.mxu0 0.0
        %1078 = vmatpush1.msra.mxu0 0.0
        %1079 = vmatprep.subr.mxu0 0.0
        %1080 = vmatpush1.msra.mxu0 0.0
        %1081 = vmatprep.subr.mxu0 0.0
        %1082 = vmatpush1.msra.mxu0 0.0
        %1083 = vmatprep.subr.mxu0 0.0
        %1084 = vmatpush1.msra.mxu0 0.0
        %1085 = vmatprep.subr.mxu0 0.0
        %1086 = vmatpush1.msra.mxu0 0.0
        %1087 = vmatprep.subr.mxu0 0.0
        %1088 = vmatpush1.msra.mxu0 0.0
        %1089 = vmatprep.subr.mxu0 0.0
        %1090 = vmatpush1.msra.mxu0 0.0
        %1091 = vmatprep.subr.mxu0 0.0
        %1092 = vmatpush1.msra.mxu0 0.0
        %1093 = vmatprep.subr.mxu0 0.0
        %1094 = vmatpush1.msra.mxu0 0.0
        %1095 = vmatprep.subr.mxu0 0.0
        %1096 = vmatpush1.msra.mxu0 0.0
        %1097 = vmatprep.subr.mxu0 0.0
        %1098 = vmatpush1.msra.mxu0 0.0
        %1099 = vmatprep.subr.mxu0 0.0
        %1100 = vmatpush1.msra.mxu0 0.0
        %1101 = vmatprep.mubr.f32.mxu0 0.0
        %1102 = vmatmul.mubr.f32.gmra.mrb[0].mxu0 %v878
        %v1103 = vpop.f32.mrb[0].mxu0
        %v1104 = vadd.f32 %v1027, %v1103
        %v1105 = vpop.f32.mrb[0].mxu0
        %v1106 = vadd.f32 %v1029, %v1105
        %1107 = vmatprep.mubr.f32.mxu0 0.0
        %1108 = vmatmul.mubr.f32.gmra.mrb[0].mxu0 %v881
        %v1109 = vpop.f32.mrb[0].mxu0
        %v1110 = vadd.f32 %v1033, %v1109
        %v1111 = vpop.f32.mrb[0].mxu0
        %v1112 = vadd.f32 %v1035, %v1111
        %1113 = vdwg.mxu0
        %v1114 = vmul.f32 %v1104, %v1104
        %v1115 = vmul.f32 %v1110, %v1110
        %v1116 = vsel %vm559, %v1114, 0.0
        %1117 = vadd.xlane.f32.xlu0 %v1116
        %v1118 = vpop.xlane.xlu0 %1117
        %v1119 = vsel %vm559, %v1115, 0.0
        %1120 = vadd.xlane.f32.xlu0 %v1119
        %v1121 = vpop.xlane.xlu0 %1120
        %v1122 = vmul.f32 %v1118, 0.5
        %v1123 = vmul.f32 %v1121, 0.5
        %v1124 = vsub.f32 %v1106, %v1122
        %v1125 = vsub.f32 %v1112, %v1123
        %v1126 = vmul.f32 %v1124, 1.442695
        %v1127 = vpow.pop %v1126
        %v1128 = vmul.f32 %v1125, 1.442695
        %v1129 = vpow.pop %v1128
        %v1130 = vmul.f32 %v1127, 0.17677669
        %v1131 = vmul.f32 %v1129, 0.17677669
        %v1132 = vsel %vm705, 1, 0
        %v1133 = vsel %vm706, 1, 0
        %vm1134 = vcmp.eq.s32.totalorder %v1132, 1
        %vm1135 = vcmp.eq.s32.totalorder %v1133, 1
        %v1136 = vsel %vm1134, %v1130, 0.0
        %v1137 = vsel %vm1135, %v1131, 0.0
        %v1138 = vld [vmem:[#allocation2] sm:$0x1]
        %vm1139 = vcmask 261120
        %v1140 = vsel %vm1139, %v1136, 0.0
        %v1141 = vsel %vm1139, %v1137, 0.0
        %v1142 = vadd.f32 %v1140, %v1141
        %v1143 = vrot.slane %v1142, 4
        %v1144 = vadd.f32 %v1142, %v1143
        %v1145 = vrot.slane %v1144, 2
        %v1146 = vadd.f32 %v1144, %v1145
        %v1147 = vrot.slane %v1146, 1
        %v1148 = vadd.f32 %v1146, %v1147
        %v1149 = vadd.f32 %v1138, %v1148
        %vm1150 = vcmask 253952
        %1151 = vst.msk [vmem:[#allocation2] sm:$0x1] %vm1150, %v1149
        %v1152 = vld [vmem:[#allocation3] sm:$0xff]
        %v1153 = vld [vmem:[#allocation3 + $0x8] sm:$0xff]
        %v1154 = vld [vmem:[#allocation3 + $0x10] sm:$0xff]
        %v1155 = vld [vmem:[#allocation3 + $0x18] sm:$0xff]
        %1156 = vxpose.xlu0.b32.start [1/16] %v1136, 128
        %1157 = vxpose.xlu0.b32.cont [2/16] %v1137, 128
        %1158 = vxpose.xlu0.b32.cont [3/16] 0.0, 128
        %1159 = vxpose.xlu0.b32.cont [4/16] 0.0, 128
        %1160 = vxpose.xlu0.b32.cont [5/16] 0.0, 128
        %1161 = vxpose.xlu0.b32.cont [6/16] 0.0, 128
        %1162 = vxpose.xlu0.b32.cont [7/16] 0.0, 128
        %1163 = vxpose.xlu0.b32.cont [8/16] 0.0, 128
        %1164 = vxpose.xlu0.b32.cont [9/16] 0.0, 128
        %1165 = vxpose.xlu0.b32.cont [10/16] 0.0, 128
        %1166 = vxpose.xlu0.b32.cont [11/16] 0.0, 128
        %1167 = vxpose.xlu0.b32.cont [12/16] 0.0, 128
        %1168 = vxpose.xlu0.b32.cont [13/16] 0.0, 128
        %1169 = vxpose.xlu0.b32.cont [14/16] 0.0, 128
        %1170 = vxpose.xlu0.b32.cont [15/16] 0.0, 128
        %1171 = vxpose.xlu0.b32.end [16/16] 0.0, 128
        %v1172 = vpop.trf.xlu0
        %v1173 = vpop.trf.xlu0
        %v1174 = vpop.trf.xlu0
        %v1175 = vpop.trf.xlu0
        %v1176 = vpop.trf.xlu0
        %v1177 = vpop.trf.xlu0
        %v1178 = vpop.trf.xlu0
        %v1179 = vpop.trf.xlu0
        %v1180 = vpop.trf.xlu0
        %v1181 = vpop.trf.xlu0
        %v1182 = vpop.trf.xlu0
        %v1183 = vpop.trf.xlu0
        %v1184 = vpop.trf.xlu0
        %v1185 = vpop.trf.xlu0
        %v1186 = vpop.trf.xlu0
        %v1187 = vpop.trf.xlu0
        %1190 = vrot.lane.b32.xlu0 %v1104, 64
        %v1191 = vpop.permute.xlu0 %1190
        %1192 = vrot.lane.b32.xlu0 %v1110, 64
        %v1193 = vpop.permute.xlu0 %1192
        %vm1196 = vcmask 130048
        %v1198 = vsel %vm1196, %v1172, 0
        %v1201 = vsel %vm1196, %v1173, 0
        %v1204 = vsel %vm1196, %v1174, 0
        %v1207 = vsel %vm1196, %v1175, 0
        %1209 = vmatprep.subr.mxu0 0.0
        %1210 = vmatpush1.msra.mxu0 %v1191
        %1211 = vmatprep.subr.mxu0 0.0
        %1212 = vmatpush1.msra.mxu0 %v1193
        %1213 = vmatprep.subr.mxu0 0.0
        %1214 = vmatpush1.msra.mxu0 0.0
        %1215 = vmatprep.subr.mxu0 0.0
        %1216 = vmatpush1.msra.mxu0 0.0
        %1217 = vmatprep.subr.mxu0 0.0
        %1218 = vmatpush1.msra.mxu0 0.0
        %1219 = vmatprep.subr.mxu0 0.0
        %1220 = vmatpush1.msra.mxu0 0.0
        %1221 = vmatprep.subr.mxu0 0.0
        %1222 = vmatpush1.msra.mxu0 0.0
        %1223 = vmatprep.subr.mxu0 0.0
        %1224 = vmatpush1.msra.mxu0 0.0
        %1225 = vmatprep.subr.mxu0 0.0
        %1226 = vmatpush1.msra.mxu0 0.0
        %1227 = vmatprep.subr.mxu0 0.0
        %1228 = vmatpush1.msra.mxu0 0.0
        %1229 = vmatprep.subr.mxu0 0.0
        %1230 = vmatpush1.msra.mxu0 0.0
        %1231 = vmatprep.subr.mxu0 0.0
        %1232 = vmatpush1.msra.mxu0 0.0
        %1233 = vmatprep.subr.mxu0 0.0
        %1234 = vmatpush1.msra.mxu0 0.0
        %1235 = vmatprep.subr.mxu0 0.0
        %1236 = vmatpush1.msra.mxu0 0.0
        %1237 = vmatprep.subr.mxu0 0.0
        %1238 = vmatpush1.msra.mxu0 0.0
        %1239 = vmatprep.subr.mxu0 0.0
        %1240 = vmatpush1.msra.mxu0 0.0
        %1241 = vmatprep.subr.mxu0 0.0
        %1242 = vmatpush1.msra.mxu0 0.0
        %1243 = vmatprep.subr.mxu0 0.0
        %1244 = vmatpush1.msra.mxu0 0.0
        %1245 = vmatprep.subr.mxu0 0.0
        %1246 = vmatpush1.msra.mxu0 0.0
        %1247 = vmatprep.subr.mxu0 0.0
        %1248 = vmatpush1.msra.mxu0 0.0
        %1249 = vmatprep.subr.mxu0 0.0
        %1250 = vmatpush1.msra.mxu0 0.0
        %1251 = vmatprep.subr.mxu0 0.0
        %1252 = vmatpush1.msra.mxu0 0.0
        %1253 = vmatprep.subr.mxu0 0.0
        %1254 = vmatpush1.msra.mxu0 0.0
        %1255 = vmatprep.subr.mxu0 0.0
        %1256 = vmatpush1.msra.mxu0 0.0
        %1257 = vmatprep.subr.mxu0 0.0
        %1258 = vmatpush1.msra.mxu0 0.0
        %1259 = vmatprep.subr.mxu0 0.0
        %1260 = vmatpush1.msra.mxu0 0.0
        %1261 = vmatprep.subr.mxu0 0.0
        %1262 = vmatpush1.msra.mxu0 0.0
        %1263 = vmatprep.subr.mxu0 0.0
        %1264 = vmatpush1.msra.mxu0 0.0
        %1265 = vmatprep.subr.mxu0 0.0
        %1266 = vmatpush1.msra.mxu0 0.0
        %1267 = vmatprep.subr.mxu0 0.0
        %1268 = vmatpush1.msra.mxu0 0.0
        %1269 = vmatprep.subr.mxu0 0.0
        %1270 = vmatpush1.msra.mxu0 0.0
        %1271 = vmatprep.subr.mxu0 0.0
        %1272 = vmatpush1.msra.mxu0 0.0
        %1273 = vmatprep.mubr.f32.mxu0 0.0
        %1274 = vmatmul.mubr.f32.gmra.mrb[0].mxu0 %v1198
        %v1275 = vpop.f32.mrb[0].mxu0
        %v1276 = vadd.f32 0.0, %v1275
        %v1277 = vpop.f32.mrb[0].mxu0
        %1278 = vmatprep.mubr.f32.mxu0 0.0
        %1279 = vmatmul.mubr.f32.gmra.mrb[0].mxu0 %v1201
        %v1280 = vpop.f32.mrb[0].mxu0
        %v1281 = vadd.f32 0.0, %v1280
        %v1282 = vpop.f32.mrb[0].mxu0
        %1283 = vmatprep.mubr.f32.mxu0 0.0
        %1284 = vmatmul.mubr.f32.gmra.mrb[0].mxu0 %v1204
        %v1285 = vpop.f32.mrb[0].mxu0
        %v1286 = vadd.f32 0.0, %v1285
        %v1287 = vpop.f32.mrb[0].mxu0
        %1288 = vmatprep.mubr.f32.mxu0 0.0
        %1289 = vmatmul.mubr.f32.gmra.mrb[0].mxu0 %v1207
        %v1290 = vpop.f32.mrb[0].mxu0
        %v1291 = vadd.f32 0.0, %v1290
        %v1292 = vpop.f32.mrb[0].mxu0
        %1293 = vdwg.mxu0
        %v1294 = vadd.f32 %v1152, %v1276
        %v1295 = vadd.f32 %v1153, %v1281
        %v1296 = vadd.f32 %v1154, %v1286
        %v1297 = vadd.f32 %v1155, %v1291
        %1298 = vst.msk [vmem:[#allocation3] sm:$0xff] %vm559, %v1294
        %1299 = vst.msk [vmem:[#allocation3 + $0x8] sm:$0xff] %vm559, %v1295
        %1300 = vst.msk [vmem:[#allocation3 + $0x10] sm:$0xff] %vm559, %v1296
        %1301 = vst.msk [vmem:[#allocation3 + $0x18] sm:$0xff] %vm559, %v1297
      $region84: #{t2t_forward.4} parent=79 // pred_fallthru
        _
      %p1302 = scmp.eq.s32.totalorder %s32, 1
      // Predicated region
      $region89: #{t2t_forward.4} parent=79 // pred_check
        %p1303 = pneg %p1302
      $region90: #{t2t_forward.4} parent=79 // pred_check_branch
        %1305 = sbr.rel (%p1303) target = $region92
      $region91: #{t2t_forward.4} parent=79 // pred_region
        %v1306 = vld [vmem:[%s5] sm:$0xff]
        %v1307 = vld [vmem:[%s5 + $0x8] sm:$0xff]
        %v1308 = vld [vmem:[%s5 + $0x10] sm:$0xff]
        %v1309 = vld [vmem:[%s5 + $0x18] sm:$0xff]
        %v1310 = vld [vmem:[%s5 + $0x20] sm:$0xff]
        %v1311 = vld [vmem:[%s5 + $0x28] sm:$0xff]
        %v1312 = vld [vmem:[%s5 + $0x30] sm:$0xff]
        %v1313 = vld [vmem:[%s5 + $0x38] sm:$0xff]
        %v1314 = vld [vmem:[%s5 + $0x40] sm:$0xff]
        %v1315 = vld [vmem:[%s5 + $0x48] sm:$0xff]
        %v1316 = vld [vmem:[%s5 + $0x50] sm:$0xff]
        %v1317 = vld [vmem:[%s5 + $0x58] sm:$0xff]
        %v1318 = vld [vmem:[%s5 + $0x60] sm:$0xff]
        %v1319 = vld [vmem:[%s5 + $0x68] sm:$0xff]
        %v1320 = vld [vmem:[%s5 + $0x70] sm:$0xff]
        %v1321 = vld [vmem:[%s5 + $0x78] sm:$0xff]
        %v1322 = vld [vmem:[%s5 + $0x80] sm:$0xff]
        %v1323 = vld [vmem:[%s5 + $0x88] sm:$0xff]
        %v1324 = vld [vmem:[%s5 + $0x90] sm:$0xff]
        %v1325 = vld [vmem:[%s5 + $0x98] sm:$0xff]
        %v1326 = vld [vmem:[%s5 + $0xa0] sm:$0xff]
        %v1327 = vld [vmem:[%s5 + $0xa8] sm:$0xff]
        %v1328 = vld [vmem:[%s5 + $0xb0] sm:$0xff]
        %v1329 = vld [vmem:[%s5 + $0xb8] sm:$0xff]
        %v1330 = vld [vmem:[%s5 + $0xc0] sm:$0xff]
        %v1331 = vld [vmem:[%s5 + $0xc8] sm:$0xff]
        %v1332 = vld [vmem:[%s5 + $0xd0] sm:$0xff]
        %v1333 = vld [vmem:[%s5 + $0xd8] sm:$0xff]
        %v1334 = vld [vmem:[%s5 + $0xe0] sm:$0xff]
        %v1335 = vld [vmem:[%s5 + $0xe8] sm:$0xff]
        %v1336 = vld [vmem:[%s5 + $0xf0] sm:$0xff]
        %v1337 = vld [vmem:[%s5 + $0xf8] sm:$0xff]
        %v1338 = vld [vmem:[%s5 + $0x100] sm:$0xff]
        %v1339 = vld [vmem:[%s5 + $0x108] sm:$0xff]
        %v1340 = vld [vmem:[%s5 + $0x110] sm:$0xff]
        %v1341 = vld [vmem:[%s5 + $0x118] sm:$0xff]
        %v1342 = vld [vmem:[%s5 + $0x120] sm:$0xff]
        %v1343 = vld [vmem:[%s5 + $0x128] sm:$0xff]
        %v1344 = vld [vmem:[%s5 + $0x130] sm:$0xff]
        %v1345 = vld [vmem:[%s5 + $0x138] sm:$0xff]
        %v1346 = vld [vmem:[%s5 + $0x140] sm:$0xff]
        %v1347 = vld [vmem:[%s5 + $0x148] sm:$0xff]
        %v1348 = vld [vmem:[%s5 + $0x150] sm:$0xff]
        %v1349 = vld [vmem:[%s5 + $0x158] sm:$0xff]
        %v1350 = vld [vmem:[%s5 + $0x160] sm:$0xff]
        %v1351 = vld [vmem:[%s5 + $0x168] sm:$0xff]
        %v1352 = vld [vmem:[%s5 + $0x170] sm:$0xff]
        %v1353 = vld [vmem:[%s5 + $0x178] sm:$0xff]
        %v1354 = vld [vmem:[%s5 + $0x180] sm:$0xff]
        %v1355 = vld [vmem:[%s5 + $0x188] sm:$0xff]
        %v1356 = vld [vmem:[%s5 + $0x190] sm:$0xff]
        %v1357 = vld [vmem:[%s5 + $0x198] sm:$0xff]
        %v1358 = vld [vmem:[%s5 + $0x1a0] sm:$0xff]
        %v1359 = vld [vmem:[%s5 + $0x1a8] sm:$0xff]
        %v1360 = vld [vmem:[%s5 + $0x1b0] sm:$0xff]
        %v1361 = vld [vmem:[%s5 + $0x1b8] sm:$0xff]
        %v1362 = vld [vmem:[%s5 + $0x1c0] sm:$0xff]
        %v1363 = vld [vmem:[%s5 + $0x1c8] sm:$0xff]
        %v1364 = vld [vmem:[%s5 + $0x1d0] sm:$0xff]
        %v1365 = vld [vmem:[%s5 + $0x1d8] sm:$0xff]
        %v1366 = vld [vmem:[%s5 + $0x1e0] sm:$0xff]
        %v1367 = vld [vmem:[%s5 + $0x1e8] sm:$0xff]
        %v1368 = vld [vmem:[%s5 + $0x1f0] sm:$0xff]
        %v1369 = vld [vmem:[%s5 + $0x1f8] sm:$0xff]
        %v1370 = vld [vmem:[%s5 + $0x200] sm:$0xff]
        %v1371 = vld [vmem:[%s5 + $0x208] sm:$0xff]
        %v1372 = vld [vmem:[%s5 + $0x210] sm:$0xff]
        %v1373 = vld [vmem:[%s5 + $0x218] sm:$0xff]
        %v1374 = vld [vmem:[%s5 + $0x220] sm:$0xff]
        %v1375 = vld [vmem:[%s5 + $0x228] sm:$0xff]
        %v1376 = vld [vmem:[%s5 + $0x230] sm:$0xff]
        %v1377 = vld [vmem:[%s5 + $0x238] sm:$0xff]
        %v1378 = vld [vmem:[%s5 + $0x240] sm:$0xff]
        %v1379 = vld [vmem:[%s5 + $0x248] sm:$0xff]
        %v1380 = vld [vmem:[%s5 + $0x250] sm:$0xff]
        %v1381 = vld [vmem:[%s5 + $0x258] sm:$0xff]
        %v1382 = vld [vmem:[%s5 + $0x260] sm:$0xff]
        %v1383 = vld [vmem:[%s5 + $0x268] sm:$0xff]
        %v1384 = vld [vmem:[%s5 + $0x270] sm:$0xff]
        %v1385 = vld [vmem:[%s5 + $0x278] sm:$0xff]
        %v1386 = vld [vmem:[%s5 + $0x280] sm:$0xff]
        %v1387 = vld [vmem:[%s5 + $0x288] sm:$0xff]
        %v1388 = vld [vmem:[%s5 + $0x290] sm:$0xff]
        %v1389 = vld [vmem:[%s5 + $0x298] sm:$0xff]
        %v1390 = vld [vmem:[%s5 + $0x2a0] sm:$0xff]
        %v1391 = vld [vmem:[%s5 + $0x2a8] sm:$0xff]
        %v1392 = vld [vmem:[%s5 + $0x2b0] sm:$0xff]
        %v1393 = vld [vmem:[%s5 + $0x2b8] sm:$0xff]
        %v1394 = vld [vmem:[%s5 + $0x2c0] sm:$0xff]
        %v1395 = vld [vmem:[%s5 + $0x2c8] sm:$0xff]
        %v1396 = vld [vmem:[%s5 + $0x2d0] sm:$0xff]
        %v1397 = vld [vmem:[%s5 + $0x2d8] sm:$0xff]
        %v1398 = vld [vmem:[%s5 + $0x2e0] sm:$0xff]
        %v1399 = vld [vmem:[%s5 + $0x2e8] sm:$0xff]
        %v1400 = vld [vmem:[%s5 + $0x2f0] sm:$0xff]
        %v1401 = vld [vmem:[%s5 + $0x2f8] sm:$0xff]
        %v1402 = vld [vmem:[%s5 + $0x300] sm:$0xff]
        %v1403 = vld [vmem:[%s5 + $0x308] sm:$0xff]
        %v1404 = vld [vmem:[%s5 + $0x310] sm:$0xff]
        %v1405 = vld [vmem:[%s5 + $0x318] sm:$0xff]
        %v1406 = vld [vmem:[%s5 + $0x320] sm:$0xff]
        %v1407 = vld [vmem:[%s5 + $0x328] sm:$0xff]
        %v1408 = vld [vmem:[%s5 + $0x330] sm:$0xff]
        %v1409 = vld [vmem:[%s5 + $0x338] sm:$0xff]
        %v1410 = vld [vmem:[%s5 + $0x340] sm:$0xff]
        %v1411 = vld [vmem:[%s5 + $0x348] sm:$0xff]
        %v1412 = vld [vmem:[%s5 + $0x350] sm:$0xff]
        %v1413 = vld [vmem:[%s5 + $0x358] sm:$0xff]
        %v1414 = vld [vmem:[%s5 + $0x360] sm:$0xff]
        %v1415 = vld [vmem:[%s5 + $0x368] sm:$0xff]
        %v1416 = vld [vmem:[%s5 + $0x370] sm:$0xff]
        %v1417 = vld [vmem:[%s5 + $0x378] sm:$0xff]
        %v1418 = vld [vmem:[%s5 + $0x380] sm:$0xff]
        %v1419 = vld [vmem:[%s5 + $0x388] sm:$0xff]
        %v1420 = vld [vmem:[%s5 + $0x390] sm:$0xff]
        %v1421 = vld [vmem:[%s5 + $0x398] sm:$0xff]
        %v1422 = vld [vmem:[%s5 + $0x3a0] sm:$0xff]
        %v1423 = vld [vmem:[%s5 + $0x3a8] sm:$0xff]
        %v1424 = vld [vmem:[%s5 + $0x3b0] sm:$0xff]
        %v1425 = vld [vmem:[%s5 + $0x3b8] sm:$0xff]
        %v1426 = vld [vmem:[%s5 + $0x3c0] sm:$0xff]
        %v1427 = vld [vmem:[%s5 + $0x3c8] sm:$0xff]
        %v1428 = vld [vmem:[%s5 + $0x3d0] sm:$0xff]
        %v1429 = vld [vmem:[%s5 + $0x3d8] sm:$0xff]
        %v1430 = vld [vmem:[%s5 + $0x3e0] sm:$0xff]
        %v1431 = vld [vmem:[%s5 + $0x3e8] sm:$0xff]
        %v1432 = vld [vmem:[%s5 + $0x3f0] sm:$0xff]
        %v1433 = vld [vmem:[%s5 + $0x3f8] sm:$0xff]
        %v1434 = vld [vmem:[%s5 + $0x400] sm:$0xff]
        %v1435 = vld [vmem:[%s5 + $0x408] sm:$0xff]
        %v1436 = vld [vmem:[%s5 + $0x410] sm:$0xff]
        %v1437 = vld [vmem:[%s5 + $0x418] sm:$0xff]
        %v1438 = vld [vmem:[%s5 + $0x420] sm:$0xff]
        %v1439 = vld [vmem:[%s5 + $0x428] sm:$0xff]
        %v1440 = vld [vmem:[%s5 + $0x430] sm:$0xff]
        %v1441 = vld [vmem:[%s5 + $0x438] sm:$0xff]
        %v1442 = vld [vmem:[%s5 + $0x440] sm:$0xff]
        %v1443 = vld [vmem:[%s5 + $0x448] sm:$0xff]
        %v1444 = vld [vmem:[%s5 + $0x450] sm:$0xff]
        %v1445 = vld [vmem:[%s5 + $0x458] sm:$0xff]
        %v1446 = vld [vmem:[%s5 + $0x460] sm:$0xff]
        %v1447 = vld [vmem:[%s5 + $0x468] sm:$0xff]
        %v1448 = vld [vmem:[%s5 + $0x470] sm:$0xff]
        %v1449 = vld [vmem:[%s5 + $0x478] sm:$0xff]
        %v1450 = vld [vmem:[%s6] sm:$0x3]
        %v1452 = vlaneseq
        %v1453 = vshrl.u32 %v1452, 7
        %v1454 = vsub.s32 0, %v1453
        %v1455 = vrot.slane %v1450, %v1454
        %v1456 = vlaneseq
        %v1457 = vshrl.u32 %v1456, 7
        %v1458 = vsub.s32 1, %v1457
        %v1459 = vrot.slane %v1450, %v1458
        %v1463 = vsel %vm559, %v692, 0
        %v1466 = vsel %vm559, %v697, 0
        %1468 = vmatprep.subr.mxu0 %v1307
        %1469 = vmatpush1.msra.mxu0 %v1306
        %1470 = vmatprep.subr.mxu0 %v1309
        %1471 = vmatpush1.msra.mxu0 %v1308
        %1472 = vmatprep.subr.mxu0 %v1311
        %1473 = vmatpush1.msra.mxu0 %v1310
        %1474 = vmatprep.subr.mxu0 %v1313
        %1475 = vmatpush1.msra.mxu0 %v1312
        %1476 = vmatprep.subr.mxu0 %v1315
        %1477 = vmatpush1.msra.mxu0 %v1314
        %1478 = vmatprep.subr.mxu0 %v1317
        %1479 = vmatpush1.msra.mxu0 %v1316
        %1480 = vmatprep.subr.mxu0 %v1319
        %1481 = vmatpush1.msra.mxu0 %v1318
        %1482 = vmatprep.subr.mxu0 %v1321
        %1483 = vmatpush1.msra.mxu0 %v1320
        %1484 = vmatprep.subr.mxu0 %v1323
        %1485 = vmatpush1.msra.mxu0 %v1322
        %1486 = vmatprep.subr.mxu0 %v1325
        %1487 = vmatpush1.msra.mxu0 %v1324
        %1488 = vmatprep.subr.mxu0 %v1327
        %1489 = vmatpush1.msra.mxu0 %v1326
        %1490 = vmatprep.subr.mxu0 %v1329
        %1491 = vmatpush1.msra.mxu0 %v1328
        %1492 = vmatprep.subr.mxu0 %v1331
        %1493 = vmatpush1.msra.mxu0 %v1330
        %1494 = vmatprep.subr.mxu0 %v1333
        %1495 = vmatpush1.msra.mxu0 %v1332
        %1496 = vmatprep.subr.mxu0 %v1335
        %1497 = vmatpush1.msra.mxu0 %v1334
        %1498 = vmatprep.subr.mxu0 %v1337
        %1499 = vmatpush1.msra.mxu0 %v1336
        %1500 = vmatprep.subr.mxu0 %v1339
        %1501 = vmatpush1.msra.mxu0 %v1338
        %1502 = vmatprep.subr.mxu0 %v1341
        %1503 = vmatpush1.msra.mxu0 %v1340
        %1504 = vmatprep.subr.mxu0 %v1343
        %1505 = vmatpush1.msra.mxu0 %v1342
        %1506 = vmatprep.subr.mxu0 %v1345
        %1507 = vmatpush1.msra.mxu0 %v1344
        %1508 = vmatprep.subr.mxu0 %v1347
        %1509 = vmatpush1.msra.mxu0 %v1346
        %1510 = vmatprep.subr.mxu0 %v1349
        %1511 = vmatpush1.msra.mxu0 %v1348
        %1512 = vmatprep.subr.mxu0 %v1351
        %1513 = vmatpush1.msra.mxu0 %v1350
        %1514 = vmatprep.subr.mxu0 %v1353
        %1515 = vmatpush1.msra.mxu0 %v1352
        %1516 = vmatprep.subr.mxu0 %v1355
        %1517 = vmatpush1.msra.mxu0 %v1354
        %1518 = vmatprep.subr.mxu0 %v1357
        %1519 = vmatpush1.msra.mxu0 %v1356
        %1520 = vmatprep.subr.mxu0 %v1359
        %1521 = vmatpush1.msra.mxu0 %v1358
        %1522 = vmatprep.subr.mxu0 %v1361
        %1523 = vmatpush1.msra.mxu0 %v1360
        %1524 = vmatprep.subr.mxu0 %v1363
        %1525 = vmatpush1.msra.mxu0 %v1362
        %1526 = vmatprep.subr.mxu0 %v1365
        %1527 = vmatpush1.msra.mxu0 %v1364
        %1528 = vmatprep.subr.mxu0 %v1367
        %1529 = vmatpush1.msra.mxu0 %v1366
        %1530 = vmatprep.subr.mxu0 %v1369
        %1531 = vmatpush1.msra.mxu0 %v1368
        %1532 = vmatprep.mubr.f32.mxu0 %v689
        %1533 = vmatmul.mubr.f32.gmra.mrb[0].mxu0 %v688
        %v1534 = vpop.f32.mrb[0].mxu0
        %v1535 = vadd.f32 %v1455, %v1534
        %v1536 = vpop.f32.mrb[0].mxu0
        %v1537 = vadd.f32 %v1459, %v1536
        %1538 = vmatprep.mubr.f32.mxu0 %v694
        %1539 = vmatmul.mubr.f32.gmra.mrb[0].mxu0 %v693
        %v1540 = vpop.f32.mrb[0].mxu0
        %v1541 = vadd.f32 %v1455, %v1540
        %v1542 = vpop.f32.mrb[0].mxu0
        %v1543 = vadd.f32 %v1459, %v1542
        %1544 = vdwg.mxu0
        %1545 = vmatprep.subr.mxu0 %v1371
        %1546 = vmatpush1.msra.mxu0 %v1370
        %1547 = vmatprep.subr.mxu0 %v1373
        %1548 = vmatpush1.msra.mxu0 %v1372
        %1549 = vmatprep.subr.mxu0 %v1375
        %1550 = vmatpush1.msra.mxu0 %v1374
        %1551 = vmatprep.subr.mxu0 %v1377
        %1552 = vmatpush1.msra.mxu0 %v1376
        %1553 = vmatprep.subr.mxu0 %v1379
        %1554 = vmatpush1.msra.mxu0 %v1378
        %1555 = vmatprep.subr.mxu0 %v1381
        %1556 = vmatpush1.msra.mxu0 %v1380
        %1557 = vmatprep.subr.mxu0 %v1383
        %1558 = vmatpush1.msra.mxu0 %v1382
        %1559 = vmatprep.subr.mxu0 %v1385
        %1560 = vmatpush1.msra.mxu0 %v1384
        %1561 = vmatprep.subr.mxu0 %v1387
        %1562 = vmatpush1.msra.mxu0 %v1386
        %1563 = vmatprep.subr.mxu0 %v1389
        %1564 = vmatpush1.msra.mxu0 %v1388
        %1565 = vmatprep.subr.mxu0 %v1391
        %1566 = vmatpush1.msra.mxu0 %v1390
        %1567 = vmatprep.subr.mxu0 %v1393
        %1568 = vmatpush1.msra.mxu0 %v1392
        %1569 = vmatprep.subr.mxu0 %v1395
        %1570 = vmatpush1.msra.mxu0 %v1394
        %1571 = vmatprep.subr.mxu0 %v1397
        %1572 = vmatpush1.msra.mxu0 %v1396
        %1573 = vmatprep.subr.mxu0 %v1399
        %1574 = vmatpush1.msra.mxu0 %v1398
        %1575 = vmatprep.subr.mxu0 %v1401
        %1576 = vmatpush1.msra.mxu0 %v1400
        %1577 = vmatprep.subr.mxu0 %v1403
        %1578 = vmatpush1.msra.mxu0 %v1402
        %1579 = vmatprep.subr.mxu0 %v1405
        %1580 = vmatpush1.msra.mxu0 %v1404
        %1581 = vmatprep.subr.mxu0 %v1407
        %1582 = vmatpush1.msra.mxu0 %v1406
        %1583 = vmatprep.subr.mxu0 %v1409
        %1584 = vmatpush1.msra.mxu0 %v1408
        %1585 = vmatprep.subr.mxu0 %v1411
        %1586 = vmatpush1.msra.mxu0 %v1410
        %1587 = vmatprep.subr.mxu0 %v1413
        %1588 = vmatpush1.msra.mxu0 %v1412
        %1589 = vmatprep.subr.mxu0 %v1415
        %1590 = vmatpush1.msra.mxu0 %v1414
        %1591 = vmatprep.subr.mxu0 %v1417
        %1592 = vmatpush1.msra.mxu0 %v1416
        %1593 = vmatprep.subr.mxu0 %v1419
        %1594 = vmatpush1.msra.mxu0 %v1418
        %1595 = vmatprep.subr.mxu0 %v1421
        %1596 = vmatpush1.msra.mxu0 %v1420
        %1597 = vmatprep.subr.mxu0 %v1423
        %1598 = vmatpush1.msra.mxu0 %v1422
        %1599 = vmatprep.subr.mxu0 %v1425
        %1600 = vmatpush1.msra.mxu0 %v1424
        %1601 = vmatprep.subr.mxu0 %v1427
        %1602 = vmatpush1.msra.mxu0 %v1426
        %1603 = vmatprep.subr.mxu0 %v1429
        %1604 = vmatpush1.msra.mxu0 %v1428
        %1605 = vmatprep.subr.mxu0 %v1431
        %1606 = vmatpush1.msra.mxu0 %v1430
        %1607 = vmatprep.subr.mxu0 %v1433
        %1608 = vmatpush1.msra.mxu0 %v1432
        %1609 = vmatprep.mubr.f32.mxu0 %v691
        %1610 = vmatmul.mubr.f32.gmra.mrb[0].mxu0 %v690
        %v1611 = vpop.f32.mrb[0].mxu0
        %v1612 = vadd.f32 %v1535, %v1611
        %v1613 = vpop.f32.mrb[0].mxu0
        %v1614 = vadd.f32 %v1537, %v1613
        %1615 = vmatprep.mubr.f32.mxu0 %v696
        %1616 = vmatmul.mubr.f32.gmra.mrb[0].mxu0 %v695
        %v1617 = vpop.f32.mrb[0].mxu0
        %v1618 = vadd.f32 %v1541, %v1617
        %v1619 = vpop.f32.mrb[0].mxu0
        %v1620 = vadd.f32 %v1543, %v1619
        %1621 = vdwg.mxu0
        %1622 = vmatprep.subr.mxu0 %v1435
        %1623 = vmatpush1.msra.mxu0 %v1434
        %1624 = vmatprep.subr.mxu0 %v1437
        %1625 = vmatpush1.msra.mxu0 %v1436
        %1626 = vmatprep.subr.mxu0 %v1439
        %1627 = vmatpush1.msra.mxu0 %v1438
        %1628 = vmatprep.subr.mxu0 %v1441
        %1629 = vmatpush1.msra.mxu0 %v1440
        %1630 = vmatprep.subr.mxu0 %v1443
        %1631 = vmatpush1.msra.mxu0 %v1442
        %1632 = vmatprep.subr.mxu0 %v1445
        %1633 = vmatpush1.msra.mxu0 %v1444
        %1634 = vmatprep.subr.mxu0 %v1447
        %1635 = vmatpush1.msra.mxu0 %v1446
        %1636 = vmatprep.subr.mxu0 %v1449
        %1637 = vmatpush1.msra.mxu0 %v1448
        %1638 = vmatprep.subr.mxu0 0.0
        %1639 = vmatpush1.msra.mxu0 0.0
        %1640 = vmatprep.subr.mxu0 0.0
        %1641 = vmatpush1.msra.mxu0 0.0
        %1642 = vmatprep.subr.mxu0 0.0
        %1643 = vmatpush1.msra.mxu0 0.0
        %1644 = vmatprep.subr.mxu0 0.0
        %1645 = vmatpush1.msra.mxu0 0.0
        %1646 = vmatprep.subr.mxu0 0.0
        %1647 = vmatpush1.msra.mxu0 0.0
        %1648 = vmatprep.subr.mxu0 0.0
        %1649 = vmatpush1.msra.mxu0 0.0
        %1650 = vmatprep.subr.mxu0 0.0
        %1651 = vmatpush1.msra.mxu0 0.0
        %1652 = vmatprep.subr.mxu0 0.0
        %1653 = vmatpush1.msra.mxu0 0.0
        %1654 = vmatprep.subr.mxu0 0.0
        %1655 = vmatpush1.msra.mxu0 0.0
        %1656 = vmatprep.subr.mxu0 0.0
        %1657 = vmatpush1.msra.mxu0 0.0
        %1658 = vmatprep.subr.mxu0 0.0
        %1659 = vmatpush1.msra.mxu0 0.0
        %1660 = vmatprep.subr.mxu0 0.0
        %1661 = vmatpush1.msra.mxu0 0.0
        %1662 = vmatprep.subr.mxu0 0.0
        %1663 = vmatpush1.msra.mxu0 0.0
        %1664 = vmatprep.subr.mxu0 0.0
        %1665 = vmatpush1.msra.mxu0 0.0
        %1666 = vmatprep.subr.mxu0 0.0
        %1667 = vmatpush1.msra.mxu0 0.0
        %1668 = vmatprep.subr.mxu0 0.0
        %1669 = vmatpush1.msra.mxu0 0.0
        %1670 = vmatprep.subr.mxu0 0.0
        %1671 = vmatpush1.msra.mxu0 0.0
        %1672 = vmatprep.subr.mxu0 0.0
        %1673 = vmatpush1.msra.mxu0 0.0
        %1674 = vmatprep.subr.mxu0 0.0
        %1675 = vmatpush1.msra.mxu0 0.0
        %1676 = vmatprep.subr.mxu0 0.0
        %1677 = vmatpush1.msra.mxu0 0.0
        %1678 = vmatprep.subr.mxu0 0.0
        %1679 = vmatpush1.msra.mxu0 0.0
        %1680 = vmatprep.subr.mxu0 0.0
        %1681 = vmatpush1.msra.mxu0 0.0
        %1682 = vmatprep.subr.mxu0 0.0
        %1683 = vmatpush1.msra.mxu0 0.0
        %1684 = vmatprep.subr.mxu0 0.0
        %1685 = vmatpush1.msra.mxu0 0.0
        %1686 = vmatprep.mubr.f32.mxu0 0.0
        %1687 = vmatmul.mubr.f32.gmra.mrb[0].mxu0 %v1463
        %v1688 = vpop.f32.mrb[0].mxu0
        %v1689 = vadd.f32 %v1612, %v1688
        %v1690 = vpop.f32.mrb[0].mxu0
        %v1691 = vadd.f32 %v1614, %v1690
        %1692 = vmatprep.mubr.f32.mxu0 0.0
        %1693 = vmatmul.mubr.f32.gmra.mrb[0].mxu0 %v1466
        %v1694 = vpop.f32.mrb[0].mxu0
        %v1695 = vadd.f32 %v1618, %v1694
        %v1696 = vpop.f32.mrb[0].mxu0
        %v1697 = vadd.f32 %v1620, %v1696
        %1698 = vdwg.mxu0
        %v1699 = vmul.f32 %v1689, %v1689
        %v1700 = vmul.f32 %v1695, %v1695
        %1703 = vrot.lane.b32.xlu0 %v1699, 64
        %v1704 = vpop.permute.xlu0 %1703
        %1705 = vrot.lane.b32.xlu0 %v1700, 64
        %v1706 = vpop.permute.xlu0 %1705
        %v1709 = vsel %vm559, %v1704, 0.0
        %1710 = vadd.xlane.f32.xlu0 %v1709
        %v1711 = vpop.xlane.xlu0 %1710
        %v1712 = vsel %vm559, %v1706, 0.0
        %1713 = vadd.xlane.f32.xlu0 %v1712
        %v1714 = vpop.xlane.xlu0 %1713
        %v1715 = vmul.f32 %v1711, 0.5
        %v1716 = vmul.f32 %v1714, 0.5
        %v1717 = vsub.f32 %v1691, %v1715
        %v1718 = vsub.f32 %v1697, %v1716
        %v1719 = vmul.f32 %v1717, 1.442695
        %v1720 = vpow.pop %v1719
        %v1721 = vmul.f32 %v1718, 1.442695
        %v1722 = vpow.pop %v1721
        %v1723 = vmul.f32 %v1720, 0.17677669
        %v1724 = vmul.f32 %v1722, 0.17677669
        %v1725 = vld [vmem:[#allocation2] sm:$0x1]
        %v1727 = vlaneseq
        %v1728 = vshrl.u32 %v1727, 7
        %v1729 = vsub.s32 0, %v1728
        %v1730 = vrot.slane %v1725, %v1729
        %v1732 = vmul.f32 %v1723, %v1730
        %v1733 = vmul.f32 %v1724, %v1730
        %vm1734 = vcmask 261120
        %v1735 = vsel %vm1734, %v1732, 0.0
        %1736 = vadd.xlane.f32.xlu0 %v1735
        %v1737 = vpop.xlane.xlu0 %1736
        %v1738 = vsel %vm1734, %v1733, 0.0
        %1739 = vadd.xlane.f32.xlu0 %v1738
        %v1740 = vpop.xlane.xlu0 %1739
        %v1741 = vld [vmem:[#allocation3] sm:$0xff]
        %v1742 = vld [vmem:[#allocation3 + $0x8] sm:$0xff]
        %v1743 = vld [vmem:[#allocation3 + $0x10] sm:$0xff]
        %v1744 = vld [vmem:[#allocation3 + $0x18] sm:$0xff]
        %v1746 = vsel %vm1734, %v1723, 0
        %v1749 = vsel %vm1734, %v1724, 0
        %1751 = vmatprep.subr.mxu0 0.0
        %1752 = vmatpush1.msra.mxu0 %v1741
        %1753 = vmatprep.subr.mxu0 0.0
        %1754 = vmatpush1.msra.mxu0 %v1742
        %1755 = vmatprep.subr.mxu0 0.0
        %1756 = vmatpush1.msra.mxu0 %v1743
        %1757 = vmatprep.subr.mxu0 0.0
        %1758 = vmatpush1.msra.mxu0 %v1744
        %1759 = vmatprep.subr.mxu0 0.0
        %1760 = vmatpush1.msra.mxu0 0.0
        %1761 = vmatprep.subr.mxu0 0.0
        %1762 = vmatpush1.msra.mxu0 0.0
        %1763 = vmatprep.subr.mxu0 0.0
        %1764 = vmatpush1.msra.mxu0 0.0
        %1765 = vmatprep.subr.mxu0 0.0
        %1766 = vmatpush1.msra.mxu0 0.0
        %1767 = vmatprep.subr.mxu0 0.0
        %1768 = vmatpush1.msra.mxu0 0.0
        %1769 = vmatprep.subr.mxu0 0.0
        %1770 = vmatpush1.msra.mxu0 0.0
        %1771 = vmatprep.subr.mxu0 0.0
        %1772 = vmatpush1.msra.mxu0 0.0
        %1773 = vmatprep.subr.mxu0 0.0
        %1774 = vmatpush1.msra.mxu0 0.0
        %1775 = vmatprep.subr.mxu0 0.0
        %1776 = vmatpush1.msra.mxu0 0.0
        %1777 = vmatprep.subr.mxu0 0.0
        %1778 = vmatpush1.msra.mxu0 0.0
        %1779 = vmatprep.subr.mxu0 0.0
        %1780 = vmatpush1.msra.mxu0 0.0
        %1781 = vmatprep.subr.mxu0 0.0
        %1782 = vmatpush1.msra.mxu0 0.0
        %1783 = vmatprep.subr.mxu0 0.0
        %1784 = vmatpush1.msra.mxu0 0.0
        %1785 = vmatprep.subr.mxu0 0.0
        %1786 = vmatpush1.msra.mxu0 0.0
        %1787 = vmatprep.subr.mxu0 0.0
        %1788 = vmatpush1.msra.mxu0 0.0
        %1789 = vmatprep.subr.mxu0 0.0
        %1790 = vmatpush1.msra.mxu0 0.0
        %1791 = vmatprep.subr.mxu0 0.0
        %1792 = vmatpush1.msra.mxu0 0.0
        %1793 = vmatprep.subr.mxu0 0.0
        %1794 = vmatpush1.msra.mxu0 0.0
        %1795 = vmatprep.subr.mxu0 0.0
        %1796 = vmatpush1.msra.mxu0 0.0
        %1797 = vmatprep.subr.mxu0 0.0
        %1798 = vmatpush1.msra.mxu0 0.0
        %1799 = vmatprep.subr.mxu0 0.0
        %1800 = vmatpush1.msra.mxu0 0.0
        %1801 = vmatprep.subr.mxu0 0.0
        %1802 = vmatpush1.msra.mxu0 0.0
        %1803 = vmatprep.subr.mxu0 0.0
        %1804 = vmatpush1.msra.mxu0 0.0
        %1805 = vmatprep.subr.mxu0 0.0
        %1806 = vmatpush1.msra.mxu0 0.0
        %1807 = vmatprep.subr.mxu0 0.0
        %1808 = vmatpush1.msra.mxu0 0.0
        %1809 = vmatprep.subr.mxu0 0.0
        %1810 = vmatpush1.msra.mxu0 0.0
        %1811 = vmatprep.subr.mxu0 0.0
        %1812 = vmatpush1.msra.mxu0 0.0
        %1813 = vmatprep.subr.mxu0 0.0
        %1814 = vmatpush1.msra.mxu0 0.0
        %1815 = vmatprep.mubr.f32.mxu0 0.0
        %1816 = vmatmul.mubr.f32.gmra.mrb[0].mxu0 %v1746
        %v1817 = vpop.f32.mrb[0].mxu0
        %v1818 = vadd.f32 0.0, %v1817
        %v1819 = vpop.f32.mrb[0].mxu0
        %1820 = vmatprep.mubr.f32.mxu0 0.0
        %1821 = vmatmul.mubr.f32.gmra.mrb[0].mxu0 %v1749
        %v1822 = vpop.f32.mrb[0].mxu0
        %v1823 = vadd.f32 0.0, %v1822
        %v1824 = vpop.f32.mrb[0].mxu0
        %1825 = vdwg.mxu0
        %v1826 = vadd.f32 %v1737, 1e-08
        %v1827 = vadd.f32 %v1740, 1e-08
        %v1828 = vrcp.pop %v1826
        %v1829 = vrcp.pop %v1827
        %v1830 = vmul.f32 %v1818, %v1828
        %v1831 = vmul.f32 %v1823, %v1829
        %v1832 = vld [vmem:[%s7] sm:$0xff]
        %v1833 = vld [vmem:[%s7 + $0x8] sm:$0xff]
        %v1834 = vld [vmem:[%s7 + $0x10] sm:$0xff]
        %v1835 = vld [vmem:[%s7 + $0x18] sm:$0xff]
        %v1836 = vld [vmem:[%s7 + $0x20] sm:$0xff]
        %v1837 = vld [vmem:[%s7 + $0x28] sm:$0xff]
        %v1838 = vld [vmem:[%s7 + $0x30] sm:$0xff]
        %v1839 = vld [vmem:[%s7 + $0x38] sm:$0xff]
        %v1840 = vld [vmem:[%s8] sm:$0x1]
        %v1842 = vlaneseq
        %v1843 = vshrl.u32 %v1842, 7
        %v1844 = vsub.s32 0, %v1843
        %v1845 = vrot.slane %v1840, %v1844
        %v1848 = vsel %vm559, %v1830, 0
        %v1851 = vsel %vm559, %v1831, 0
        %1853 = vmatprep.subr.mxu0 0.0
        %1854 = vmatpush1.msra.mxu0 %v1832
        %1855 = vmatprep.subr.mxu0 0.0
        %1856 = vmatpush1.msra.mxu0 %v1833
        %1857 = vmatprep.subr.mxu0 0.0
        %1858 = vmatpush1.msra.mxu0 %v1834
        %1859 = vmatprep.subr.mxu0 0.0
        %1860 = vmatpush1.msra.mxu0 %v1835
        %1861 = vmatprep.subr.mxu0 0.0
        %1862 = vmatpush1.msra.mxu0 %v1836
        %1863 = vmatprep.subr.mxu0 0.0
        %1864 = vmatpush1.msra.mxu0 %v1837
        %1865 = vmatprep.subr.mxu0 0.0
        %1866 = vmatpush1.msra.mxu0 %v1838
        %1867 = vmatprep.subr.mxu0 0.0
        %1868 = vmatpush1.msra.mxu0 %v1839
        %1869 = vmatprep.subr.mxu0 0.0
        %1870 = vmatpush1.msra.mxu0 0.0
        %1871 = vmatprep.subr.mxu0 0.0
        %1872 = vmatpush1.msra.mxu0 0.0
        %1873 = vmatprep.subr.mxu0 0.0
        %1874 = vmatpush1.msra.mxu0 0.0
        %1875 = vmatprep.subr.mxu0 0.0
        %1876 = vmatpush1.msra.mxu0 0.0
        %1877 = vmatprep.subr.mxu0 0.0
        %1878 = vmatpush1.msra.mxu0 0.0
        %1879 = vmatprep.subr.mxu0 0.0
        %1880 = vmatpush1.msra.mxu0 0.0
        %1881 = vmatprep.subr.mxu0 0.0
        %1882 = vmatpush1.msra.mxu0 0.0
        %1883 = vmatprep.subr.mxu0 0.0
        %1884 = vmatpush1.msra.mxu0 0.0
        %1885 = vmatprep.subr.mxu0 0.0
        %1886 = vmatpush1.msra.mxu0 0.0
        %1887 = vmatprep.subr.mxu0 0.0
        %1888 = vmatpush1.msra.mxu0 0.0
        %1889 = vmatprep.subr.mxu0 0.0
        %1890 = vmatpush1.msra.mxu0 0.0
        %1891 = vmatprep.subr.mxu0 0.0
        %1892 = vmatpush1.msra.mxu0 0.0
        %1893 = vmatprep.subr.mxu0 0.0
        %1894 = vmatpush1.msra.mxu0 0.0
        %1895 = vmatprep.subr.mxu0 0.0
        %1896 = vmatpush1.msra.mxu0 0.0
        %1897 = vmatprep.subr.mxu0 0.0
        %1898 = vmatpush1.msra.mxu0 0.0
        %1899 = vmatprep.subr.mxu0 0.0
        %1900 = vmatpush1.msra.mxu0 0.0
        %1901 = vmatprep.subr.mxu0 0.0
        %1902 = vmatpush1.msra.mxu0 0.0
        %1903 = vmatprep.subr.mxu0 0.0
        %1904 = vmatpush1.msra.mxu0 0.0
        %1905 = vmatprep.subr.mxu0 0.0
        %1906 = vmatpush1.msra.mxu0 0.0
        %1907 = vmatprep.subr.mxu0 0.0
        %1908 = vmatpush1.msra.mxu0 0.0
        %1909 = vmatprep.subr.mxu0 0.0
        %1910 = vmatpush1.msra.mxu0 0.0
        %1911 = vmatprep.subr.mxu0 0.0
        %1912 = vmatpush1.msra.mxu0 0.0
        %1913 = vmatprep.subr.mxu0 0.0
        %1914 = vmatpush1.msra.mxu0 0.0
        %1915 = vmatprep.subr.mxu0 0.0
        %1916 = vmatpush1.msra.mxu0 0.0
        %1917 = vmatprep.mubr.f32.mxu0 0.0
        %1918 = vmatmul.mubr.f32.gmra.mrb[0].mxu0 %v1848
        %v1919 = vpop.f32.mrb[0].mxu0
        %v1920 = vadd.f32 %v1845, %v1919
        %v1921 = vpop.f32.mrb[0].mxu0
        %1922 = vmatprep.mubr.f32.mxu0 0.0
        %1923 = vmatmul.mubr.f32.gmra.mrb[0].mxu0 %v1851
        %v1924 = vpop.f32.mrb[0].mxu0
        %v1925 = vadd.f32 %v1845, %v1924
        %v1926 = vpop.f32.mrb[0].mxu0
        %1927 = vdwg.mxu0
        %v1928 = vadd.f32 %v1689, %v1920
        %v1929 = vadd.f32 %v1695, %v1925
        %v1930 = vsel %vm559, %v1928, 0.0
        %1931 = vadd.xlane.f32.xlu0 %v1930
        %v1932 = vpop.xlane.xlu0 %1931
        %v1933 = vsel %vm559, %v1929, 0.0
        %1934 = vadd.xlane.f32.xlu0 %v1933
        %v1935 = vpop.xlane.xlu0 %1934
        %v1936 = vrcp.pop 64.0
        %v1937 = vmul.f32 %v1932, %v1936
        %v1938 = vmul.f32 %v1935, %v1936
        %v1939 = vsub.f32 %v1928, %v1937
        %v1940 = vsub.f32 %v1929, %v1938
        %v1941 = vmul.f32 %v1939, %v1939
        %v1942 = vmul.f32 %v1940, %v1940
        %v1943 = vsel %vm559, %v1941, 0.0
        %1944 = vadd.xlane.f32.xlu0 %v1943
        %v1945 = vpop.xlane.xlu0 %1944
        %v1946 = vsel %vm559, %v1942, 0.0
        %1947 = vadd.xlane.f32.xlu0 %v1946
        %v1948 = vpop.xlane.xlu0 %1947
        %v1949 = vmul.f32 %v1945, %v1936
        %v1950 = vmul.f32 %v1948, %v1936
        %v1951 = vadd.f32 %v1949, 1e-05
        %v1952 = vadd.f32 %v1950, 1e-05
        %v1953 = vrsqrt.pop %v1951
        %v1954 = vrsqrt.pop %v1952
        %v1955 = vmul.f32 %v1939, %v1953
        %v1956 = vmul.f32 %v1940, %v1954
        %v1957 = vld [vmem:[%s9] sm:$0x1]
        %v1959 = vlaneseq
        %v1960 = vshrl.u32 %v1959, 7
        %v1961 = vsub.s32 0, %v1960
        %v1962 = vrot.slane %v1957, %v1961
        %v1964 = vmul.f32 %v1955, %v1962
        %v1965 = vmul.f32 %v1956, %v1962
        %v1966 = vld [vmem:[%s10] sm:$0x1]
        %v1968 = vlaneseq
        %v1969 = vshrl.u32 %v1968, 7
        %v1970 = vsub.s32 0, %v1969
        %v1971 = vrot.slane %v1966, %v1970
        %v1973 = vadd.f32 %v1964, %v1971
        %v1974 = vadd.f32 %v1965, %v1971
        %v1975 = vld [vmem:[%s11] sm:$0xff]
        %v1976 = vld [vmem:[%s11 + $0x8] sm:$0xff]
        %v1977 = vld [vmem:[%s11 + $0x10] sm:$0xff]
        %v1978 = vld [vmem:[%s11 + $0x18] sm:$0xff]
        %v1979 = vld [vmem:[%s11 + $0x20] sm:$0xff]
        %v1980 = vld [vmem:[%s11 + $0x28] sm:$0xff]
        %v1981 = vld [vmem:[%s11 + $0x30] sm:$0xff]
        %v1982 = vld [vmem:[%s11 + $0x38] sm:$0xff]
        %v1983 = vld [vmem:[%s12] sm:$0x1]
        %v1985 = vlaneseq
        %v1986 = vshrl.u32 %v1985, 7
        %v1987 = vsub.s32 0, %v1986
        %v1988 = vrot.slane %v1983, %v1987
        %v1991 = vsel %vm559, %v1973, 0
        %v1994 = vsel %vm559, %v1974, 0
        %1996 = vmatprep.subr.mxu0 0.0
        %1997 = vmatpush1.msra.mxu0 %v1975
        %1998 = vmatprep.subr.mxu0 0.0
        %1999 = vmatpush1.msra.mxu0 %v1976
        %2000 = vmatprep.subr.mxu0 0.0
        %2001 = vmatpush1.msra.mxu0 %v1977
        %2002 = vmatprep.subr.mxu0 0.0
        %2003 = vmatpush1.msra.mxu0 %v1978
        %2004 = vmatprep.subr.mxu0 0.0
        %2005 = vmatpush1.msra.mxu0 %v1979
        %2006 = vmatprep.subr.mxu0 0.0
        %2007 = vmatpush1.msra.mxu0 %v1980
        %2008 = vmatprep.subr.mxu0 0.0
        %2009 = vmatpush1.msra.mxu0 %v1981
        %2010 = vmatprep.subr.mxu0 0.0
        %2011 = vmatpush1.msra.mxu0 %v1982
        %2012 = vmatprep.subr.mxu0 0.0
        %2013 = vmatpush1.msra.mxu0 0.0
        %2014 = vmatprep.subr.mxu0 0.0
        %2015 = vmatpush1.msra.mxu0 0.0
        %2016 = vmatprep.subr.mxu0 0.0
        %2017 = vmatpush1.msra.mxu0 0.0
        %2018 = vmatprep.subr.mxu0 0.0
        %2019 = vmatpush1.msra.mxu0 0.0
        %2020 = vmatprep.subr.mxu0 0.0
        %2021 = vmatpush1.msra.mxu0 0.0
        %2022 = vmatprep.subr.mxu0 0.0
        %2023 = vmatpush1.msra.mxu0 0.0
        %2024 = vmatprep.subr.mxu0 0.0
        %2025 = vmatpush1.msra.mxu0 0.0
        %2026 = vmatprep.subr.mxu0 0.0
        %2027 = vmatpush1.msra.mxu0 0.0
        %2028 = vmatprep.subr.mxu0 0.0
        %2029 = vmatpush1.msra.mxu0 0.0
        %2030 = vmatprep.subr.mxu0 0.0
        %2031 = vmatpush1.msra.mxu0 0.0
        %2032 = vmatprep.subr.mxu0 0.0
        %2033 = vmatpush1.msra.mxu0 0.0
        %2034 = vmatprep.subr.mxu0 0.0
        %2035 = vmatpush1.msra.mxu0 0.0
        %2036 = vmatprep.subr.mxu0 0.0
        %2037 = vmatpush1.msra.mxu0 0.0
        %2038 = vmatprep.subr.mxu0 0.0
        %2039 = vmatpush1.msra.mxu0 0.0
        %2040 = vmatprep.subr.mxu0 0.0
        %2041 = vmatpush1.msra.mxu0 0.0
        %2042 = vmatprep.subr.mxu0 0.0
        %2043 = vmatpush1.msra.mxu0 0.0
        %2044 = vmatprep.subr.mxu0 0.0
        %2045 = vmatpush1.msra.mxu0 0.0
        %2046 = vmatprep.subr.mxu0 0.0
        %2047 = vmatpush1.msra.mxu0 0.0
        %2048 = vmatprep.subr.mxu0 0.0
        %2049 = vmatpush1.msra.mxu0 0.0
        %2050 = vmatprep.subr.mxu0 0.0
        %2051 = vmatpush1.msra.mxu0 0.0
        %2052 = vmatprep.subr.mxu0 0.0
        %2053 = vmatpush1.msra.mxu0 0.0
        %2054 = vmatprep.subr.mxu0 0.0
        %2055 = vmatpush1.msra.mxu0 0.0
        %2056 = vmatprep.subr.mxu0 0.0
        %2057 = vmatpush1.msra.mxu0 0.0
        %2058 = vmatprep.subr.mxu0 0.0
        %2059 = vmatpush1.msra.mxu0 0.0
        %2060 = vmatprep.mubr.f32.mxu0 0.0
        %2061 = vmatmul.mubr.f32.gmra.mrb[0].mxu0 %v1991
        %v2062 = vpop.f32.mrb[0].mxu0
        %v2063 = vadd.f32 %v1988, %v2062
        %v2064 = vpop.f32.mrb[0].mxu0
        %2065 = vmatprep.mubr.f32.mxu0 0.0
        %2066 = vmatmul.mubr.f32.gmra.mrb[0].mxu0 %v1994
        %v2067 = vpop.f32.mrb[0].mxu0
        %v2068 = vadd.f32 %v1988, %v2067
        %v2069 = vpop.f32.mrb[0].mxu0
        %2070 = vdwg.mxu0
        %v2071 = vmul.f32 %v2063, 0.5
        %v2072 = vmul.f32 %v2068, 0.5
        %v2073 = vmul.f32 %v2063, 0.70710677
        %v2074 = vmul.f32 %v2068, 0.70710677
        %v2075 = verf.f32.pop %v2073
        %v2076 = verf.f32.pop %v2074
        %v2077 = vadd.f32 %v2075, 1.0
        %v2078 = vadd.f32 %v2076, 1.0
        %v2079 = vmul.f32 %v2071, %v2077
        %v2080 = vmul.f32 %v2072, %v2078
        %v2081 = vld [vmem:[%s13] sm:$0xff]
        %v2082 = vld [vmem:[%s13 + $0x8] sm:$0xff]
        %v2083 = vld [vmem:[%s13 + $0x10] sm:$0xff]
        %v2084 = vld [vmem:[%s13 + $0x18] sm:$0xff]
        %v2085 = vld [vmem:[%s13 + $0x20] sm:$0xff]
        %v2086 = vld [vmem:[%s13 + $0x28] sm:$0xff]
        %v2087 = vld [vmem:[%s13 + $0x30] sm:$0xff]
        %v2088 = vld [vmem:[%s13 + $0x38] sm:$0xff]
        %v2089 = vld [vmem:[%s14] sm:$0x1]
        %v2091 = vlaneseq
        %v2092 = vshrl.u32 %v2091, 7
        %v2093 = vsub.s32 0, %v2092
        %v2094 = vrot.slane %v2089, %v2093
        %v2097 = vsel %vm559, %v2079, 0
        %v2100 = vsel %vm559, %v2080, 0
        %2102 = vmatprep.subr.mxu0 0.0
        %2103 = vmatpush1.msra.mxu0 %v2081
        %2104 = vmatprep.subr.mxu0 0.0
        %2105 = vmatpush1.msra.mxu0 %v2082
        %2106 = vmatprep.subr.mxu0 0.0
        %2107 = vmatpush1.msra.mxu0 %v2083
        %2108 = vmatprep.subr.mxu0 0.0
        %2109 = vmatpush1.msra.mxu0 %v2084
        %2110 = vmatprep.subr.mxu0 0.0
        %2111 = vmatpush1.msra.mxu0 %v2085
        %2112 = vmatprep.subr.mxu0 0.0
        %2113 = vmatpush1.msra.mxu0 %v2086
        %2114 = vmatprep.subr.mxu0 0.0
        %2115 = vmatpush1.msra.mxu0 %v2087
        %2116 = vmatprep.subr.mxu0 0.0
        %2117 = vmatpush1.msra.mxu0 %v2088
        %2118 = vmatprep.subr.mxu0 0.0
        %2119 = vmatpush1.msra.mxu0 0.0
        %2120 = vmatprep.subr.mxu0 0.0
        %2121 = vmatpush1.msra.mxu0 0.0
        %2122 = vmatprep.subr.mxu0 0.0
        %2123 = vmatpush1.msra.mxu0 0.0
        %2124 = vmatprep.subr.mxu0 0.0
        %2125 = vmatpush1.msra.mxu0 0.0
        %2126 = vmatprep.subr.mxu0 0.0
        %2127 = vmatpush1.msra.mxu0 0.0
        %2128 = vmatprep.subr.mxu0 0.0
        %2129 = vmatpush1.msra.mxu0 0.0
        %2130 = vmatprep.subr.mxu0 0.0
        %2131 = vmatpush1.msra.mxu0 0.0
        %2132 = vmatprep.subr.mxu0 0.0
        %2133 = vmatpush1.msra.mxu0 0.0
        %2134 = vmatprep.subr.mxu0 0.0
        %2135 = vmatpush1.msra.mxu0 0.0
        %2136 = vmatprep.subr.mxu0 0.0
        %2137 = vmatpush1.msra.mxu0 0.0
        %2138 = vmatprep.subr.mxu0 0.0
        %2139 = vmatpush1.msra.mxu0 0.0
        %2140 = vmatprep.subr.mxu0 0.0
        %2141 = vmatpush1.msra.mxu0 0.0
        %2142 = vmatprep.subr.mxu0 0.0
        %2143 = vmatpush1.msra.mxu0 0.0
        %2144 = vmatprep.subr.mxu0 0.0
        %2145 = vmatpush1.msra.mxu0 0.0
        %2146 = vmatprep.subr.mxu0 0.0
        %2147 = vmatpush1.msra.mxu0 0.0
        %2148 = vmatprep.subr.mxu0 0.0
        %2149 = vmatpush1.msra.mxu0 0.0
        %2150 = vmatprep.subr.mxu0 0.0
        %2151 = vmatpush1.msra.mxu0 0.0
        %2152 = vmatprep.subr.mxu0 0.0
        %2153 = vmatpush1.msra.mxu0 0.0
        %2154 = vmatprep.subr.mxu0 0.0
        %2155 = vmatpush1.msra.mxu0 0.0
        %2156 = vmatprep.subr.mxu0 0.0
        %2157 = vmatpush1.msra.mxu0 0.0
        %2158 = vmatprep.subr.mxu0 0.0
        %2159 = vmatpush1.msra.mxu0 0.0
        %2160 = vmatprep.subr.mxu0 0.0
        %2161 = vmatpush1.msra.mxu0 0.0
        %2162 = vmatprep.subr.mxu0 0.0
        %2163 = vmatpush1.msra.mxu0 0.0
        %2164 = vmatprep.subr.mxu0 0.0
        %2165 = vmatpush1.msra.mxu0 0.0
        %2166 = vmatprep.mubr.f32.mxu0 0.0
        %2167 = vmatmul.mubr.f32.gmra.mrb[0].mxu0 %v2097
        %v2168 = vpop.f32.mrb[0].mxu0
        %v2169 = vadd.f32 %v2094, %v2168
        %v2170 = vpop.f32.mrb[0].mxu0
        %2171 = vmatprep.mubr.f32.mxu0 0.0
        %2172 = vmatmul.mubr.f32.gmra.mrb[0].mxu0 %v2100
        %v2173 = vpop.f32.mrb[0].mxu0
        %v2174 = vadd.f32 %v2094, %v2173
        %v2175 = vpop.f32.mrb[0].mxu0
        %2176 = vdwg.mxu0
        %v2177 = vadd.f32 %v1928, %v2169
        %v2178 = vadd.f32 %v1929, %v2174
        %2179 = vxpose.xlu0.b32.start [1/16] %v2177, 128
        %2180 = vxpose.xlu0.b32.cont [2/16] %v2178, 128
        %2181 = vxpose.xlu0.b32.cont [3/16] 0.0, 128
        %2182 = vxpose.xlu0.b32.cont [4/16] 0.0, 128
        %2183 = vxpose.xlu0.b32.cont [5/16] 0.0, 128
        %2184 = vxpose.xlu0.b32.cont [6/16] 0.0, 128
        %2185 = vxpose.xlu0.b32.cont [7/16] 0.0, 128
        %2186 = vxpose.xlu0.b32.cont [8/16] 0.0, 128
        %2187 = vxpose.xlu0.b32.cont [9/16] 0.0, 128
        %2188 = vxpose.xlu0.b32.cont [10/16] 0.0, 128
        %2189 = vxpose.xlu0.b32.cont [11/16] 0.0, 128
        %2190 = vxpose.xlu0.b32.cont [12/16] 0.0, 128
        %2191 = vxpose.xlu0.b32.cont [13/16] 0.0, 128
        %2192 = vxpose.xlu0.b32.cont [14/16] 0.0, 128
        %2193 = vxpose.xlu0.b32.cont [15/16] 0.0, 128
        %2194 = vxpose.xlu0.b32.end [16/16] 0.0, 128
        %v2195 = vpop.trf.xlu0
        %v2196 = vpop.trf.xlu0
        %v2197 = vpop.trf.xlu0
        %v2198 = vpop.trf.xlu0
        %v2199 = vpop.trf.xlu0
        %v2200 = vpop.trf.xlu0
        %v2201 = vpop.trf.xlu0
        %v2202 = vpop.trf.xlu0
        %v2203 = vpop.trf.xlu0
        %v2204 = vpop.trf.xlu0
        %v2205 = vpop.trf.xlu0
        %v2206 = vpop.trf.xlu0
        %v2207 = vpop.trf.xlu0
        %v2208 = vpop.trf.xlu0
        %v2209 = vpop.trf.xlu0
        %v2210 = vpop.trf.xlu0
        %vm2211 = vcmask 130048
        %2212 = vst.msk [vmem:[%s544] sm:$0xff] %vm2211, %v2195
        %2213 = vst.msk [vmem:[%s544 + $0x8] sm:$0xff] %vm2211, %v2196
        %2214 = vst.msk [vmem:[%s544 + $0x10] sm:$0xff] %vm2211, %v2197
        %2215 = vst.msk [vmem:[%s544 + $0x18] sm:$0xff] %vm2211, %v2198
        %2216 = vst.msk [vmem:[%s544 + $0x20] sm:$0xff] %vm2211, %v2199
        %2217 = vst.msk [vmem:[%s544 + $0x28] sm:$0xff] %vm2211, %v2200
        %2218 = vst.msk [vmem:[%s544 + $0x30] sm:$0xff] %vm2211, %v2201
        %2219 = vst.msk [vmem:[%s544 + $0x38] sm:$0xff] %vm2211, %v2202
      $region92: #{t2t_forward.4} parent=79 // pred_fallthru
        _
      %s2220 = smul.u32 %s32, %s33
      %p2221 = scmp.lt.s32.totalorder %s31, 1
      %s2222 = scalar_select %p2221, %s31, 1
      %p2223 = scmp.lt.s32.totalorder %s2220, 0
      %s2224 = scalar_select %p2223, %s2220, 0
      %s2225 = smul.addr %s2222, 8
      %s2226 = sadd.s32 %s2224, %s2225
      %s2227 = smul.addr %s2226, 8
      %s2228 = scalar_lea.vmem %s15, %s2227
      // Predicated region
      $region93: #{t2t_forward.4} parent=79 // pred_check
        %p2229 = pneg %p389
      $region94: #{t2t_forward.4} parent=79 // pred_check_branch
        %2231 = sbr.rel (%p2229) target = $region96
      $region95: #{t2t_forward.4} parent=79 // pred_region
        %s2232 = smul.u32 %s32, %s33
      $region96: #{t2t_forward.4} parent=79 // pred_fallthru
        _
    $region80: #{t2t_forward.4} parent=5 // pred_fallthru
      _
    %p2233 = scmp.le.s32.totalorder 2, %s21
    // Predicated region
    $region97: #{t2t_forward.4} parent=5 // pred_check
      %p2234 = pneg %p2233
    $region98: #{t2t_forward.4} parent=5 // pred_check_branch
      %2236 = sbr.rel (%p2234) target = $region100
    $region99: #{t2t_forward.4} parent=5 // pred_region
      %s2237 = ssub.s32 %s21, 2
      // Predicated region
      $region101: #{t2t_forward.4} parent=99 // pred_check
        %p2238 = pneg %p395
      $region102: #{t2t_forward.4} parent=99 // pred_check_branch
        %2240 = sbr.rel (%p2238) target = $region104
      $region103: #{t2t_forward.4} parent=99 // pred_region
        %s2241 = smul.u32 %s35, %s36
        %p2242 = scmp.lt.s32.totalorder %s34, 1
        %s2243 = scalar_select %p2242, %s34, 1
        %p2244 = scmp.lt.s32.totalorder %s2241, 0
        %s2245 = scalar_select %p2244, %s2241, 0
        %s2246 = smul.addr %s2243, 8
        %s2247 = sadd.s32 %s2245, %s2246
        %s2248 = smul.addr %s2247, 8
        %s2249 = scalar_lea.vmem %s15, %s2248
      $region104: #{t2t_forward.4} parent=99 // pred_fallthru
        _
    $region100: #{t2t_forward.4} parent=5 // pred_fallthru
      _
  $region6: #{t2t_forward.4} parent=0 // loop_footer
    %s25 = sadd.s32 1, %s21
  $region7: #{t2t_forward.4} parent=0 // loop_footer_branch
    %20 = sbr.rel target = $region3
  $region8: #{t2t_forward.4} parent=0 // loop_exit
    _

// kernel: t2t_forward.5
$region0: #{t2t_forward.5}
  #allocation0 [shape = 'u32[]', space=smem, size = 0x4, offset = 0x4, fixed_abs, tag = 'smem constant byte address 0x4 - core index']
  #allocation1 [shape = 'u32[144,128]{1,0:T(1,128)}', space=vmem, size = 0x12000, scoped, tag = 'internal scratch']
  %s0 = inlined_call_operand.vmem [shape: f32[2,4,576], index: 0, kind: input, shape index: {}]
  %s1 = inlined_call_operand.vmem [shape: f32[576,128], index: 1, kind: input, shape index: {}]
  %s2 = inlined_call_operand.vmem [shape: f32[1,128], index: 2, kind: input, shape index: {}]
  %s3 = inlined_call_operand.hbm [shape: f32[2,4,128], index: 3, kind: output, shape index: {}]
  %s4 = sld [smem:[#allocation0]]
  $region45: #{t2t_forward.5} parent=0
    _
  %s6 = ssub.s32 1, %s4
  %s7 = scalar_select 0, %s6, %s4
  $region1: #{t2t_forward.5} parent=0
    #allocation2 [shape = 'u8[4096]{0}', space=vmem, size = 0x1000, scoped, tag = 'output window, operand 0']
    #allocation3 [shape = 's32[2]{0}', space=sflag, size = 0x8, scoped, tag = 'scoped memory for t2t_forward.5']
    %8 = vsyncpa [#allocation3], 0
    %s9 = scalar_lea.sflag [#allocation3], 1
    %10 = vsyncpa %s9, 0
    loop: start=0, step=1, limit=4
    $region2: #{t2t_forward.5} parent=1 // loop_pre_header
      _
    $region3: #{t2t_forward.5} parent=1 // loop_header
      %s12 = sphi 0, %s16
      %p13 = scmp.ge.s32.totalorder %s12, 4
      %s22 = sphi 0, %s24
      %s25 = sphi 0, %s22
      %s26 = sphi 0, %s25
      %s42 = sphi 0, %s26
      %s46 = sphi 0, %s46
      %s48 = sphi 0, %s46
      %s49 = sphi 0, %s48
      %s63 = sphi 0, %s49
      %s67 = sphi 0, %s67
      %s69 = sphi 0, %s67
      %s70 = sphi 0, %s69
      %s84 = sphi 0, %s70
      %s90 = sphi 0, %s92
      %s93 = sphi 0, %s90
      %s94 = sphi 0, %s93
      %s110 = sphi 0, %s94
    $region4: #{t2t_forward.5} parent=1 // loop_header_branch
      %15 = sbr.rel (%p13) target = $region8
    $region5: #{t2t_forward.5} parent=1 // loop_body
      %s17 = ssub.s32 %s12, 1
      %s18 = ssub.s32 %s12, 2
      %s19 = sadd.s32 %s12, 1
      %s20 = ssub.s32 %s12, %s19
      %p21 = scmp.eq.s32.totalorder %s20, 0
      %s23 = sadd.s32 %s22, 1
      %s24 = scalar_select %p21, %s22, %s23
      %p27 = pneg %p21
      %p28 = scmp.eq.s32.totalorder %s12, 1
      %p29 = por %p27, %p28
      %p30 = scmp.ne.s32.totalorder %s22, %s25
      %p31 = scmp.eq.s32.totalorder %s12, 0
      %p32 = por %p30, %p31
      %p33 = scmp.ne.s32.totalorder %s22, %s25
      %p34 = scmp.eq.s32.totalorder %s17, 1
      %p35 = por %p33, %p34
      %p36 = scmp.ne.s32.totalorder %s25, %s26
      %p37 = scmp.eq.s32.totalorder %s17, 0
      %p38 = por %p36, %p37
      %p39 = scmp.ne.s32.totalorder %s25, %s26
      %p40 = scmp.eq.s32.totalorder %s18, 1
      %p41 = por %p39, %p40
      %p43 = scmp.ne.s32.totalorder %s26, %s42
      %p44 = scmp.eq.s32.totalorder %s18, 0
      %p45 = por %p43, %p44
      %s47 = sadd.s32 %s46, 1
      %p50 = scmp.eq.s32.totalorder %s12, 1
      %p51 = scmp.ne.s32.totalorder %s46, %s48
      %p52 = scmp.eq.s32.totalorder %s12, 0
      %p53 = por %p51, %p52
      %p54 = scmp.ne.s32.totalorder %s46, %s48
      %p55 = scmp.eq.s32.totalorder %s17, 1
      %p56 = por %p54, %p55
      %p57 = scmp.ne.s32.totalorder %s48, %s49
      %p58 = scmp.eq.s32.totalorder %s17, 0
      %p59 = por %p57, %p58
      %p60 = scmp.ne.s32.totalorder %s48, %s49
      %p61 = scmp.eq.s32.totalorder %s18, 1
      %p62 = por %p60, %p61
      %p64 = scmp.ne.s32.totalorder %s49, %s63
      %p65 = scmp.eq.s32.totalorder %s18, 0
      %p66 = por %p64, %p65
      %s68 = sadd.s32 %s67, 1
      %p71 = scmp.eq.s32.totalorder %s12, 1
      %p72 = scmp.ne.s32.totalorder %s67, %s69
      %p73 = scmp.eq.s32.totalorder %s12, 0
      %p74 = por %p72, %p73
      %p75 = scmp.ne.s32.totalorder %s67, %s69
      %p76 = scmp.eq.s32.totalorder %s17, 1
      %p77 = por %p75, %p76
      %p78 = scmp.ne.s32.totalorder %s69, %s70
      %p79 = scmp.eq.s32.totalorder %s17, 0
      %p80 = por %p78, %p79
      %p81 = scmp.ne.s32.totalorder %s69, %s70
      %p82 = scmp.eq.s32.totalorder %s18, 1
      %p83 = por %p81, %p82
      %p85 = scmp.ne.s32.totalorder %s70, %s84
      %p86 = scmp.eq.s32.totalorder %s18, 0
      %p87 = por %p85, %p86
      %s88 = ssub.s32 %s12, %s19
      %p89 = scmp.eq.s32.totalorder %s88, 0
      %s91 = sadd.s32 %s90, 1
      %s92 = scalar_select %p89, %s90, %s91
      %p95 = pneg %p89
      %p96 = scmp.eq.s32.totalorder %s12, 1
      %p97 = por %p95, %p96
      %p98 = scmp.ne.s32.totalorder %s90, %s93
      %p99 = scmp.eq.s32.totalorder %s12, 0
      %p100 = por %p98, %p99
      %p101 = scmp.ne.s32.totalorder %s90, %s93
      %p102 = scmp.eq.s32.totalorder %s17, 1
      %p103 = por %p101, %p102
      %p104 = scmp.ne.s32.totalorder %s93, %s94
      %p105 = scmp.eq.s32.totalorder %s17, 0
      %p106 = por %p104, %p105
      %p107 = scmp.ne.s32.totalorder %s93, %s94
      %p108 = scmp.eq.s32.totalorder %s18, 1
      %p109 = por %p107, %p108
      %p111 = scmp.ne.s32.totalorder %s94, %s110
      %p112 = scmp.eq.s32.totalorder %s18, 0
      %p113 = por %p111, %p112
      %p114 = scmp.le.s32.totalorder 1, %s12
      %p115 = scmp.lt.s32.totalorder %s12, 3
      %p116 = pnand %p114, %p115
      %p117 = pneg %p116
      // Predicated region
      $region9: #{t2t_forward.5} parent=5 // pred_check
        _
      $region10: #{t2t_forward.5} parent=5 // pred_check_branch
        %119 = sbr.rel (%p116) target = $region12
      $region11: #{t2t_forward.5} parent=5 // pred_region
        %s120 = ssub.s32 %s12, 1
        // Predicated region
        $region13: #{t2t_forward.5} parent=11 // pred_check
          %p121 = pneg %p59
        $region14: #{t2t_forward.5} parent=11 // pred_check_branch
          %123 = sbr.rel (%p121) target = $region16
        $region15: #{t2t_forward.5} parent=11 // pred_region
          _
        $region16: #{t2t_forward.5} parent=11 // pred_fallthru
          _
        // Predicated region
        $region17: #{t2t_forward.5} parent=11 // pred_check
          %p124 = pneg %p80
        $region18: #{t2t_forward.5} parent=11 // pred_check_branch
          %126 = sbr.rel (%p124) target = $region20
        $region19: #{t2t_forward.5} parent=11 // pred_region
          _
        $region20: #{t2t_forward.5} parent=11 // pred_fallthru
          _
      $region12: #{t2t_forward.5} parent=5 // pred_fallthru
        _
      %p127 = scmp.lt.s32.totalorder %s12, 2
      // Predicated region
      $region21: #{t2t_forward.5} parent=5 // pred_check
        %p128 = pneg %p127
      $region22: #{t2t_forward.5} parent=5 // pred_check_branch
        %130 = sbr.rel (%p128) target = $region24
      $region23: #{t2t_forward.5} parent=5 // pred_region
        // Predicated region
        $region25: #{t2t_forward.5} parent=23 // pred_check
          %p131 = pneg %p32
        $region26: #{t2t_forward.5} parent=23 // pred_check_branch
          %133 = sbr.rel (%p131) target = $region28
        $region27: #{t2t_forward.5} parent=23 // pred_region
          %p134 = scmp.lt.s32.totalorder %s12, 1
          %s135 = scalar_select %p134, %s12, 1
          %s136 = smul.addr %s135, 5
          %s137 = smul.addr %s136, 4
          %s138 = scalar_lea.vmem %s0, %s137
        $region28: #{t2t_forward.5} parent=23 // pred_fallthru
          _
      $region24: #{t2t_forward.5} parent=5 // pred_fallthru
        _
      %p139 = scmp.le.s32.totalorder 1, %s12
      %p140 = scmp.lt.s32.totalorder %s12, 3
      %p141 = pnand %p139, %p140
      %p142 = pneg %p141
      // Predicated region
      $region29: #{t2t_forward.5} parent=5 // pred_check
        _
      $region30: #{t2t_forward.5} parent=5 // pred_check_branch
        %144 = sbr.rel (%p141) target = $region32
      $region31: #{t2t_forward.5} parent=5 // pred_region
        %s145 = ssub.s32 %s12, 1
        %p146 = scmp.lt.s32.totalorder %s17, 1
        %s147 = scalar_select %p146, %s17, 1
        %s148 = smul.addr %s147, 5
        %s149 = smul.addr %s148, 4
        %s150 = scalar_lea.vmem %s0, %s149
        %p151 = pneg %p38
        %p152 = pneg %p35
        %p153 = pneg %p59
        %p154 = pneg %p56
        %p155 = pneg %p80
        %p156 = pneg %p77
        %p157 = pneg %p106
        %p158 = pneg %p103
        %s159 = sand.u32 %s93, 1
        %s160 = scalar_lea.sflag [#allocation3], %s159
        %s161 = sand.u32 %s93, 1
        %s162 = smul.addr %s161, 4
        %s163 = scalar_lea.vmem [#allocation2], %s162
        %p164 = scmp.lt.s32.totalorder %s17, 1
        %s165 = scalar_select %p164, %s17, 1
        %s166 = smul.addr %s165, 5
        %s167 = smul.addr %s166, 4
        %s168 = scalar_lea.vmem %s0, %s167
        %v169 = vld [vmem:[%s168] sm:$0xff]
        %v170 = vld [vmem:[%s168 + $0x8] sm:$0xff]
        %v171 = vld [vmem:[%s168 + $0x10] sm:$0xf]
        %v172 = vld [vmem:[%s1] sm:$0xff]
        %v173 = vld [vmem:[%s1 + $0x8] sm:$0xff]
        %v174 = vld [vmem:[%s1 + $0x10] sm:$0xff]
        %v175 = vld [vmem:[%s1 + $0x18] sm:$0xff]
        %v176 = vld [vmem:[%s1 + $0x20] sm:$0xff]
        %v177 = vld [vmem:[%s1 + $0x28] sm:$0xff]
        %v178 = vld [vmem:[%s1 + $0x30] sm:$0xff]
        %v179 = vld [vmem:[%s1 + $0x38] sm:$0xff]
        %v180 = vld [vmem:[%s1 + $0x40] sm:$0xff]
        %v181 = vld [vmem:[%s1 + $0x48] sm:$0xff]
        %v182 = vld [vmem:[%s1 + $0x50] sm:$0xff]
        %v183 = vld [vmem:[%s1 + $0x58] sm:$0xff]
        %v184 = vld [vmem:[%s1 + $0x60] sm:$0xff]
        %v185 = vld [vmem:[%s1 + $0x68] sm:$0xff]
        %v186 = vld [vmem:[%s1 + $0x70] sm:$0xff]
        %v187 = vld [vmem:[%s1 + $0x78] sm:$0xff]
        %v188 = vld [vmem:[%s1 + $0x80] sm:$0xff]
        %v189 = vld [vmem:[%s1 + $0x88] sm:$0xff]
        %v190 = vld [vmem:[%s1 + $0x90] sm:$0xff]
        %v191 = vld [vmem:[%s1 + $0x98] sm:$0xff]
        %v192 = vld [vmem:[%s1 + $0xa0] sm:$0xff]
        %v193 = vld [vmem:[%s1 + $0xa8] sm:$0xff]
        %v194 = vld [vmem:[%s1 + $0xb0] sm:$0xff]
        %v195 = vld [vmem:[%s1 + $0xb8] sm:$0xff]
        %v196 = vld [vmem:[%s1 + $0xc0] sm:$0xff]
        %v197 = vld [vmem:[%s1 + $0xc8] sm:$0xff]
        %v198 = vld [vmem:[%s1 + $0xd0] sm:$0xff]
        %v199 = vld [vmem:[%s1 + $0xd8] sm:$0xff]
        %v200 = vld [vmem:[%s1 + $0xe0] sm:$0xff]
        %v201 = vld [vmem:[%s1 + $0xe8] sm:$0xff]
        %v202 = vld [vmem:[%s1 + $0xf0] sm:$0xff]
        %v203 = vld [vmem:[%s1 + $0xf8] sm:$0xff]
        %v204 = vld [vmem:[%s1 + $0x100] sm:$0xff]
        %v205 = vld [vmem:[%s1 + $0x108] sm:$0xff]
        %v206 = vld [vmem:[%s1 + $0x110] sm:$0xff]
        %v207 = vld [vmem:[%s1 + $0x118] sm:$0xff]
        %v208 = vld [vmem:[%s1 + $0x120] sm:$0xff]
        %v209 = vld [vmem:[%s1 + $0x128] sm:$0xff]
        %v210 = vld [vmem:[%s1 + $0x130] sm:$0xff]
        %v211 = vld [vmem:[%s1 + $0x138] sm:$0xff]
        %v212 = vld [vmem:[%s1 + $0x140] sm:$0xff]
        %v213 = vld [vmem:[%s1 + $0x148] sm:$0xff]
        %v214 = vld [vmem:[%s1 + $0x150] sm:$0xff]
        %v215 = vld [vmem:[%s1 + $0x158] sm:$0xff]
        %v216 = vld [vmem:[%s1 + $0x160] sm:$0xff]
        %v217 = vld [vmem:[%s1 + $0x168] sm:$0xff]
        %v218 = vld [vmem:[%s1 + $0x170] sm:$0xff]
        %v219 = vld [vmem:[%s1 + $0x178] sm:$0xff]
        %v220 = vld [vmem:[%s1 + $0x180] sm:$0xff]
        %v221 = vld [vmem:[%s1 + $0x188] sm:$0xff]
        %v222 = vld [vmem:[%s1 + $0x190] sm:$0xff]
        %v223 = vld [vmem:[%s1 + $0x198] sm:$0xff]
        %v224 = vld [vmem:[%s1 + $0x1a0] sm:$0xff]
        %v225 = vld [vmem:[%s1 + $0x1a8] sm:$0xff]
        %v226 = vld [vmem:[%s1 + $0x1b0] sm:$0xff]
        %v227 = vld [vmem:[%s1 + $0x1b8] sm:$0xff]
        %v228 = vld [vmem:[%s1 + $0x1c0] sm:$0xff]
        %v229 = vld [vmem:[%s1 + $0x1c8] sm:$0xff]
        %v230 = vld [vmem:[%s1 + $0x1d0] sm:$0xff]
        %v231 = vld [vmem:[%s1 + $0x1d8] sm:$0xff]
        %v232 = vld [vmem:[%s1 + $0x1e0] sm:$0xff]
        %v233 = vld [vmem:[%s1 + $0x1e8] sm:$0xff]
        %v234 = vld [vmem:[%s1 + $0x1f0] sm:$0xff]
        %v235 = vld [vmem:[%s1 + $0x1f8] sm:$0xff]
        %v236 = vld [vmem:[%s1 + $0x200] sm:$0xff]
        %v237 = vld [vmem:[%s1 + $0x208] sm:$0xff]
        %v238 = vld [vmem:[%s1 + $0x210] sm:$0xff]
        %v239 = vld [vmem:[%s1 + $0x218] sm:$0xff]
        %v240 = vld [vmem:[%s1 + $0x220] sm:$0xff]
        %v241 = vld [vmem:[%s1 + $0x228] sm:$0xff]
        %v242 = vld [vmem:[%s1 + $0x230] sm:$0xff]
        %v243 = vld [vmem:[%s1 + $0x238] sm:$0xff]
        %v244 = vld [vmem:[%s2] sm:$0x1]
        %v246 = vlaneseq
        %v247 = vshrl.u32 %v246, 7
        %v248 = vsub.s32 0, %v247
        %v249 = vrot.slane %v244, %v248
        %v254 = vcombine.high %v169, %v169
        %v255 = vcombine.high %v170, %v170
        %vm258 = vcmask 523264
        %v259 = vsel %vm258, %v171, 0
        %261 = vmatprep.subr.mxu0 0.0
        %262 = vmatpush1.msra.mxu0 %v172
        %263 = vmatprep.subr.mxu0 0.0
        %264 = vmatpush1.msra.mxu0 %v173
        %265 = vmatprep.subr.mxu0 0.0
        %266 = vmatpush1.msra.mxu0 %v174
        %267 = vmatprep.subr.mxu0 0.0
        %268 = vmatpush1.msra.mxu0 %v175
        %269 = vmatprep.subr.mxu0 0.0
        %270 = vmatpush1.msra.mxu0 %v176
        %271 = vmatprep.subr.mxu0 0.0
        %272 = vmatpush1.msra.mxu0 %v177
        %273 = vmatprep.subr.mxu0 0.0
        %274 = vmatpush1.msra.mxu0 %v178
        %275 = vmatprep.subr.mxu0 0.0
        %276 = vmatpush1.msra.mxu0 %v179
        %277 = vmatprep.subr.mxu0 0.0
        %278 = vmatpush1.msra.mxu0 %v180
        %279 = vmatprep.subr.mxu0 0.0
        %280 = vmatpush1.msra.mxu0 %v181
        %281 = vmatprep.subr.mxu0 0.0
        %282 = vmatpush1.msra.mxu0 %v182
        %283 = vmatprep.subr.mxu0 0.0
        %284 = vmatpush1.msra.mxu0 %v183
        %285 = vmatprep.subr.mxu0 0.0
        %286 = vmatpush1.msra.mxu0 %v184
        %287 = vmatprep.subr.mxu0 0.0
        %288 = vmatpush1.msra.mxu0 %v185
        %289 = vmatprep.subr.mxu0 0.0
        %290 = vmatpush1.msra.mxu0 %v186
        %291 = vmatprep.subr.mxu0 0.0
        %292 = vmatpush1.msra.mxu0 %v187
        %293 = vmatprep.subr.mxu0 0.0
        %294 = vmatpush1.msra.mxu0 %v188
        %295 = vmatprep.subr.mxu0 0.0
        %296 = vmatpush1.msra.mxu0 %v189
        %297 = vmatprep.subr.mxu0 0.0
        %298 = vmatpush1.msra.mxu0 %v190
        %299 = vmatprep.subr.mxu0 0.0
        %300 = vmatpush1.msra.mxu0 %v191
        %301 = vmatprep.subr.mxu0 0.0
        %302 = vmatpush1.msra.mxu0 %v192
        %303 = vmatprep.subr.mxu0 0.0
        %304 = vmatpush1.msra.mxu0 %v193
        %305 = vmatprep.subr.mxu0 0.0
        %306 = vmatpush1.msra.mxu0 %v194
        %307 = vmatprep.subr.mxu0 0.0
        %308 = vmatpush1.msra.mxu0 %v195
        %309 = vmatprep.subr.mxu0 0.0
        %310 = vmatpush1.msra.mxu0 %v196
        %311 = vmatprep.subr.mxu0 0.0
        %312 = vmatpush1.msra.mxu0 %v197
        %313 = vmatprep.subr.mxu0 0.0
        %314 = vmatpush1.msra.mxu0 %v198
        %315 = vmatprep.subr.mxu0 0.0
        %316 = vmatpush1.msra.mxu0 %v199
        %317 = vmatprep.subr.mxu0 0.0
        %318 = vmatpush1.msra.mxu0 %v200
        %319 = vmatprep.subr.mxu0 0.0
        %320 = vmatpush1.msra.mxu0 %v201
        %321 = vmatprep.subr.mxu0 0.0
        %322 = vmatpush1.msra.mxu0 %v202
        %323 = vmatprep.subr.mxu0 0.0
        %324 = vmatpush1.msra.mxu0 %v203
        %325 = vmatprep.mubr.f32.mxu0 %v254
        %326 = vmatmul.mubr.f32.gmra.mrb[0].mxu0 %v169
        %v327 = vpop.f32.mrb[0].mxu0
        %v328 = vadd.f32 %v249, %v327
        %v329 = vpop.f32.mrb[0].mxu0
        %330 = vdwg.mxu0
        %331 = vmatprep.subr.mxu0 0.0
        %332 = vmatpush1.msra.mxu0 %v204
        %333 = vmatprep.subr.mxu0 0.0
        %334 = vmatpush1.msra.mxu0 %v205
        %335 = vmatprep.subr.mxu0 0.0
        %336 = vmatpush1.msra.mxu0 %v206
        %337 = vmatprep.subr.mxu0 0.0
        %338 = vmatpush1.msra.mxu0 %v207
        %339 = vmatprep.subr.mxu0 0.0
        %340 = vmatpush1.msra.mxu0 %v208
        %341 = vmatprep.subr.mxu0 0.0
        %342 = vmatpush1.msra.mxu0 %v209
        %343 = vmatprep.subr.mxu0 0.0
        %344 = vmatpush1.msra.mxu0 %v210
        %345 = vmatprep.subr.mxu0 0.0
        %346 = vmatpush1.msra.mxu0 %v211
        %347 = vmatprep.subr.mxu0 0.0
        %348 = vmatpush1.msra.mxu0 %v212
        %349 = vmatprep.subr.mxu0 0.0
        %350 = vmatpush1.msra.mxu0 %v213
        %351 = vmatprep.subr.mxu0 0.0
        %352 = vmatpush1.msra.mxu0 %v214
        %353 = vmatprep.subr.mxu0 0.0
        %354 = vmatpush1.msra.mxu0 %v215
        %355 = vmatprep.subr.mxu0 0.0
        %356 = vmatpush1.msra.mxu0 %v216
        %357 = vmatprep.subr.mxu0 0.0
        %358 = vmatpush1.msra.mxu0 %v217
        %359 = vmatprep.subr.mxu0 0.0
        %360 = vmatpush1.msra.mxu0 %v218
        %361 = vmatprep.subr.mxu0 0.0
        %362 = vmatpush1.msra.mxu0 %v219
        %363 = vmatprep.subr.mxu0 0.0
        %364 = vmatpush1.msra.mxu0 %v220
        %365 = vmatprep.subr.mxu0 0.0
        %366 = vmatpush1.msra.mxu0 %v221
        %367 = vmatprep.subr.mxu0 0.0
        %368 = vmatpush1.msra.mxu0 %v222
        %369 = vmatprep.subr.mxu0 0.0
        %370 = vmatpush1.msra.mxu0 %v223
        %371 = vmatprep.subr.mxu0 0.0
        %372 = vmatpush1.msra.mxu0 %v224
        %373 = vmatprep.subr.mxu0 0.0
        %374 = vmatpush1.msra.mxu0 %v225
        %375 = vmatprep.subr.mxu0 0.0
        %376 = vmatpush1.msra.mxu0 %v226
        %377 = vmatprep.subr.mxu0 0.0
        %378 = vmatpush1.msra.mxu0 %v227
        %379 = vmatprep.subr.mxu0 0.0
        %380 = vmatpush1.msra.mxu0 %v228
        %381 = vmatprep.subr.mxu0 0.0
        %382 = vmatpush1.msra.mxu0 %v229
        %383 = vmatprep.subr.mxu0 0.0
        %384 = vmatpush1.msra.mxu0 %v230
        %385 = vmatprep.subr.mxu0 0.0
        %386 = vmatpush1.msra.mxu0 %v231
        %387 = vmatprep.subr.mxu0 0.0
        %388 = vmatpush1.msra.mxu0 %v232
        %389 = vmatprep.subr.mxu0 0.0
        %390 = vmatpush1.msra.mxu0 %v233
        %391 = vmatprep.subr.mxu0 0.0
        %392 = vmatpush1.msra.mxu0 %v234
        %393 = vmatprep.subr.mxu0 0.0
        %394 = vmatpush1.msra.mxu0 %v235
        %395 = vmatprep.mubr.f32.mxu0 %v255
        %396 = vmatmul.mubr.f32.gmra.mrb[0].mxu0 %v170
        %v397 = vpop.f32.mrb[0].mxu0
        %v398 = vadd.f32 %v328, %v397
        %v399 = vpop.f32.mrb[0].mxu0
        %400 = vdwg.mxu0
        %401 = vmatprep.subr.mxu0 0.0
        %402 = vmatpush1.msra.mxu0 %v236
        %403 = vmatprep.subr.mxu0 0.0
        %404 = vmatpush1.msra.mxu0 %v237
        %405 = vmatprep.subr.mxu0 0.0
        %406 = vmatpush1.msra.mxu0 %v238
        %407 = vmatprep.subr.mxu0 0.0
        %408 = vmatpush1.msra.mxu0 %v239
        %409 = vmatprep.subr.mxu0 0.0
        %410 = vmatpush1.msra.mxu0 %v240
        %411 = vmatprep.subr.mxu0 0.0
        %412 = vmatpush1.msra.mxu0 %v241
        %413 = vmatprep.subr.mxu0 0.0
        %414 = vmatpush1.msra.mxu0 %v242
        %415 = vmatprep.subr.mxu0 0.0
        %416 = vmatpush1.msra.mxu0 %v243
        %417 = vmatprep.subr.mxu0 0.0
        %418 = vmatpush1.msra.mxu0 0.0
        %419 = vmatprep.subr.mxu0 0.0
        %420 = vmatpush1.msra.mxu0 0.0
        %421 = vmatprep.subr.mxu0 0.0
        %422 = vmatpush1.msra.mxu0 0.0
        %423 = vmatprep.subr.mxu0 0.0
        %424 = vmatpush1.msra.mxu0 0.0
        %425 = vmatprep.subr.mxu0 0.0
        %426 = vmatpush1.msra.mxu0 0.0
        %427 = vmatprep.subr.mxu0 0.0
        %428 = vmatpush1.msra.mxu0 0.0
        %429 = vmatprep.subr.mxu0 0.0
        %430 = vmatpush1.msra.mxu0 0.0
        %431 = vmatprep.subr.mxu0 0.0
        %432 = vmatpush1.msra.mxu0 0.0
        %433 = vmatprep.subr.mxu0 0.0
        %434 = vmatpush1.msra.mxu0 0.0
        %435 = vmatprep.subr.mxu0 0.0
        %436 = vmatpush1.msra.mxu0 0.0
        %437 = vmatprep.subr.mxu0 0.0
        %438 = vmatpush1.msra.mxu0 0.0
        %439 = vmatprep.subr.mxu0 0.0
        %440 = vmatpush1.msra.mxu0 0.0
        %441 = vmatprep.subr.mxu0 0.0
        %442 = vmatpush1.msra.mxu0 0.0
        %443 = vmatprep.subr.mxu0 0.0
        %444 = vmatpush1.msra.mxu0 0.0
        %445 = vmatprep.subr.mxu0 0.0
        %446 = vmatpush1.msra.mxu0 0.0
        %447 = vmatprep.subr.mxu0 0.0
        %448 = vmatpush1.msra.mxu0 0.0
        %449 = vmatprep.subr.mxu0 0.0
        %450 = vmatpush1.msra.mxu0 0.0
        %451 = vmatprep.subr.mxu0 0.0
        %452 = vmatpush1.msra.mxu0 0.0
        %453 = vmatprep.subr.mxu0 0.0
        %454 = vmatpush1.msra.mxu0 0.0
        %455 = vmatprep.subr.mxu0 0.0
        %456 = vmatpush1.msra.mxu0 0.0
        %457 = vmatprep.subr.mxu0 0.0
        %458 = vmatpush1.msra.mxu0 0.0
        %459 = vmatprep.subr.mxu0 0.0
        %460 = vmatpush1.msra.mxu0 0.0
        %461 = vmatprep.subr.mxu0 0.0
        %462 = vmatpush1.msra.mxu0 0.0
        %463 = vmatprep.subr.mxu0 0.0
        %464 = vmatpush1.msra.mxu0 0.0
        %465 = vmatprep.mubr.f32.mxu0 0.0
        %466 = vmatmul.mubr.f32.gmra.mrb[0].mxu0 %v259
        %v467 = vpop.f32.mrb[0].mxu0
        %v468 = vadd.f32 %v398, %v467
        %v469 = vpop.f32.mrb[0].mxu0
        %470 = vdwg.mxu0
        %471 = vst [vmem:[%s163] sm:$0xf] %v468
        %s472 = sand.u32 %s93, 1
        %s473 = scalar_lea.sflag [#allocation3], %s472
        %s474 = sand.u32 %s93, 1
        %s475 = smul.addr %s474, 4
        %s476 = scalar_lea.vmem [#allocation2], %s475
        // Predicated region
        $region33: #{t2t_forward.5} parent=31 // pred_check
          %p477 = pneg %p103
        $region34: #{t2t_forward.5} parent=31 // pred_check_branch
          %479 = sbr.rel (%p477) target = $region36
        $region35: #{t2t_forward.5} parent=31 // pred_region
          %s481 = ssub.s32 64, 64
          %482 = vsyncadd %s473, %s481
          %s483 = smul.addr %s17, 64
          %s484 = scalar_lea.hbm %s3, %s483
          %s486 = sshll.u32 %s476, 4
          %s487 = int_to_ptr.vmem [resolvable:$true] %s486
          %489 = dma.vmem_to_hbm [thread:$0]  %s487, 64, %s484, %s473
        $region36: #{t2t_forward.5} parent=31 // pred_fallthru
          _
      $region32: #{t2t_forward.5} parent=5 // pred_fallthru
        _
      %p490 = scmp.le.s32.totalorder 2, %s12
      // Predicated region
      $region37: #{t2t_forward.5} parent=5 // pred_check
        %p491 = pneg %p490
      $region38: #{t2t_forward.5} parent=5 // pred_check_branch
        %493 = sbr.rel (%p491) target = $region40
      $region39: #{t2t_forward.5} parent=5 // pred_region
        %s494 = ssub.s32 %s12, 2
        // Predicated region
        $region41: #{t2t_forward.5} parent=39 // pred_check
          %p495 = pneg %p109
        $region42: #{t2t_forward.5} parent=39 // pred_check_branch
          %497 = sbr.rel (%p495) target = $region44
        $region43: #{t2t_forward.5} parent=39 // pred_region
          %s498 = sand.u32 %s94, 1
          %s499 = scalar_lea.sflag [#allocation3], %s498
          %s500 = sand.u32 %s94, 1
          %s501 = smul.addr %s500, 4
          %s502 = scalar_lea.vmem [#allocation2], %s501
          %503 = dma.done %s499, 64
        $region44: #{t2t_forward.5} parent=39 // pred_fallthru
          _
      $region40: #{t2t_forward.5} parent=5 // pred_fallthru
        _
    $region6: #{t2t_forward.5} parent=1 // loop_footer
      %s16 = sadd.s32 1, %s12
    $region7: #{t2t_forward.5} parent=1 // loop_footer_branch
      %11 = sbr.rel target = $region3
    $region8: #{t2t_forward.5} parent=1 // loop_exit
      _
    %504 = vsyncpa [#allocation3], 1
    %s505 = scalar_lea.sflag [#allocation3], 1
    %506 = vsyncpa %s505, 1

</llo_original>
